<compile_context>
chip_gen: v5e
topology: v5e:2x2
jax: 0.10.0
libtpu: 0.0.40
codegen_flags: <defaults>
</compile_context>

<pallas_src>
import functools

import jax
import jax.numpy as jnp
from jax import lax
from jax.experimental import pallas as pl
from jax.experimental.pallas import tpu as pltpu

_LANE = 128


def _round_up(x, m):
    return ((x + m - 1) // m) * m


def _vmem_budget_bytes():
    """Generation-aware scoped-VMEM budget: ~75% of physical, capped at 100 MiB.

    v7x (64 MiB physical) -> ~48 MiB; v5e/v6e (128 MiB) -> ~96 MiB.
    """
    cap = None
    try:
        cap = getattr(pltpu.get_tpu_info(), "vmem_capacity_bytes", None)
    except Exception:
        cap = None
    if not cap:
        cap = 64 * 1024 * 1024  # conservative fallback (v7x-sized)
    budget = int(cap * 0.75)
    return max(32 * 1024 * 1024, min(budget, 100 * 1024 * 1024))


def _group_indicator(dim, dim_padded, groups):
    """0/1 same-group indicator over the padded channel axis.

    Padded channels belong to no group (all-zero rows/columns), so they neither
    pollute real-group statistics nor receive any.
    """
    gsize = dim // groups
    ch = jnp.arange(dim_padded)
    gid = jnp.where(ch < dim, ch // gsize, -1)
    ind = (gid[:, None] == gid[None, :]) & (gid[:, None] >= 0)
    return ind.astype(jnp.float32)


# -----------------------------------------------------------------------------
# Kernel: full LocalResidual forward for one tile of nodes (padded lane dims).
# -----------------------------------------------------------------------------
def _local_residual_kernel(
    x_a_ref, x_v_ref,
    wa_cat_ref, ba_cat_ref, wa2_ref, ba2_ref, wa3_ref, ba3_ref,
    wv_cat_ref, wv2_ref, wv3_ref,
    wvo_ref, wao_ref, bao_ref,
    ga_ref, gb_ref, gv_ref,
    inda_ref, indv_ref,
    out_a_ref, out_v_ref,
    *, eps, slope, inv_ga, inv_gv,
):
    f32 = jnp.float32
    bf16 = jnp.bfloat16

    def dotb(a, w):
        # MXU path: bf16 operands, f32 accumulation.
        return jnp.dot(a.astype(bf16), w, preferred_element_type=f32)

    lrelu = lambda t: jnp.where(t >= 0, t, slope * t)

    x_a = x_a_ref[...]                           # (TN, adim_p)      f32
    xv3 = x_v_ref[...]                           # (3, TN, vdim_p)   f32
    tn = xv3.shape[1]
    adim_p = x_a.shape[1]
    vdim_p = xv3.shape[2]
    # (3,TN,d) <-> (3*TN,d) merges leading axes only (TN % 8 == 0, d % 128 == 0)
    # so it should lower to a layout no-op.
    # TODO(synk): confirm with pl.lower_as_mlir at production dims that these
    #             reshapes do not materialize VMEM copies.
    xv_f = xv3.reshape(3 * tn, vdim_p)

    # ---- fused first matmuls: x_a @ [wa1|war],  xv_f @ [wv1|wvr] -------------
    ta = dotb(x_a, wa_cat_ref[...]) + ba_cat_ref[...]      # (TN, adim_p+rank_p)
    h = lrelu(ta[:, :adim_p])                              # layers_a hidden 1
    a_r = ta[:, adim_p:]                                   # av_prod scalar branch

    tv = dotb(xv_f, wv_cat_ref[...])                       # (3TN, vdim_p+rank_p)
    v = tv[:, :vdim_p]                                     # layers_v hidden 1
    v_r = tv[:, vdim_p:]                                   # av_prod vector branch

    # ---- layers_a tail: LeakyReLU -> Linear -> LeakyReLU -> Linear ----------
    h = lrelu(dotb(h, wa2_ref[...]) + ba2_ref[...])
    y_a = dotb(h, wa3_ref[...]) + ba3_ref[...]

    # ---- layers_v tail: VecRootS -> VecLinear -> VecRootS -> VecLinear ------
    def vecroots(vf):                            # vf: (3*TN, d)
        v3 = vf.reshape(3, tn, vf.shape[-1])
        n2 = jnp.sum(v3 * v3, axis=0)            # (TN, d) squared vector norms
        s = lax.rsqrt(jnp.sqrt(1.0 + n2))        # (1+|v|^2)^(-1/4)   (EUP)
        return (v3 * s[None]).reshape(3 * tn, vf.shape[-1])

    v = vecroots(v)
    v = vecroots(dotb(v, wv2_ref[...]))
    y_v = dotb(v, wv3_ref[...])                            # (3TN, vdim_p)

    # ---- av_prod: low-rank scalar <-> vector products -------------------------
    v_r3 = v_r.reshape(3, tn, v_r.shape[-1])
    p_v = dotb((a_r[None] * v_r3).reshape(3 * tn, -1), wvo_ref[...])  # (3TN,vdim_p)
    vv = jnp.sum(v_r3 * v_r3, axis=0)                      # (TN, rank_p)
    p_a = dotb(vv, wao_ref[...]) + bao_ref[...]            # (TN, adim_p)

    # ---- gnorm_a(y_a + p_a): bf16 0/1 indicator matmuls, f32 statistics ------
    z = y_a + p_a
    ind_a = inda_ref[...]
    mean_c = dotb(z, ind_a) * inv_ga                       # per-channel group mean
    zc = z - mean_c
    var_c = dotb(zc * zc, ind_a) * inv_ga                  # centered 2nd moment
    z_a = zc * lax.rsqrt(var_c + eps) * ga_ref[...] + gb_ref[...]

    # ---- gnorm_v(y_v + p_v): equivariant group-RMS norm -----------------------
    zv3 = (y_v + p_v).reshape(3, tn, vdim_p)
    n2 = jnp.sum(zv3 * zv3, axis=0)                        # (TN, vdim_p)
    ms_c = dotb(n2, indv_ref[...]) * inv_gv                # group-mean sq norm
    inv = lax.rsqrt(ms_c + eps) * gv_ref[...]

    # ---- residual outputs (lane-dense padded slabs) ----------------------------
    out_a_ref[...] = x_a + z_a
    out_v_ref[...] = xv3 + zv3 * inv[None]


# -----------------------------------------------------------------------------
# Wrapper: lane-padding, weight packing, node-tiled grid, resident weights.
# -----------------------------------------------------------------------------
def local_residual(x_a, x_v, params, *, agroups, vgroups, eps=1e-5, slope=0.2,
                   tile_n=None):
    N, adim = x_a.shape
    three, N2, vdim = x_v.shape
    assert three == 3 and N2 == N
    assert adim % agroups == 0, "adim must be divisible by agroups"
    assert vdim % vgroups == 0, "vdim must be divisible by vgroups"
    rank = params["war"].shape[1]

    adim_p = _round_up(adim, _LANE)
    vdim_p = _round_up(vdim, _LANE)
    rank_p = _round_up(rank, _LANE)

    # ---- pad + pack parameters (matmul weights in bf16; biases/affine in f32) --
    bf16 = jnp.bfloat16
    p = params

    def pad2(w, rows, cols):
        return jnp.pad(w, ((0, rows - w.shape[0]), (0, cols - w.shape[1])))

    wa_cat = jnp.concatenate(
        [pad2(p["wa1"], adim_p, adim_p), pad2(p["war"], adim_p, rank_p)],
        axis=1).astype(bf16)
    ba_cat = jnp.concatenate(
        [pad2(p["ba1"], 1, adim_p), pad2(p["bar"], 1, rank_p)], axis=1)
    wv_cat = jnp.concatenate(
        [pad2(p["wv1"], vdim_p, vdim_p), pad2(p["wvr"], vdim_p, rank_p)],
        axis=1).astype(bf16)

    kernel_params = [
        wa_cat, ba_cat,
        pad2(p["wa2"], adim_p, adim_p).astype(bf16), pad2(p["ba2"], 1, adim_p),
        pad2(p["wa3"], adim_p, adim_p).astype(bf16), pad2(p["ba3"], 1, adim_p),
        wv_cat,
        pad2(p["wv2"], vdim_p, vdim_p).astype(bf16),
        pad2(p["wv3"], vdim_p, vdim_p).astype(bf16),
        pad2(p["wvo"], rank_p, vdim_p).astype(bf16),
        pad2(p["wao"], rank_p, adim_p).astype(bf16), pad2(p["bao"], 1, adim_p),
        pad2(p["ga"], 1, adim_p), pad2(p["gb"], 1, adim_p), pad2(p["gv"], 1, vdim_p),
        _group_indicator(adim, adim_p, agroups).astype(bf16),   # 0/1 exact in bf16
        _group_indicator(vdim, vdim_p, vgroups).astype(bf16),
    ]

    # ---- generation-aware VMEM budget and tile sizing ---------------------------
    vmem_budget = _vmem_budget_bytes()
    weight_bytes = sum(int(w.size) * w.dtype.itemsize for w in kernel_params)
    # Rough per-node live-VMEM estimate (bytes): double-buffered I/O tiles plus the
    # largest simultaneously-live set of f32 intermediates.  Used only as a cap.
    per_node_bytes = 4 * (8 * adim_p + 26 * vdim_p + 10 * rank_p)
    avail = max(vmem_budget - 2 * weight_bytes, 0)
    vmem_tile_cap = max(8, (avail // max(per_node_bytes, 1)) // 8 * 8)

    if tile_n is None:
        # Bigger node tiles on 128 MiB-VMEM chips (v5e/v6e), smaller on v7x.
        tile_n = 1024 if vmem_budget > (80 << 20) else 512
    # Keep >= 2 grid steps whenever possible (megacore sharding + pipelining),
    # and a multiple of 8 on the sublane axis; never fall back to tile_n = N.
    two_step_cap = _round_up(pl.cdiv(N, 2), 8)
    tile_n = min(tile_n, vmem_tile_cap, two_step_cap, _round_up(N, 8))
    tile_n = max(8, (tile_n // 8) * 8)
    if tile_n >= N:
        tile_n = N  # tiny-N case: single full block (allowed by the tiling rules)
    grid = (pl.cdiv(N, tile_n),)  # partial last block is fine: math is per-node

    # ---- lane-pad the inputs (these temporaries donate their HBM to outputs) ----
    x_a_p = jnp.pad(x_a, ((0, 0), (0, adim_p - adim)))
    x_v_p = jnp.pad(x_v, ((0, 0), (0, 0), (0, vdim_p - vdim)))

    kern = functools.partial(
        _local_residual_kernel, eps=float(eps), slope=float(slope),
        inv_ga=1.0 / (adim // agroups), inv_gv=1.0 / (vdim // vgroups))

    def _resident_spec(arr, single_buffer):
        idx = lambda i, nd=arr.ndim: (0,) * nd
        if single_buffer:
            # Block index never changes across the grid -> single buffer halves the
            # resident-weight VMEM footprint (matters most on v7x's 64 MiB).
            return pl.BlockSpec(arr.shape, idx, pipeline_mode=pl.Buffered(1))
        return pl.BlockSpec(arr.shape, idx)

    def _call(single_buffer_weights):
        in_specs = (
            [pl.BlockSpec((tile_n, adim_p), lambda i: (i, 0)),
             pl.BlockSpec((3, tile_n, vdim_p), lambda i: (0, i, 0))]
            + [_resident_spec(w, single_buffer_weights) for w in kernel_params])
        out_specs = (
            pl.BlockSpec((tile_n, adim_p), lambda i: (i, 0)),
            pl.BlockSpec((3, tile_n, vdim_p), lambda i: (0, i, 0)))
        return pl.pallas_call(
            kern,
            out_shape=(jax.ShapeDtypeStruct((N, adim_p), jnp.float32),
                       jax.ShapeDtypeStruct((3, N, vdim_p), jnp.float32)),
            grid=grid,
            in_specs=in_specs,
            out_specs=out_specs,
            input_output_aliases={0: 0, 1: 1},
            compiler_params=pltpu.CompilerParams(
                dimension_semantics=("parallel",),     # megacore-shard node tiles
                vmem_limit_bytes=int(vmem_budget)),    # never the full physical VMEM
        )(x_a_p, x_v_p, *kernel_params)

    try:
        out_a_p, out_v_p = _call(True)
    except Exception:
        # pl.Buffered(1) not supported by this jax/mosaic version: fall back to the
        # default double-buffered resident blocks (correctness identical).
        out_a_p, out_v_p = _call(False)

    return out_a_p[:, :adim], out_v_p[:, :, :vdim]


# -----------------------------------------------------------------------------
# Deterministic parameter init (weights stored pre-transposed as (in, out)).
# -----------------------------------------------------------------------------
def init_params(key, adim, vdim, rank, agroups, vgroups):
    del agroups, vgroups  # group structure is rebuilt in the wrapper
    ks = jax.random.split(key, 16)

    def w(k, din, dout):
        return jax.random.normal(k, (din, dout), jnp.float32) / jnp.sqrt(
            jnp.float32(din))

    def b(k, dout):
        return 0.01 * jax.random.normal(k, (1, dout), jnp.float32)

    return dict(
        wa1=w(ks[0], adim, adim), ba1=b(ks[1], adim),
        wa2=w(ks[2], adim, adim), ba2=b(ks[3], adim),
        wa3=w(ks[4], adim, adim), ba3=b(ks[5], adim),
        wv1=w(ks[6], vdim, vdim),
        wv2=w(ks[7], vdim, vdim),
        wv3=w(ks[8], vdim, vdim),
        war=w(ks[9], adim, rank), bar=b(ks[10], rank),
        wvr=w(ks[11], vdim, rank),
        wvo=w(ks[12], rank, vdim),
        wao=w(ks[13], rank, adim), bao=b(ks[14], adim),
        ga=jnp.ones((1, adim), jnp.float32),
        gb=jnp.zeros((1, adim), jnp.float32),
        gv=jnp.ones((1, vdim), jnp.float32),
    )


# -----------------------------------------------------------------------------
# Pure-JAX reference (same math, f32, reshape-based group norms).
# -----------------------------------------------------------------------------
def local_residual_ref(x_a, x_v, p, agroups, vgroups, eps=1e-5, slope=0.2):
    N, adim = x_a.shape
    vdim = x_v.shape[2]

    lrelu = lambda t: jnp.where(t >= 0, t, slope * t)
    h = lrelu(x_a @ p["wa1"] + p["ba1"])
    h = lrelu(h @ p["wa2"] + p["ba2"])
    y_a = h @ p["wa3"] + p["ba3"]

    veclin = lambda v, w: jnp.einsum("cnd,de->cne", v, w)

    def roots(v):
        n2 = jnp.sum(v * v, axis=0, keepdims=True)
        return v / jnp.sqrt(jnp.sqrt(1.0 + n2))

    v = roots(veclin(x_v, p["wv1"]))
    v = roots(veclin(v, p["wv2"]))
    y_v = veclin(v, p["wv3"])

    a_r = x_a @ p["war"] + p["bar"]
    v_r = veclin(x_v, p["wvr"])
    p_v = jnp.einsum("cnr,re->cne", a_r[None] * v_r, p["wvo"])
    p_a = jnp.sum(v_r * v_r, axis=0) @ p["wao"] + p["bao"]

    z = y_a + p_a
    zg = z.reshape(N, agroups, adim // agroups)
    mean = zg.mean(-1, keepdims=True)
    var = ((zg - mean) ** 2).mean(-1, keepdims=True)
    z_a = ((zg - mean) * lax.rsqrt(var + eps)).reshape(N, adim) * p["ga"] + p["gb"]

    zv = y_v + p_v
    n2 = jnp.sum(zv * zv, axis=0)
    ms = n2.reshape(N, vgroups, vdim // vgroups).mean(-1, keepdims=True)
    ms_c = jnp.broadcast_to(ms, (N, vgroups, vdim // vgroups)).reshape(N, vdim)
    z_v = zv * (lax.rsqrt(ms_c + eps) * p["gv"])[None]
    return x_a + z_a, x_v + z_v


# -----------------------------------------------------------------------------
if __name__ == "__main__":
    config = dict(adim=16, vdim=8, rank=4, agroups=4, vgroups=2)
    N = 32

    key = jax.random.PRNGKey(0)
    k1, k2, k3 = jax.random.split(key, 3)
    x_a = jax.random.normal(k1, (N, config["adim"]), jnp.float32)
    x_v = jax.random.normal(k2, (3, N, config["vdim"]), jnp.float32)
    params = init_params(k3, **config)

    out_a, out_v = local_residual(
        x_a, x_v, params,
        agroups=config["agroups"], vgroups=config["vgroups"],
        tile_n=16)                                 # 2 grid steps, exercises pipeline
    jax.block_until_ready((out_a, out_v))

    ref_a, ref_v = local_residual_ref(
        x_a, x_v, params, config["agroups"], config["vgroups"])
    assert out_a.shape == (N, config["adim"])
    assert out_v.shape == (3, N, config["vdim"])
    assert jnp.allclose(out_a, ref_a, rtol=1e-1, atol=1e-1), \
        float(jnp.max(jnp.abs(out_a - ref_a)))
    assert jnp.allclose(out_v, ref_v, rtol=1e-1, atol=1e-1), \
        float(jnp.max(jnp.abs(out_v - ref_v)))

    print("KERNEL_OK")
</pallas_src>

<mosaic_0001>
module attributes {stable_mosaic.version = 11 : i64} {
  func.func @_local_residual_kernel(%arg0: i32, %arg1: memref<16x128xf32, #tpu.memory_space<vmem>>, %arg2: memref<3x16x128xf32, #tpu.memory_space<vmem>>, %arg3: memref<128x256xbf16, #tpu.memory_space<vmem>>, %arg4: memref<1x256xf32, #tpu.memory_space<vmem>>, %arg5: memref<128x128xbf16, #tpu.memory_space<vmem>>, %arg6: memref<1x128xf32, #tpu.memory_space<vmem>>, %arg7: memref<128x128xbf16, #tpu.memory_space<vmem>>, %arg8: memref<1x128xf32, #tpu.memory_space<vmem>>, %arg9: memref<128x256xbf16, #tpu.memory_space<vmem>>, %arg10: memref<128x128xbf16, #tpu.memory_space<vmem>>, %arg11: memref<128x128xbf16, #tpu.memory_space<vmem>>, %arg12: memref<128x128xbf16, #tpu.memory_space<vmem>>, %arg13: memref<128x128xbf16, #tpu.memory_space<vmem>>, %arg14: memref<1x128xf32, #tpu.memory_space<vmem>>, %arg15: memref<1x128xf32, #tpu.memory_space<vmem>>, %arg16: memref<1x128xf32, #tpu.memory_space<vmem>>, %arg17: memref<1x128xf32, #tpu.memory_space<vmem>>, %arg18: memref<128x128xbf16, #tpu.memory_space<vmem>>, %arg19: memref<128x128xbf16, #tpu.memory_space<vmem>>, %arg20: memref<16x128xf32, #tpu.memory_space<vmem>>, %arg21: memref<3x16x128xf32, #tpu.memory_space<vmem>>) attributes {dimension_semantics = [#tpu.dimension_semantics<parallel>], iteration_bounds = array<i64: 2>, scalar_prefetch = 0 : i64, scratch_operands = 0 : i64, tpu.core_type = #tpu.core_type<tc>, window_params = [{transform_indices = @transform_0, window_bounds = array<i64: 16, 128>}, {transform_indices = @transform_1, window_bounds = array<i64: 3, 16, 128>}, {pipeline_mode = #tpu.pipeline_mode<synchronous>, transform_indices = @transform_2, window_bounds = array<i64: 128, 256>}, {pipeline_mode = #tpu.pipeline_mode<synchronous>, transform_indices = @transform_3, window_bounds = array<i64: 1, 256>}, {pipeline_mode = #tpu.pipeline_mode<synchronous>, transform_indices = @transform_4, window_bounds = array<i64: 128, 128>}, {pipeline_mode = #tpu.pipeline_mode<synchronous>, transform_indices = @transform_5, window_bounds = array<i64: 1, 128>}, {pipeline_mode = #tpu.pipeline_mode<synchronous>, transform_indices = @transform_6, window_bounds = array<i64: 128, 128>}, {pipeline_mode = #tpu.pipeline_mode<synchronous>, transform_indices = @transform_7, window_bounds = array<i64: 1, 128>}, {pipeline_mode = #tpu.pipeline_mode<synchronous>, transform_indices = @transform_8, window_bounds = array<i64: 128, 256>}, {pipeline_mode = #tpu.pipeline_mode<synchronous>, transform_indices = @transform_9, window_bounds = array<i64: 128, 128>}, {pipeline_mode = #tpu.pipeline_mode<synchronous>, transform_indices = @transform_10, window_bounds = array<i64: 128, 128>}, {pipeline_mode = #tpu.pipeline_mode<synchronous>, transform_indices = @transform_11, window_bounds = array<i64: 128, 128>}, {pipeline_mode = #tpu.pipeline_mode<synchronous>, transform_indices = @transform_12, window_bounds = array<i64: 128, 128>}, {pipeline_mode = #tpu.pipeline_mode<synchronous>, transform_indices = @transform_13, window_bounds = array<i64: 1, 128>}, {pipeline_mode = #tpu.pipeline_mode<synchronous>, transform_indices = @transform_14, window_bounds = array<i64: 1, 128>}, {pipeline_mode = #tpu.pipeline_mode<synchronous>, transform_indices = @transform_15, window_bounds = array<i64: 1, 128>}, {pipeline_mode = #tpu.pipeline_mode<synchronous>, transform_indices = @transform_16, window_bounds = array<i64: 1, 128>}, {pipeline_mode = #tpu.pipeline_mode<synchronous>, transform_indices = @transform_17, window_bounds = array<i64: 128, 128>}, {pipeline_mode = #tpu.pipeline_mode<synchronous>, transform_indices = @transform_18, window_bounds = array<i64: 128, 128>}, {transform_indices = @transform_19, window_bounds = array<i64: 16, 128>}, {transform_indices = @transform_20, window_bounds = array<i64: 3, 16, 128>}]} {
    %c0 = arith.constant 0 : index
    %c0_0 = arith.constant 0 : index
    %0 = vector.load %arg1[%c0, %c0_0] : memref<16x128xf32, #tpu.memory_space<vmem>>, vector<16x128xf32>
    %c0_1 = arith.constant 0 : index
    %c0_2 = arith.constant 0 : index
    %c0_3 = arith.constant 0 : index
    %1 = vector.load %arg2[%c0_1, %c0_2, %c0_3] : memref<3x16x128xf32, #tpu.memory_space<vmem>>, vector<3x16x128xf32>
    %2 = vector.shape_cast %1 : vector<3x16x128xf32> to vector<48x128xf32>
    %c0_4 = arith.constant 0 : index
    %c0_5 = arith.constant 0 : index
    %3 = vector.load %arg3[%c0_4, %c0_5] : memref<128x256xbf16, #tpu.memory_space<vmem>>, vector<128x256xbf16>
    %4 = arith.truncf %0 : vector<16x128xf32> to vector<16x128xbf16>
    %cst = arith.constant dense<0.000000e+00> : vector<16x256xf32>
    %5 = tpu.matmul %4, %3, %cst {dimension_numbers = #tpu.dot_dimension_numbers<[1], [0], [0], [1], [0, 0, 1, 1], [], []>} : vector<16x128xbf16>, vector<128x256xbf16>, vector<16x256xf32> -> vector<16x256xf32>
    %c0_6 = arith.constant 0 : index
    %c0_7 = arith.constant 0 : index
    %6 = vector.load %arg4[%c0_6, %c0_7] : memref<1x256xf32, #tpu.memory_space<vmem>>, vector<1x256xf32>
    %7 = vector.broadcast %6 : vector<1x256xf32> to vector<16x256xf32>
    %8 = arith.addf %5, %7 : vector<16x256xf32>
    %9 = vector.extract_strided_slice %8 {offsets = [0, 0], sizes = [16, 128], strides = [1, 1]} : vector<16x256xf32> to vector<16x128xf32>
    %cst_8 = arith.constant 0.000000e+00 : f32
    %10 = vector.broadcast %cst_8 : f32 to vector<16x128xf32>
    %11 = arith.cmpf oge, %9, %10 : vector<16x128xf32>
    %cst_9 = arith.constant 2.000000e-01 : f32
    %12 = vector.broadcast %cst_9 : f32 to vector<16x128xf32>
    %13 = arith.mulf %12, %9 : vector<16x128xf32>
    %14 = arith.select %11, %9, %13 : vector<16x128xi1>, vector<16x128xf32>
    %15 = vector.extract_strided_slice %8 {offsets = [0, 128], sizes = [16, 128], strides = [1, 1]} : vector<16x256xf32> to vector<16x128xf32>
    %c0_10 = arith.constant 0 : index
    %c0_11 = arith.constant 0 : index
    %16 = vector.load %arg9[%c0_10, %c0_11] : memref<128x256xbf16, #tpu.memory_space<vmem>>, vector<128x256xbf16>
    %17 = arith.truncf %2 : vector<48x128xf32> to vector<48x128xbf16>
    %cst_12 = arith.constant dense<0.000000e+00> : vector<48x256xf32>
    %18 = tpu.matmul %17, %16, %cst_12 {dimension_numbers = #tpu.dot_dimension_numbers<[1], [0], [0], [1], [0, 0, 1, 1], [], []>} : vector<48x128xbf16>, vector<128x256xbf16>, vector<48x256xf32> -> vector<48x256xf32>
    %19 = vector.extract_strided_slice %18 {offsets = [0, 0], sizes = [48, 128], strides = [1, 1]} : vector<48x256xf32> to vector<48x128xf32>
    %20 = vector.extract_strided_slice %18 {offsets = [0, 128], sizes = [48, 128], strides = [1, 1]} : vector<48x256xf32> to vector<48x128xf32>
    %c0_13 = arith.constant 0 : index
    %c0_14 = arith.constant 0 : index
    %21 = vector.load %arg5[%c0_13, %c0_14] : memref<128x128xbf16, #tpu.memory_space<vmem>>, vector<128x128xbf16>
    %22 = arith.truncf %14 : vector<16x128xf32> to vector<16x128xbf16>
    %cst_15 = arith.constant dense<0.000000e+00> : vector<16x128xf32>
    %23 = tpu.matmul %22, %21, %cst_15 {dimension_numbers = #tpu.dot_dimension_numbers<[1], [0], [0], [1], [0, 0, 1, 1], [], []>} : vector<16x128xbf16>, vector<128x128xbf16>, vector<16x128xf32> -> vector<16x128xf32>
    %c0_16 = arith.constant 0 : index
    %c0_17 = arith.constant 0 : index
    %24 = vector.load %arg6[%c0_16, %c0_17] : memref<1x128xf32, #tpu.memory_space<vmem>>, vector<1x128xf32>
    %25 = vector.broadcast %24 : vector<1x128xf32> to vector<16x128xf32>
    %26 = arith.addf %23, %25 : vector<16x128xf32>
    %cst_18 = arith.constant 0.000000e+00 : f32
    %27 = vector.broadcast %cst_18 : f32 to vector<16x128xf32>
    %28 = arith.cmpf oge, %26, %27 : vector<16x128xf32>
    %cst_19 = arith.constant 2.000000e-01 : f32
    %29 = vector.broadcast %cst_19 : f32 to vector<16x128xf32>
    %30 = arith.mulf %29, %26 : vector<16x128xf32>
    %31 = arith.select %28, %26, %30 : vector<16x128xi1>, vector<16x128xf32>
    %c0_20 = arith.constant 0 : index
    %c0_21 = arith.constant 0 : index
    %32 = vector.load %arg7[%c0_20, %c0_21] : memref<128x128xbf16, #tpu.memory_space<vmem>>, vector<128x128xbf16>
    %33 = arith.truncf %31 : vector<16x128xf32> to vector<16x128xbf16>
    %cst_22 = arith.constant dense<0.000000e+00> : vector<16x128xf32>
    %34 = tpu.matmul %33, %32, %cst_22 {dimension_numbers = #tpu.dot_dimension_numbers<[1], [0], [0], [1], [0, 0, 1, 1], [], []>} : vector<16x128xbf16>, vector<128x128xbf16>, vector<16x128xf32> -> vector<16x128xf32>
    %c0_23 = arith.constant 0 : index
    %c0_24 = arith.constant 0 : index
    %35 = vector.load %arg8[%c0_23, %c0_24] : memref<1x128xf32, #tpu.memory_space<vmem>>, vector<1x128xf32>
    %36 = vector.broadcast %35 : vector<1x128xf32> to vector<16x128xf32>
    %37 = arith.addf %34, %36 : vector<16x128xf32>
    %38 = vector.shape_cast %19 : vector<48x128xf32> to vector<3x16x128xf32>
    %39 = arith.mulf %38, %38 : vector<3x16x128xf32>
    %cst_25 = arith.constant dense<0.000000e+00> : vector<16x128xf32>
    %40 = vector.multi_reduction <add>, %39, %cst_25 [0] : vector<3x16x128xf32> to vector<16x128xf32>
    %cst_26 = arith.constant 1.000000e+00 : f32
    %41 = vector.broadcast %cst_26 : f32 to vector<16x128xf32>
    %42 = arith.addf %41, %40 : vector<16x128xf32>
    %43 = math.sqrt %42 : vector<16x128xf32>
    %44 = math.rsqrt %43 : vector<16x128xf32>
    %45 = vector.shape_cast %44 : vector<16x128xf32> to vector<1x16x128xf32>
    %46 = vector.broadcast %45 : vector<1x16x128xf32> to vector<3x16x128xf32>
    %47 = arith.mulf %38, %46 : vector<3x16x128xf32>
    %48 = vector.shape_cast %47 : vector<3x16x128xf32> to vector<48x128xf32>
    %c0_27 = arith.constant 0 : index
    %c0_28 = arith.constant 0 : index
    %49 = vector.load %arg10[%c0_27, %c0_28] : memref<128x128xbf16, #tpu.memory_space<vmem>>, vector<128x128xbf16>
    %50 = arith.truncf %48 : vector<48x128xf32> to vector<48x128xbf16>
    %cst_29 = arith.constant dense<0.000000e+00> : vector<48x128xf32>
    %51 = tpu.matmul %50, %49, %cst_29 {dimension_numbers = #tpu.dot_dimension_numbers<[1], [0], [0], [1], [0, 0, 1, 1], [], []>} : vector<48x128xbf16>, vector<128x128xbf16>, vector<48x128xf32> -> vector<48x128xf32>
    %52 = vector.shape_cast %51 : vector<48x128xf32> to vector<3x16x128xf32>
    %53 = arith.mulf %52, %52 : vector<3x16x128xf32>
    %cst_30 = arith.constant dense<0.000000e+00> : vector<16x128xf32>
    %54 = vector.multi_reduction <add>, %53, %cst_30 [0] : vector<3x16x128xf32> to vector<16x128xf32>
    %cst_31 = arith.constant 1.000000e+00 : f32
    %55 = vector.broadcast %cst_31 : f32 to vector<16x128xf32>
    %56 = arith.addf %55, %54 : vector<16x128xf32>
    %57 = math.sqrt %56 : vector<16x128xf32>
    %58 = math.rsqrt %57 : vector<16x128xf32>
    %59 = vector.shape_cast %58 : vector<16x128xf32> to vector<1x16x128xf32>
    %60 = vector.broadcast %59 : vector<1x16x128xf32> to vector<3x16x128xf32>
    %61 = arith.mulf %52, %60 : vector<3x16x128xf32>
    %62 = vector.shape_cast %61 : vector<3x16x128xf32> to vector<48x128xf32>
    %c0_32 = arith.constant 0 : index
    %c0_33 = arith.constant 0 : index
    %63 = vector.load %arg11[%c0_32, %c0_33] : memref<128x128xbf16, #tpu.memory_space<vmem>>, vector<128x128xbf16>
    %64 = arith.truncf %62 : vector<48x128xf32> to vector<48x128xbf16>
    %cst_34 = arith.constant dense<0.000000e+00> : vector<48x128xf32>
    %65 = tpu.matmul %64, %63, %cst_34 {dimension_numbers = #tpu.dot_dimension_numbers<[1], [0], [0], [1], [0, 0, 1, 1], [], []>} : vector<48x128xbf16>, vector<128x128xbf16>, vector<48x128xf32> -> vector<48x128xf32>
    %66 = vector.shape_cast %20 : vector<48x128xf32> to vector<3x16x128xf32>
    %67 = vector.shape_cast %15 : vector<16x128xf32> to vector<1x16x128xf32>
    %68 = vector.broadcast %67 : vector<1x16x128xf32> to vector<3x16x128xf32>
    %69 = arith.mulf %68, %66 : vector<3x16x128xf32>
    %70 = vector.shape_cast %69 : vector<3x16x128xf32> to vector<48x128xf32>
    %c0_35 = arith.constant 0 : index
    %c0_36 = arith.constant 0 : index
    %71 = vector.load %arg12[%c0_35, %c0_36] : memref<128x128xbf16, #tpu.memory_space<vmem>>, vector<128x128xbf16>
    %72 = arith.truncf %70 : vector<48x128xf32> to vector<48x128xbf16>
    %cst_37 = arith.constant dense<0.000000e+00> : vector<48x128xf32>
    %73 = tpu.matmul %72, %71, %cst_37 {dimension_numbers = #tpu.dot_dimension_numbers<[1], [0], [0], [1], [0, 0, 1, 1], [], []>} : vector<48x128xbf16>, vector<128x128xbf16>, vector<48x128xf32> -> vector<48x128xf32>
    %74 = arith.mulf %66, %66 : vector<3x16x128xf32>
    %cst_38 = arith.constant dense<0.000000e+00> : vector<16x128xf32>
    %75 = vector.multi_reduction <add>, %74, %cst_38 [0] : vector<3x16x128xf32> to vector<16x128xf32>
    %c0_39 = arith.constant 0 : index
    %c0_40 = arith.constant 0 : index
    %76 = vector.load %arg13[%c0_39, %c0_40] : memref<128x128xbf16, #tpu.memory_space<vmem>>, vector<128x128xbf16>
    %77 = arith.truncf %75 : vector<16x128xf32> to vector<16x128xbf16>
    %cst_41 = arith.constant dense<0.000000e+00> : vector<16x128xf32>
    %78 = tpu.matmul %77, %76, %cst_41 {dimension_numbers = #tpu.dot_dimension_numbers<[1], [0], [0], [1], [0, 0, 1, 1], [], []>} : vector<16x128xbf16>, vector<128x128xbf16>, vector<16x128xf32> -> vector<16x128xf32>
    %c0_42 = arith.constant 0 : index
    %c0_43 = arith.constant 0 : index
    %79 = vector.load %arg14[%c0_42, %c0_43] : memref<1x128xf32, #tpu.memory_space<vmem>>, vector<1x128xf32>
    %80 = vector.broadcast %79 : vector<1x128xf32> to vector<16x128xf32>
    %81 = arith.addf %78, %80 : vector<16x128xf32>
    %82 = arith.addf %37, %81 : vector<16x128xf32>
    %c0_44 = arith.constant 0 : index
    %c0_45 = arith.constant 0 : index
    %83 = vector.load %arg18[%c0_44, %c0_45] : memref<128x128xbf16, #tpu.memory_space<vmem>>, vector<128x128xbf16>
    %84 = arith.truncf %82 : vector<16x128xf32> to vector<16x128xbf16>
    %cst_46 = arith.constant dense<0.000000e+00> : vector<16x128xf32>
    %85 = tpu.matmul %84, %83, %cst_46 {dimension_numbers = #tpu.dot_dimension_numbers<[1], [0], [0], [1], [0, 0, 1, 1], [], []>} : vector<16x128xbf16>, vector<128x128xbf16>, vector<16x128xf32> -> vector<16x128xf32>
    %cst_47 = arith.constant 2.500000e-01 : f32
    %86 = vector.broadcast %cst_47 : f32 to vector<16x128xf32>
    %87 = arith.mulf %85, %86 : vector<16x128xf32>
    %88 = arith.subf %82, %87 : vector<16x128xf32>
    %89 = arith.mulf %88, %88 : vector<16x128xf32>
    %90 = arith.truncf %89 : vector<16x128xf32> to vector<16x128xbf16>
    %cst_48 = arith.constant dense<0.000000e+00> : vector<16x128xf32>
    %91 = tpu.matmul %90, %83, %cst_48 {dimension_numbers = #tpu.dot_dimension_numbers<[1], [0], [0], [1], [0, 0, 1, 1], [], []>} : vector<16x128xbf16>, vector<128x128xbf16>, vector<16x128xf32> -> vector<16x128xf32>
    %cst_49 = arith.constant 2.500000e-01 : f32
    %92 = vector.broadcast %cst_49 : f32 to vector<16x128xf32>
    %93 = arith.mulf %91, %92 : vector<16x128xf32>
    %cst_50 = arith.constant 9.99999974E-6 : f32
    %94 = vector.broadcast %cst_50 : f32 to vector<16x128xf32>
    %95 = arith.addf %93, %94 : vector<16x128xf32>
    %96 = math.rsqrt %95 : vector<16x128xf32>
    %97 = arith.mulf %88, %96 : vector<16x128xf32>
    %c0_51 = arith.constant 0 : index
    %c0_52 = arith.constant 0 : index
    %98 = vector.load %arg15[%c0_51, %c0_52] : memref<1x128xf32, #tpu.memory_space<vmem>>, vector<1x128xf32>
    %99 = vector.broadcast %98 : vector<1x128xf32> to vector<16x128xf32>
    %100 = arith.mulf %97, %99 : vector<16x128xf32>
    %c0_53 = arith.constant 0 : index
    %c0_54 = arith.constant 0 : index
    %101 = vector.load %arg16[%c0_53, %c0_54] : memref<1x128xf32, #tpu.memory_space<vmem>>, vector<1x128xf32>
    %102 = vector.broadcast %101 : vector<1x128xf32> to vector<16x128xf32>
    %103 = arith.addf %100, %102 : vector<16x128xf32>
    %104 = arith.addf %65, %73 : vector<48x128xf32>
    %105 = vector.shape_cast %104 : vector<48x128xf32> to vector<3x16x128xf32>
    %106 = arith.mulf %105, %105 : vector<3x16x128xf32>
    %cst_55 = arith.constant dense<0.000000e+00> : vector<16x128xf32>
    %107 = vector.multi_reduction <add>, %106, %cst_55 [0] : vector<3x16x128xf32> to vector<16x128xf32>
    %c0_56 = arith.constant 0 : index
    %c0_57 = arith.constant 0 : index
    %108 = vector.load %arg19[%c0_56, %c0_57] : memref<128x128xbf16, #tpu.memory_space<vmem>>, vector<128x128xbf16>
    %109 = arith.truncf %107 : vector<16x128xf32> to vector<16x128xbf16>
    %cst_58 = arith.constant dense<0.000000e+00> : vector<16x128xf32>
    %110 = tpu.matmul %109, %108, %cst_58 {dimension_numbers = #tpu.dot_dimension_numbers<[1], [0], [0], [1], [0, 0, 1, 1], [], []>} : vector<16x128xbf16>, vector<128x128xbf16>, vector<16x128xf32> -> vector<16x128xf32>
    %cst_59 = arith.constant 2.500000e-01 : f32
    %111 = vector.broadcast %cst_59 : f32 to vector<16x128xf32>
    %112 = arith.mulf %110, %111 : vector<16x128xf32>
    %cst_60 = arith.constant 9.99999974E-6 : f32
    %113 = vector.broadcast %cst_60 : f32 to vector<16x128xf32>
    %114 = arith.addf %112, %113 : vector<16x128xf32>
    %115 = math.rsqrt %114 : vector<16x128xf32>
    %c0_61 = arith.constant 0 : index
    %c0_62 = arith.constant 0 : index
    %116 = vector.load %arg17[%c0_61, %c0_62] : memref<1x128xf32, #tpu.memory_space<vmem>>, vector<1x128xf32>
    %117 = vector.broadcast %116 : vector<1x128xf32> to vector<16x128xf32>
    %118 = arith.mulf %115, %117 : vector<16x128xf32>
    %119 = arith.addf %0, %103 : vector<16x128xf32>
    %c0_63 = arith.constant 0 : index
    %c0_64 = arith.constant 0 : index
    %120 = vector.load %arg20[%c0_63, %c0_64] : memref<16x128xf32, #tpu.memory_space<vmem>>, vector<16x128xf32>
    tpu.vector_store %arg20[%c0_63, %c0_64], %119 {strides = array<i32>} : memref<16x128xf32, #tpu.memory_space<vmem>>, vector<16x128xf32>,
    %121 = vector.shape_cast %118 : vector<16x128xf32> to vector<1x16x128xf32>
    %122 = vector.broadcast %121 : vector<1x16x128xf32> to vector<3x16x128xf32>
    %123 = arith.mulf %105, %122 : vector<3x16x128xf32>
    %124 = arith.addf %1, %123 : vector<3x16x128xf32>
    %c0_65 = arith.constant 0 : index
    %c0_66 = arith.constant 0 : index
    %c0_67 = arith.constant 0 : index
    %125 = vector.load %arg21[%c0_65, %c0_66, %c0_67] : memref<3x16x128xf32, #tpu.memory_space<vmem>>, vector<3x16x128xf32>
    tpu.vector_store %arg21[%c0_65, %c0_66, %c0_67], %124 {strides = array<i32>} : memref<3x16x128xf32, #tpu.memory_space<vmem>>, vector<3x16x128xf32>,
    return
  }
  func.func @transform_0(%arg0: i32) -> (i32, i32) {
    %c0_i32 = arith.constant 0 : i32
    %c0_i32_0 = arith.constant 0 : i32
    return %arg0, %c0_i32 : i32, i32
  }
  func.func @transform_1(%arg0: i32) -> (i32, i32, i32) {
    %c0_i32 = arith.constant 0 : i32
    %c0_i32_0 = arith.constant 0 : i32
    %c0_i32_1 = arith.constant 0 : i32
    return %c0_i32, %arg0, %c0_i32_0 : i32, i32, i32
  }
  func.func @transform_2(%arg0: i32) -> (i32, i32) {
    %c0_i32 = arith.constant 0 : i32
    %c0_i32_0 = arith.constant 0 : i32
    %c0_i32_1 = arith.constant 0 : i32
    return %c0_i32, %c0_i32_0 : i32, i32
  }
  func.func @transform_3(%arg0: i32) -> (i32, i32) {
    %c0_i32 = arith.constant 0 : i32
    %c0_i32_0 = arith.constant 0 : i32
    %c0_i32_1 = arith.constant 0 : i32
    return %c0_i32, %c0_i32_0 : i32, i32
  }
  func.func @transform_4(%arg0: i32) -> (i32, i32) {
    %c0_i32 = arith.constant 0 : i32
    %c0_i32_0 = arith.constant 0 : i32
    %c0_i32_1 = arith.constant 0 : i32
    return %c0_i32, %c0_i32_0 : i32, i32
  }
  func.func @transform_5(%arg0: i32) -> (i32, i32) {
    %c0_i32 = arith.constant 0 : i32
    %c0_i32_0 = arith.constant 0 : i32
    %c0_i32_1 = arith.constant 0 : i32
    return %c0_i32, %c0_i32_0 : i32, i32
  }
  func.func @transform_6(%arg0: i32) -> (i32, i32) {
    %c0_i32 = arith.constant 0 : i32
    %c0_i32_0 = arith.constant 0 : i32
    %c0_i32_1 = arith.constant 0 : i32
    return %c0_i32, %c0_i32_0 : i32, i32
  }
  func.func @transform_7(%arg0: i32) -> (i32, i32) {
    %c0_i32 = arith.constant 0 : i32
    %c0_i32_0 = arith.constant 0 : i32
    %c0_i32_1 = arith.constant 0 : i32
    return %c0_i32, %c0_i32_0 : i32, i32
  }
  func.func @transform_8(%arg0: i32) -> (i32, i32) {
    %c0_i32 = arith.constant 0 : i32
    %c0_i32_0 = arith.constant 0 : i32
    %c0_i32_1 = arith.constant 0 : i32
    return %c0_i32, %c0_i32_0 : i32, i32
  }
  func.func @transform_9(%arg0: i32) -> (i32, i32) {
    %c0_i32 = arith.constant 0 : i32
    %c0_i32_0 = arith.constant 0 : i32
    %c0_i32_1 = arith.constant 0 : i32
    return %c0_i32, %c0_i32_0 : i32, i32
  }
  func.func @transform_10(%arg0: i32) -> (i32, i32) {
    %c0_i32 = arith.constant 0 : i32
    %c0_i32_0 = arith.constant 0 : i32
    %c0_i32_1 = arith.constant 0 : i32
    return %c0_i32, %c0_i32_0 : i32, i32
  }
  func.func @transform_11(%arg0: i32) -> (i32, i32) {
    %c0_i32 = arith.constant 0 : i32
    %c0_i32_0 = arith.constant 0 : i32
    %c0_i32_1 = arith.constant 0 : i32
    return %c0_i32, %c0_i32_0 : i32, i32
  }
  func.func @transform_12(%arg0: i32) -> (i32, i32) {
    %c0_i32 = arith.constant 0 : i32
    %c0_i32_0 = arith.constant 0 : i32
    %c0_i32_1 = arith.constant 0 : i32
    return %c0_i32, %c0_i32_0 : i32, i32
  }
  func.func @transform_13(%arg0: i32) -> (i32, i32) {
    %c0_i32 = arith.constant 0 : i32
    %c0_i32_0 = arith.constant 0 : i32
    %c0_i32_1 = arith.constant 0 : i32
    return %c0_i32, %c0_i32_0 : i32, i32
  }
  func.func @transform_14(%arg0: i32) -> (i32, i32) {
    %c0_i32 = arith.constant 0 : i32
    %c0_i32_0 = arith.constant 0 : i32
    %c0_i32_1 = arith.constant 0 : i32
    return %c0_i32, %c0_i32_0 : i32, i32
  }
  func.func @transform_15(%arg0: i32) -> (i32, i32) {
    %c0_i32 = arith.constant 0 : i32
    %c0_i32_0 = arith.constant 0 : i32
    %c0_i32_1 = arith.constant 0 : i32
    return %c0_i32, %c0_i32_0 : i32, i32
  }
  func.func @transform_16(%arg0: i32) -> (i32, i32) {
    %c0_i32 = arith.constant 0 : i32
    %c0_i32_0 = arith.constant 0 : i32
    %c0_i32_1 = arith.constant 0 : i32
    return %c0_i32, %c0_i32_0 : i32, i32
  }
  func.func @transform_17(%arg0: i32) -> (i32, i32) {
    %c0_i32 = arith.constant 0 : i32
    %c0_i32_0 = arith.constant 0 : i32
    %c0_i32_1 = arith.constant 0 : i32
    return %c0_i32, %c0_i32_0 : i32, i32
  }
  func.func @transform_18(%arg0: i32) -> (i32, i32) {
    %c0_i32 = arith.constant 0 : i32
    %c0_i32_0 = arith.constant 0 : i32
    %c0_i32_1 = arith.constant 0 : i32
    return %c0_i32, %c0_i32_0 : i32, i32
  }
  func.func @transform_19(%arg0: i32) -> (i32, i32) {
    %c0_i32 = arith.constant 0 : i32
    %c0_i32_0 = arith.constant 0 : i32
    return %arg0, %c0_i32 : i32, i32
  }
  func.func @transform_20(%arg0: i32) -> (i32, i32, i32) {
    %c0_i32 = arith.constant 0 : i32
    %c0_i32_0 = arith.constant 0 : i32
    %c0_i32_1 = arith.constant 0 : i32
    return %c0_i32, %arg0, %c0_i32_0 : i32, i32, i32
  }
}

module attributes {stable_mosaic.version = 11 : i64} {
  func.func @_local_residual_kernel(%arg0: i32, %arg1: memref<16x128xf32, #tpu.memory_space<vmem>>, %arg2: memref<3x16x128xf32, #tpu.memory_space<vmem>>, %arg3: memref<128x256xbf16, #tpu.memory_space<vmem>>, %arg4: memref<1x256xf32, #tpu.memory_space<vmem>>, %arg5: memref<128x128xbf16, #tpu.memory_space<vmem>>, %arg6: memref<1x128xf32, #tpu.memory_space<vmem>>, %arg7: memref<128x128xbf16, #tpu.memory_space<vmem>>, %arg8: memref<1x128xf32, #tpu.memory_space<vmem>>, %arg9: memref<128x256xbf16, #tpu.memory_space<vmem>>, %arg10: memref<128x128xbf16, #tpu.memory_space<vmem>>, %arg11: memref<128x128xbf16, #tpu.memory_space<vmem>>, %arg12: memref<128x128xbf16, #tpu.memory_space<vmem>>, %arg13: memref<128x128xbf16, #tpu.memory_space<vmem>>, %arg14: memref<1x128xf32, #tpu.memory_space<vmem>>, %arg15: memref<1x128xf32, #tpu.memory_space<vmem>>, %arg16: memref<1x128xf32, #tpu.memory_space<vmem>>, %arg17: memref<1x128xf32, #tpu.memory_space<vmem>>, %arg18: memref<128x128xbf16, #tpu.memory_space<vmem>>, %arg19: memref<128x128xbf16, #tpu.memory_space<vmem>>, %arg20: memref<16x128xf32, #tpu.memory_space<vmem>>, %arg21: memref<3x16x128xf32, #tpu.memory_space<vmem>>) attributes {dimension_semantics = [#tpu.dimension_semantics<parallel>], iteration_bounds = array<i64: 2>, scalar_prefetch = 0 : i64, scratch_operands = 0 : i64, tpu.core_type = #tpu.core_type<tc>, window_params = [{transform_indices = @transform_0, window_bounds = array<i64: 16, 128>}, {transform_indices = @transform_1, window_bounds = array<i64: 3, 16, 128>}, {pipeline_mode = #tpu.pipeline_mode<synchronous>, transform_indices = @transform_2, window_bounds = array<i64: 128, 256>}, {pipeline_mode = #tpu.pipeline_mode<synchronous>, transform_indices = @transform_3, window_bounds = array<i64: 1, 256>}, {pipeline_mode = #tpu.pipeline_mode<synchronous>, transform_indices = @transform_4, window_bounds = array<i64: 128, 128>}, {pipeline_mode = #tpu.pipeline_mode<synchronous>, transform_indices = @transform_5, window_bounds = array<i64: 1, 128>}, {pipeline_mode = #tpu.pipeline_mode<synchronous>, transform_indices = @transform_6, window_bounds = array<i64: 128, 128>}, {pipeline_mode = #tpu.pipeline_mode<synchronous>, transform_indices = @transform_7, window_bounds = array<i64: 1, 128>}, {pipeline_mode = #tpu.pipeline_mode<synchronous>, transform_indices = @transform_8, window_bounds = array<i64: 128, 256>}, {pipeline_mode = #tpu.pipeline_mode<synchronous>, transform_indices = @transform_9, window_bounds = array<i64: 128, 128>}, {pipeline_mode = #tpu.pipeline_mode<synchronous>, transform_indices = @transform_10, window_bounds = array<i64: 128, 128>}, {pipeline_mode = #tpu.pipeline_mode<synchronous>, transform_indices = @transform_11, window_bounds = array<i64: 128, 128>}, {pipeline_mode = #tpu.pipeline_mode<synchronous>, transform_indices = @transform_12, window_bounds = array<i64: 128, 128>}, {pipeline_mode = #tpu.pipeline_mode<synchronous>, transform_indices = @transform_13, window_bounds = array<i64: 1, 128>}, {pipeline_mode = #tpu.pipeline_mode<synchronous>, transform_indices = @transform_14, window_bounds = array<i64: 1, 128>}, {pipeline_mode = #tpu.pipeline_mode<synchronous>, transform_indices = @transform_15, window_bounds = array<i64: 1, 128>}, {pipeline_mode = #tpu.pipeline_mode<synchronous>, transform_indices = @transform_16, window_bounds = array<i64: 1, 128>}, {pipeline_mode = #tpu.pipeline_mode<synchronous>, transform_indices = @transform_17, window_bounds = array<i64: 128, 128>}, {pipeline_mode = #tpu.pipeline_mode<synchronous>, transform_indices = @transform_18, window_bounds = array<i64: 128, 128>}, {transform_indices = @transform_19, window_bounds = array<i64: 16, 128>}, {transform_indices = @transform_20, window_bounds = array<i64: 3, 16, 128>}]} {
    %c0 = arith.constant 0 : index
    %c0_0 = arith.constant 0 : index
    %0 = vector.load %arg1[%c0, %c0_0] : memref<16x128xf32, #tpu.memory_space<vmem>>, vector<16x128xf32>
    %c0_1 = arith.constant 0 : index
    %c0_2 = arith.constant 0 : index
    %c0_3 = arith.constant 0 : index
    %1 = vector.load %arg2[%c0_1, %c0_2, %c0_3] : memref<3x16x128xf32, #tpu.memory_space<vmem>>, vector<3x16x128xf32>
    %2 = vector.shape_cast %1 : vector<3x16x128xf32> to vector<48x128xf32>
    %c0_4 = arith.constant 0 : index
    %c0_5 = arith.constant 0 : index
    %3 = vector.load %arg3[%c0_4, %c0_5] : memref<128x256xbf16, #tpu.memory_space<vmem>>, vector<128x256xbf16>
    %4 = arith.truncf %0 : vector<16x128xf32> to vector<16x128xbf16>
    %cst = arith.constant dense<0.000000e+00> : vector<16x256xf32>
    %5 = tpu.matmul %4, %3, %cst {dimension_numbers = #tpu.dot_dimension_numbers<[1], [0], [0], [1], [0, 0, 1, 1], [], []>} : vector<16x128xbf16>, vector<128x256xbf16>, vector<16x256xf32> -> vector<16x256xf32>
    %c0_6 = arith.constant 0 : index
    %c0_7 = arith.constant 0 : index
    %6 = vector.load %arg4[%c0_6, %c0_7] : memref<1x256xf32, #tpu.memory_space<vmem>>, vector<1x256xf32>
    %7 = vector.broadcast %6 : vector<1x256xf32> to vector<16x256xf32>
    %8 = arith.addf %5, %7 : vector<16x256xf32>
    %9 = vector.extract_strided_slice %8 {offsets = [0, 0], sizes = [16, 128], strides = [1, 1]} : vector<16x256xf32> to vector<16x128xf32>
    %cst_8 = arith.constant 0.000000e+00 : f32
    %10 = vector.broadcast %cst_8 : f32 to vector<16x128xf32>
    %11 = arith.cmpf oge, %9, %10 : vector<16x128xf32>
    %cst_9 = arith.constant 2.000000e-01 : f32
    %12 = vector.broadcast %cst_9 : f32 to vector<16x128xf32>
    %13 = arith.mulf %12, %9 : vector<16x128xf32>
    %14 = arith.select %11, %9, %13 : vector<16x128xi1>, vector<16x128xf32>
    %15 = vector.extract_strided_slice %8 {offsets = [0, 128], sizes = [16, 128], strides = [1, 1]} : vector<16x256xf32> to vector<16x128xf32>
    %c0_10 = arith.constant 0 : index
    %c0_11 = arith.constant 0 : index
    %16 = vector.load %arg9[%c0_10, %c0_11] : memref<128x256xbf16, #tpu.memory_space<vmem>>, vector<128x256xbf16>
    %17 = arith.truncf %2 : vector<48x128xf32> to vector<48x128xbf16>
    %cst_12 = arith.constant dense<0.000000e+00> : vector<48x256xf32>
    %18 = tpu.matmul %17, %16, %cst_12 {dimension_numbers = #tpu.dot_dimension_numbers<[1], [0], [0], [1], [0, 0, 1, 1], [], []>} : vector<48x128xbf16>, vector<128x256xbf16>, vector<48x256xf32> -> vector<48x256xf32>
    %19 = vector.extract_strided_slice %18 {offsets = [0, 0], sizes = [48, 128], strides = [1, 1]} : vector<48x256xf32> to vector<48x128xf32>
    %20 = vector.extract_strided_slice %18 {offsets = [0, 128], sizes = [48, 128], strides = [1, 1]} : vector<48x256xf32> to vector<48x128xf32>
    %c0_13 = arith.constant 0 : index
    %c0_14 = arith.constant 0 : index
    %21 = vector.load %arg5[%c0_13, %c0_14] : memref<128x128xbf16, #tpu.memory_space<vmem>>, vector<128x128xbf16>
    %22 = arith.truncf %14 : vector<16x128xf32> to vector<16x128xbf16>
    %cst_15 = arith.constant dense<0.000000e+00> : vector<16x128xf32>
    %23 = tpu.matmul %22, %21, %cst_15 {dimension_numbers = #tpu.dot_dimension_numbers<[1], [0], [0], [1], [0, 0, 1, 1], [], []>} : vector<16x128xbf16>, vector<128x128xbf16>, vector<16x128xf32> -> vector<16x128xf32>
    %c0_16 = arith.constant 0 : index
    %c0_17 = arith.constant 0 : index
    %24 = vector.load %arg6[%c0_16, %c0_17] : memref<1x128xf32, #tpu.memory_space<vmem>>, vector<1x128xf32>
    %25 = vector.broadcast %24 : vector<1x128xf32> to vector<16x128xf32>
    %26 = arith.addf %23, %25 : vector<16x128xf32>
    %cst_18 = arith.constant 0.000000e+00 : f32
    %27 = vector.broadcast %cst_18 : f32 to vector<16x128xf32>
    %28 = arith.cmpf oge, %26, %27 : vector<16x128xf32>
    %cst_19 = arith.constant 2.000000e-01 : f32
    %29 = vector.broadcast %cst_19 : f32 to vector<16x128xf32>
    %30 = arith.mulf %29, %26 : vector<16x128xf32>
    %31 = arith.select %28, %26, %30 : vector<16x128xi1>, vector<16x128xf32>
    %c0_20 = arith.constant 0 : index
    %c0_21 = arith.constant 0 : index
    %32 = vector.load %arg7[%c0_20, %c0_21] : memref<128x128xbf16, #tpu.memory_space<vmem>>, vector<128x128xbf16>
    %33 = arith.truncf %31 : vector<16x128xf32> to vector<16x128xbf16>
    %cst_22 = arith.constant dense<0.000000e+00> : vector<16x128xf32>
    %34 = tpu.matmul %33, %32, %cst_22 {dimension_numbers = #tpu.dot_dimension_numbers<[1], [0], [0], [1], [0, 0, 1, 1], [], []>} : vector<16x128xbf16>, vector<128x128xbf16>, vector<16x128xf32> -> vector<16x128xf32>
    %c0_23 = arith.constant 0 : index
    %c0_24 = arith.constant 0 : index
    %35 = vector.load %arg8[%c0_23, %c0_24] : memref<1x128xf32, #tpu.memory_space<vmem>>, vector<1x128xf32>
    %36 = vector.broadcast %35 : vector<1x128xf32> to vector<16x128xf32>
    %37 = arith.addf %34, %36 : vector<16x128xf32>
    %38 = vector.shape_cast %19 : vector<48x128xf32> to vector<3x16x128xf32>
    %39 = arith.mulf %38, %38 : vector<3x16x128xf32>
    %cst_25 = arith.constant dense<0.000000e+00> : vector<16x128xf32>
    %40 = vector.multi_reduction <add>, %39, %cst_25 [0] : vector<3x16x128xf32> to vector<16x128xf32>
    %cst_26 = arith.constant 1.000000e+00 : f32
    %41 = vector.broadcast %cst_26 : f32 to vector<16x128xf32>
    %42 = arith.addf %41, %40 : vector<16x128xf32>
    %43 = math.sqrt %42 : vector<16x128xf32>
    %44 = math.rsqrt %43 : vector<16x128xf32>
    %45 = vector.shape_cast %44 : vector<16x128xf32> to vector<1x16x128xf32>
    %46 = vector.broadcast %45 : vector<1x16x128xf32> to vector<3x16x128xf32>
    %47 = arith.mulf %38, %46 : vector<3x16x128xf32>
    %48 = vector.shape_cast %47 : vector<3x16x128xf32> to vector<48x128xf32>
    %c0_27 = arith.constant 0 : index
    %c0_28 = arith.constant 0 : index
    %49 = vector.load %arg10[%c0_27, %c0_28] : memref<128x128xbf16, #tpu.memory_space<vmem>>, vector<128x128xbf16>
    %50 = arith.truncf %48 : vector<48x128xf32> to vector<48x128xbf16>
    %cst_29 = arith.constant dense<0.000000e+00> : vector<48x128xf32>
    %51 = tpu.matmul %50, %49, %cst_29 {dimension_numbers = #tpu.dot_dimension_numbers<[1], [0], [0], [1], [0, 0, 1, 1], [], []>} : vector<48x128xbf16>, vector<128x128xbf16>, vector<48x128xf32> -> vector<48x128xf32>
    %52 = vector.shape_cast %51 : vector<48x128xf32> to vector<3x16x128xf32>
    %53 = arith.mulf %52, %52 : vector<3x16x128xf32>
    %cst_30 = arith.constant dense<0.000000e+00> : vector<16x128xf32>
    %54 = vector.multi_reduction <add>, %53, %cst_30 [0] : vector<3x16x128xf32> to vector<16x128xf32>
    %cst_31 = arith.constant 1.000000e+00 : f32
    %55 = vector.broadcast %cst_31 : f32 to vector<16x128xf32>
    %56 = arith.addf %55, %54 : vector<16x128xf32>
    %57 = math.sqrt %56 : vector<16x128xf32>
    %58 = math.rsqrt %57 : vector<16x128xf32>
    %59 = vector.shape_cast %58 : vector<16x128xf32> to vector<1x16x128xf32>
    %60 = vector.broadcast %59 : vector<1x16x128xf32> to vector<3x16x128xf32>
    %61 = arith.mulf %52, %60 : vector<3x16x128xf32>
    %62 = vector.shape_cast %61 : vector<3x16x128xf32> to vector<48x128xf32>
    %c0_32 = arith.constant 0 : index
    %c0_33 = arith.constant 0 : index
    %63 = vector.load %arg11[%c0_32, %c0_33] : memref<128x128xbf16, #tpu.memory_space<vmem>>, vector<128x128xbf16>
    %64 = arith.truncf %62 : vector<48x128xf32> to vector<48x128xbf16>
    %cst_34 = arith.constant dense<0.000000e+00> : vector<48x128xf32>
    %65 = tpu.matmul %64, %63, %cst_34 {dimension_numbers = #tpu.dot_dimension_numbers<[1], [0], [0], [1], [0, 0, 1, 1], [], []>} : vector<48x128xbf16>, vector<128x128xbf16>, vector<48x128xf32> -> vector<48x128xf32>
    %66 = vector.shape_cast %20 : vector<48x128xf32> to vector<3x16x128xf32>
    %67 = vector.shape_cast %15 : vector<16x128xf32> to vector<1x16x128xf32>
    %68 = vector.broadcast %67 : vector<1x16x128xf32> to vector<3x16x128xf32>
    %69 = arith.mulf %68, %66 : vector<3x16x128xf32>
    %70 = vector.shape_cast %69 : vector<3x16x128xf32> to vector<48x128xf32>
    %c0_35 = arith.constant 0 : index
    %c0_36 = arith.constant 0 : index
    %71 = vector.load %arg12[%c0_35, %c0_36] : memref<128x128xbf16, #tpu.memory_space<vmem>>, vector<128x128xbf16>
    %72 = arith.truncf %70 : vector<48x128xf32> to vector<48x128xbf16>
    %cst_37 = arith.constant dense<0.000000e+00> : vector<48x128xf32>
    %73 = tpu.matmul %72, %71, %cst_37 {dimension_numbers = #tpu.dot_dimension_numbers<[1], [0], [0], [1], [0, 0, 1, 1], [], []>} : vector<48x128xbf16>, vector<128x128xbf16>, vector<48x128xf32> -> vector<48x128xf32>
    %74 = arith.mulf %66, %66 : vector<3x16x128xf32>
    %cst_38 = arith.constant dense<0.000000e+00> : vector<16x128xf32>
    %75 = vector.multi_reduction <add>, %74, %cst_38 [0] : vector<3x16x128xf32> to vector<16x128xf32>
    %c0_39 = arith.constant 0 : index
    %c0_40 = arith.constant 0 : index
    %76 = vector.load %arg13[%c0_39, %c0_40] : memref<128x128xbf16, #tpu.memory_space<vmem>>, vector<128x128xbf16>
    %77 = arith.truncf %75 : vector<16x128xf32> to vector<16x128xbf16>
    %cst_41 = arith.constant dense<0.000000e+00> : vector<16x128xf32>
    %78 = tpu.matmul %77, %76, %cst_41 {dimension_numbers = #tpu.dot_dimension_numbers<[1], [0], [0], [1], [0, 0, 1, 1], [], []>} : vector<16x128xbf16>, vector<128x128xbf16>, vector<16x128xf32> -> vector<16x128xf32>
    %c0_42 = arith.constant 0 : index
    %c0_43 = arith.constant 0 : index
    %79 = vector.load %arg14[%c0_42, %c0_43] : memref<1x128xf32, #tpu.memory_space<vmem>>, vector<1x128xf32>
    %80 = vector.broadcast %79 : vector<1x128xf32> to vector<16x128xf32>
    %81 = arith.addf %78, %80 : vector<16x128xf32>
    %82 = arith.addf %37, %81 : vector<16x128xf32>
    %c0_44 = arith.constant 0 : index
    %c0_45 = arith.constant 0 : index
    %83 = vector.load %arg18[%c0_44, %c0_45] : memref<128x128xbf16, #tpu.memory_space<vmem>>, vector<128x128xbf16>
    %84 = arith.truncf %82 : vector<16x128xf32> to vector<16x128xbf16>
    %cst_46 = arith.constant dense<0.000000e+00> : vector<16x128xf32>
    %85 = tpu.matmul %84, %83, %cst_46 {dimension_numbers = #tpu.dot_dimension_numbers<[1], [0], [0], [1], [0, 0, 1, 1], [], []>} : vector<16x128xbf16>, vector<128x128xbf16>, vector<16x128xf32> -> vector<16x128xf32>
    %cst_47 = arith.constant 2.500000e-01 : f32
    %86 = vector.broadcast %cst_47 : f32 to vector<16x128xf32>
    %87 = arith.mulf %85, %86 : vector<16x128xf32>
    %88 = arith.subf %82, %87 : vector<16x128xf32>
    %89 = arith.mulf %88, %88 : vector<16x128xf32>
    %90 = arith.truncf %89 : vector<16x128xf32> to vector<16x128xbf16>
    %cst_48 = arith.constant dense<0.000000e+00> : vector<16x128xf32>
    %91 = tpu.matmul %90, %83, %cst_48 {dimension_numbers = #tpu.dot_dimension_numbers<[1], [0], [0], [1], [0, 0, 1, 1], [], []>} : vector<16x128xbf16>, vector<128x128xbf16>, vector<16x128xf32> -> vector<16x128xf32>
    %cst_49 = arith.constant 2.500000e-01 : f32
    %92 = vector.broadcast %cst_49 : f32 to vector<16x128xf32>
    %93 = arith.mulf %91, %92 : vector<16x128xf32>
    %cst_50 = arith.constant 9.99999974E-6 : f32
    %94 = vector.broadcast %cst_50 : f32 to vector<16x128xf32>
    %95 = arith.addf %93, %94 : vector<16x128xf32>
    %96 = math.rsqrt %95 : vector<16x128xf32>
    %97 = arith.mulf %88, %96 : vector<16x128xf32>
    %c0_51 = arith.constant 0 : index
    %c0_52 = arith.constant 0 : index
    %98 = vector.load %arg15[%c0_51, %c0_52] : memref<1x128xf32, #tpu.memory_space<vmem>>, vector<1x128xf32>
    %99 = vector.broadcast %98 : vector<1x128xf32> to vector<16x128xf32>
    %100 = arith.mulf %97, %99 : vector<16x128xf32>
    %c0_53 = arith.constant 0 : index
    %c0_54 = arith.constant 0 : index
    %101 = vector.load %arg16[%c0_53, %c0_54] : memref<1x128xf32, #tpu.memory_space<vmem>>, vector<1x128xf32>
    %102 = vector.broadcast %101 : vector<1x128xf32> to vector<16x128xf32>
    %103 = arith.addf %100, %102 : vector<16x128xf32>
    %104 = arith.addf %65, %73 : vector<48x128xf32>
    %105 = vector.shape_cast %104 : vector<48x128xf32> to vector<3x16x128xf32>
    %106 = arith.mulf %105, %105 : vector<3x16x128xf32>
    %cst_55 = arith.constant dense<0.000000e+00> : vector<16x128xf32>
    %107 = vector.multi_reduction <add>, %106, %cst_55 [0] : vector<3x16x128xf32> to vector<16x128xf32>
    %c0_56 = arith.constant 0 : index
    %c0_57 = arith.constant 0 : index
    %108 = vector.load %arg19[%c0_56, %c0_57] : memref<128x128xbf16, #tpu.memory_space<vmem>>, vector<128x128xbf16>
    %109 = arith.truncf %107 : vector<16x128xf32> to vector<16x128xbf16>
    %cst_58 = arith.constant dense<0.000000e+00> : vector<16x128xf32>
    %110 = tpu.matmul %109, %108, %cst_58 {dimension_numbers = #tpu.dot_dimension_numbers<[1], [0], [0], [1], [0, 0, 1, 1], [], []>} : vector<16x128xbf16>, vector<128x128xbf16>, vector<16x128xf32> -> vector<16x128xf32>
    %cst_59 = arith.constant 2.500000e-01 : f32
    %111 = vector.broadcast %cst_59 : f32 to vector<16x128xf32>
    %112 = arith.mulf %110, %111 : vector<16x128xf32>
    %cst_60 = arith.constant 9.99999974E-6 : f32
    %113 = vector.broadcast %cst_60 : f32 to vector<16x128xf32>
    %114 = arith.addf %112, %113 : vector<16x128xf32>
    %115 = math.rsqrt %114 : vector<16x128xf32>
    %c0_61 = arith.constant 0 : index
    %c0_62 = arith.constant 0 : index
    %116 = vector.load %arg17[%c0_61, %c0_62] : memref<1x128xf32, #tpu.memory_space<vmem>>, vector<1x128xf32>
    %117 = vector.broadcast %116 : vector<1x128xf32> to vector<16x128xf32>
    %118 = arith.mulf %115, %117 : vector<16x128xf32>
    %119 = arith.addf %0, %103 : vector<16x128xf32>
    %c0_63 = arith.constant 0 : index
    %c0_64 = arith.constant 0 : index
    %120 = vector.load %arg20[%c0_63, %c0_64] : memref<16x128xf32, #tpu.memory_space<vmem>>, vector<16x128xf32>
    tpu.vector_store %arg20[%c0_63, %c0_64], %119 {strides = array<i32>} : memref<16x128xf32, #tpu.memory_space<vmem>>, vector<16x128xf32>,
    %121 = vector.shape_cast %118 : vector<16x128xf32> to vector<1x16x128xf32>
    %122 = vector.broadcast %121 : vector<1x16x128xf32> to vector<3x16x128xf32>
    %123 = arith.mulf %105, %122 : vector<3x16x128xf32>
    %124 = arith.addf %1, %123 : vector<3x16x128xf32>
    %c0_65 = arith.constant 0 : index
    %c0_66 = arith.constant 0 : index
    %c0_67 = arith.constant 0 : index
    %125 = vector.load %arg21[%c0_65, %c0_66, %c0_67] : memref<3x16x128xf32, #tpu.memory_space<vmem>>, vector<3x16x128xf32>
    tpu.vector_store %arg21[%c0_65, %c0_66, %c0_67], %124 {strides = array<i32>} : memref<3x16x128xf32, #tpu.memory_space<vmem>>, vector<3x16x128xf32>,
    return
  }
  func.func @transform_0(%arg0: i32) -> (i32, i32) {
    %c0_i32 = arith.constant 0 : i32
    %c0_i32_0 = arith.constant 0 : i32
    return %arg0, %c0_i32 : i32, i32
  }
  func.func @transform_1(%arg0: i32) -> (i32, i32, i32) {
    %c0_i32 = arith.constant 0 : i32
    %c0_i32_0 = arith.constant 0 : i32
    %c0_i32_1 = arith.constant 0 : i32
    return %c0_i32, %arg0, %c0_i32_0 : i32, i32, i32
  }
  func.func @transform_2(%arg0: i32) -> (i32, i32) {
    %c0_i32 = arith.constant 0 : i32
    %c0_i32_0 = arith.constant 0 : i32
    %c0_i32_1 = arith.constant 0 : i32
    return %c0_i32, %c0_i32_0 : i32, i32
  }
  func.func @transform_3(%arg0: i32) -> (i32, i32) {
    %c0_i32 = arith.constant 0 : i32
    %c0_i32_0 = arith.constant 0 : i32
    %c0_i32_1 = arith.constant 0 : i32
    return %c0_i32, %c0_i32_0 : i32, i32
  }
  func.func @transform_4(%arg0: i32) -> (i32, i32) {
    %c0_i32 = arith.constant 0 : i32
    %c0_i32_0 = arith.constant 0 : i32
    %c0_i32_1 = arith.constant 0 : i32
    return %c0_i32, %c0_i32_0 : i32, i32
  }
  func.func @transform_5(%arg0: i32) -> (i32, i32) {
    %c0_i32 = arith.constant 0 : i32
    %c0_i32_0 = arith.constant 0 : i32
    %c0_i32_1 = arith.constant 0 : i32
    return %c0_i32, %c0_i32_0 : i32, i32
  }
  func.func @transform_6(%arg0: i32) -> (i32, i32) {
    %c0_i32 = arith.constant 0 : i32
    %c0_i32_0 = arith.constant 0 : i32
    %c0_i32_1 = arith.constant 0 : i32
    return %c0_i32, %c0_i32_0 : i32, i32
  }
  func.func @transform_7(%arg0: i32) -> (i32, i32) {
    %c0_i32 = arith.constant 0 : i32
    %c0_i32_0 = arith.constant 0 : i32
    %c0_i32_1 = arith.constant 0 : i32
    return %c0_i32, %c0_i32_0 : i32, i32
  }
  func.func @transform_8(%arg0: i32) -> (i32, i32) {
    %c0_i32 = arith.constant 0 : i32
    %c0_i32_0 = arith.constant 0 : i32
    %c0_i32_1 = arith.constant 0 : i32
    return %c0_i32, %c0_i32_0 : i32, i32
  }
  func.func @transform_9(%arg0: i32) -> (i32, i32) {
    %c0_i32 = arith.constant 0 : i32
    %c0_i32_0 = arith.constant 0 : i32
    %c0_i32_1 = arith.constant 0 : i32
    return %c0_i32, %c0_i32_0 : i32, i32
  }
  func.func @transform_10(%arg0: i32) -> (i32, i32) {
    %c0_i32 = arith.constant 0 : i32
    %c0_i32_0 = arith.constant 0 : i32
    %c0_i32_1 = arith.constant 0 : i32
    return %c0_i32, %c0_i32_0 : i32, i32
  }
  func.func @transform_11(%arg0: i32) -> (i32, i32) {
    %c0_i32 = arith.constant 0 : i32
    %c0_i32_0 = arith.constant 0 : i32
    %c0_i32_1 = arith.constant 0 : i32
    return %c0_i32, %c0_i32_0 : i32, i32
  }
  func.func @transform_12(%arg0: i32) -> (i32, i32) {
    %c0_i32 = arith.constant 0 : i32
    %c0_i32_0 = arith.constant 0 : i32
    %c0_i32_1 = arith.constant 0 : i32
    return %c0_i32, %c0_i32_0 : i32, i32
  }
  func.func @transform_13(%arg0: i32) -> (i32, i32) {
    %c0_i32 = arith.constant 0 : i32
    %c0_i32_0 = arith.constant 0 : i32
    %c0_i32_1 = arith.constant 0 : i32
    return %c0_i32, %c0_i32_0 : i32, i32
  }
  func.func @transform_14(%arg0: i32) -> (i32, i32) {
    %c0_i32 = arith.constant 0 : i32
    %c0_i32_0 = arith.constant 0 : i32
    %c0_i32_1 = arith.constant 0 : i32
    return %c0_i32, %c0_i32_0 : i32, i32
  }
  func.func @transform_15(%arg0: i32) -> (i32, i32) {
    %c0_i32 = arith.constant 0 : i32
    %c0_i32_0 = arith.constant 0 : i32
    %c0_i32_1 = arith.constant 0 : i32
    return %c0_i32, %c0_i32_0 : i32, i32
  }
  func.func @transform_16(%arg0: i32) -> (i32, i32) {
    %c0_i32 = arith.constant 0 : i32
    %c0_i32_0 = arith.constant 0 : i32
    %c0_i32_1 = arith.constant 0 : i32
    return %c0_i32, %c0_i32_0 : i32, i32
  }
  func.func @transform_17(%arg0: i32) -> (i32, i32) {
    %c0_i32 = arith.constant 0 : i32
    %c0_i32_0 = arith.constant 0 : i32
    %c0_i32_1 = arith.constant 0 : i32
    return %c0_i32, %c0_i32_0 : i32, i32
  }
  func.func @transform_18(%arg0: i32) -> (i32, i32) {
    %c0_i32 = arith.constant 0 : i32
    %c0_i32_0 = arith.constant 0 : i32
    %c0_i32_1 = arith.constant 0 : i32
    return %c0_i32, %c0_i32_0 : i32, i32
  }
  func.func @transform_19(%arg0: i32) -> (i32, i32) {
    %c0_i32 = arith.constant 0 : i32
    %c0_i32_0 = arith.constant 0 : i32
    return %arg0, %c0_i32 : i32, i32
  }
  func.func @transform_20(%arg0: i32) -> (i32, i32, i32) {
    %c0_i32 = arith.constant 0 : i32
    %c0_i32_0 = arith.constant 0 : i32
    %c0_i32_1 = arith.constant 0 : i32
    return %c0_i32, %arg0, %c0_i32_0 : i32, i32, i32
  }
}

</mosaic_0001>

<llo_original>
// kernel: tpu_custom_call.1
$region0: #{tpu_custom_call.1}
  #allocation0 [shape = 'u32[]', space=smem, size = 0x4, offset = 0x4, fixed_abs, tag = 'smem constant byte address 0x4 - core index']
  #allocation1 [shape = 'u32[72,128]{1,0:T(1,128)}', space=vmem, size = 0x9000, scoped, tag = 'internal scratch']
  #allocation22 [shape = 's32[]', space=sflag, size = 0x4, offset = 0, fixed_abs, tag = 'sflag constant byte address 0x0 - dummy sync flag']
  #allocation24 [shape = 's32[]', space=sflag, size = 0x4, offset = 0, fixed_abs, tag = 'sflag constant byte address 0x0 - dummy sync flag']
  %s0 = inlined_call_operand.hbm [shape: f32[32,128], index: 0, kind: input, shape index: {}, may-alias: {0,19}]
  %s1 = inlined_call_operand.hbm [shape: f32[3,32,128], index: 1, kind: input, shape index: {}, may-alias: {1,20}]
  %s2 = inlined_call_operand.vmem [shape: bf16[128,256], index: 2, kind: input, shape index: {}]
  %s3 = inlined_call_operand.vmem [shape: f32[1,256], index: 3, kind: input, shape index: {}]
  %s4 = inlined_call_operand.vmem [shape: bf16[128,128], index: 4, kind: input, shape index: {}]
  %s5 = inlined_call_operand.vmem [shape: f32[1,128], index: 5, kind: input, shape index: {}]
  %s6 = inlined_call_operand.hbm [shape: bf16[128,128], index: 6, kind: input, shape index: {}]
  %s7 = inlined_call_operand.vmem [shape: f32[1,128], index: 7, kind: input, shape index: {}]
  %s8 = inlined_call_operand.hbm [shape: bf16[128,256], index: 8, kind: input, shape index: {}]
  %s9 = inlined_call_operand.hbm [shape: bf16[128,128], index: 9, kind: input, shape index: {}]
  %s10 = inlined_call_operand.hbm [shape: bf16[128,128], index: 10, kind: input, shape index: {}]
  %s11 = inlined_call_operand.hbm [shape: bf16[128,128], index: 11, kind: input, shape index: {}]
  %s12 = inlined_call_operand.hbm [shape: bf16[128,128], index: 12, kind: input, shape index: {}]
  %s13 = inlined_call_operand.vmem [shape: f32[1,128], index: 13, kind: input, shape index: {}]
  %s14 = inlined_call_operand.vmem [shape: f32[1,128], index: 14, kind: input, shape index: {}]
  %s15 = inlined_call_operand.vmem [shape: f32[1,128], index: 15, kind: input, shape index: {}]
  %s16 = inlined_call_operand.vmem [shape: f32[1,128], index: 16, kind: input, shape index: {}]
  %s17 = inlined_call_operand.hbm [shape: bf16[128,128], index: 17, kind: input, shape index: {}]
  %s18 = inlined_call_operand.hbm [shape: bf16[128,128], index: 18, kind: input, shape index: {}]
  %s19 = inlined_call_operand.hbm [shape: f32[32,128], index: 19, kind: output, shape index: {0}, may-alias: {0,19}]
  %s20 = inlined_call_operand.hbm [shape: f32[3,32,128], index: 20, kind: output, shape index: {1}, may-alias: {1,20}]
  %21 = xla_tuple %s19, %s20
  %s22 = sld [smem:[#allocation0]]
  $region157: #{tpu_custom_call.1} parent=0
    _
  %s24 = ssub.s32 1, %s22
  %s25 = scalar_select 0, %s24, %s22
  $region1: #{tpu_custom_call.1} parent=0
    #allocation2 [shape = 'u8[16384]{0}', space=vmem, size = 0x4000, scoped, tag = 'input window, operand 0']
    #allocation3 [shape = 's32[2]{0}', space=sflag, size = 0x8, scoped, tag = 'scoped memory for tpu_custom_call.1']
    #allocation4 [shape = 's32[2]{0}', space=sflag, size = 0x8, scoped, tag = 'scoped memory for tpu_custom_call.1']
    #allocation5 [shape = 'u8[49152]{0}', space=vmem, size = 0xc000, scoped, tag = 'input window, operand 1']
    #allocation6 [shape = 's32[2]{0}', space=sflag, size = 0x8, scoped, tag = 'scoped memory for tpu_custom_call.1']
    #allocation7 [shape = 'u8[32768]{0}', space=vmem, size = 0x8000, scoped, tag = 'input window, operand 6, single buffered']
    #allocation8 [shape = 'u8[65536]{0}', space=vmem, size = 0x10000, scoped, tag = 'input window, operand 8, single buffered']
    #allocation9 [shape = 's32[1]{0}', space=sflag, size = 0x4, scoped, tag = 'scoped memory for tpu_custom_call.1']
    #allocation10 [shape = 'u8[32768]{0}', space=vmem, size = 0x8000, scoped, tag = 'input window, operand 9, single buffered']
    #allocation11 [shape = 'u8[32768]{0}', space=vmem, size = 0x8000, scoped, tag = 'input window, operand 10, single buffered']
    #allocation12 [shape = 's32[1]{0}', space=sflag, size = 0x4, scoped, tag = 'scoped memory for tpu_custom_call.1']
    #allocation13 [shape = 'u8[32768]{0}', space=vmem, size = 0x8000, scoped, tag = 'input window, operand 11, single buffered']
    #allocation14 [shape = 'u8[32768]{0}', space=vmem, size = 0x8000, scoped, tag = 'input window, operand 12, single buffered']
    #allocation15 [shape = 's32[1]{0}', space=sflag, size = 0x4, scoped, tag = 'scoped memory for tpu_custom_call.1']
    #allocation16 [shape = 'u8[32768]{0}', space=vmem, size = 0x8000, scoped, tag = 'input window, operand 17, single buffered']
    #allocation17 [shape = 'u8[32768]{0}', space=vmem, size = 0x8000, scoped, tag = 'input window, operand 18, single buffered']
    #allocation18 [shape = 's32[1]{0}', space=sflag, size = 0x4, scoped, tag = 'scoped memory for tpu_custom_call.1']
    #allocation19 [shape = 'u8[16384]{0}', space=vmem, size = 0x4000, scoped, tag = 'output window, operand 0']
    #allocation20 [shape = 'u8[49152]{0}', space=vmem, size = 0xc000, scoped, tag = 'output window, operand 1']
    #allocation21 [shape = 's32[2]{0}', space=sflag, size = 0x8, scoped, tag = 'scoped memory for tpu_custom_call.1']
    %26 = vsyncpa [#allocation3], 0
    %s27 = scalar_lea.sflag [#allocation3], 1
    %28 = vsyncpa %s27, 0
    %29 = vsyncpa [#allocation6], 0
    %s30 = scalar_lea.sflag [#allocation6], 1
    %31 = vsyncpa %s30, 0
    %32 = vsyncpa [#allocation9], 0
    %33 = vsyncpa [#allocation12], 0
    %34 = vsyncpa [#allocation15], 0
    %35 = vsyncpa [#allocation18], 0
    %36 = vsyncpa [#allocation4], 0
    %s37 = scalar_lea.sflag [#allocation4], 1
    %38 = vsyncpa %s37, 0
    %39 = vsyncpa [#allocation21], 0
    %s40 = scalar_lea.sflag [#allocation21], 1
    %41 = vsyncpa %s40, 0
    loop: start=0, step=1, limit=4
    $region2: #{tpu_custom_call.1} parent=1 // loop_pre_header
      _
    $region3: #{tpu_custom_call.1} parent=1 // loop_header
      %s43 = sphi 0, %s47
      %p44 = scmp.ge.s32.totalorder %s43, 4
      %s53 = sphi 0, %s55
      %s56 = sphi 0, %s53
      %s57 = sphi 0, %s56
      %s73 = sphi 0, %s57
      %s79 = sphi 0, %s81
      %s82 = sphi 0, %s79
      %s83 = sphi 0, %s82
      %s99 = sphi 0, %s83
      %s103 = sphi 0, %s103
      %s105 = sphi 0, %s103
      %s106 = sphi 0, %s105
      %s120 = sphi 0, %s106
      %s124 = sphi 0, %s124
      %s126 = sphi 0, %s124
      %s127 = sphi 0, %s126
      %s141 = sphi 0, %s127
      %s145 = sphi 0, %s145
      %s147 = sphi 0, %s145
      %s148 = sphi 0, %s147
      %s162 = sphi 0, %s148
      %s166 = sphi 0, %s166
      %s168 = sphi 0, %s166
      %s169 = sphi 0, %s168
      %s183 = sphi 0, %s169
      %s187 = sphi 0, %s187
      %s189 = sphi 0, %s187
      %s190 = sphi 0, %s189
      %s204 = sphi 0, %s190
      %s208 = sphi 0, %s208
      %s210 = sphi 0, %s208
      %s211 = sphi 0, %s210
      %s225 = sphi 0, %s211
      %s229 = sphi 0, %s229
      %s231 = sphi 0, %s229
      %s232 = sphi 0, %s231
      %s246 = sphi 0, %s232
      %s250 = sphi 0, %s250
      %s252 = sphi 0, %s250
      %s253 = sphi 0, %s252
      %s267 = sphi 0, %s253
      %s271 = sphi 0, %s271
      %s273 = sphi 0, %s271
      %s274 = sphi 0, %s273
      %s288 = sphi 0, %s274
      %s292 = sphi 0, %s292
      %s294 = sphi 0, %s292
      %s295 = sphi 0, %s294
      %s309 = sphi 0, %s295
      %s313 = sphi 0, %s313
      %s315 = sphi 0, %s313
      %s316 = sphi 0, %s315
      %s330 = sphi 0, %s316
      %s334 = sphi 0, %s334
      %s336 = sphi 0, %s334
      %s337 = sphi 0, %s336
      %s351 = sphi 0, %s337
      %s355 = sphi 0, %s355
      %s357 = sphi 0, %s355
      %s358 = sphi 0, %s357
      %s372 = sphi 0, %s358
      %s376 = sphi 0, %s376
      %s378 = sphi 0, %s376
      %s379 = sphi 0, %s378
      %s393 = sphi 0, %s379
      %s397 = sphi 0, %s397
      %s399 = sphi 0, %s397
      %s400 = sphi 0, %s399
      %s414 = sphi 0, %s400
      %s418 = sphi 0, %s418
      %s420 = sphi 0, %s418
      %s421 = sphi 0, %s420
      %s435 = sphi 0, %s421
      %s439 = sphi 0, %s439
      %s441 = sphi 0, %s439
      %s442 = sphi 0, %s441
      %s456 = sphi 0, %s442
      %s462 = sphi 0, %s464
      %s465 = sphi 0, %s462
      %s466 = sphi 0, %s465
      %s482 = sphi 0, %s466
      %s488 = sphi 0, %s490
      %s491 = sphi 0, %s488
      %s492 = sphi 0, %s491
      %s508 = sphi 0, %s492
    $region4: #{tpu_custom_call.1} parent=1 // loop_header_branch
      %46 = sbr.rel (%p44) target = $region8
    $region5: #{tpu_custom_call.1} parent=1 // loop_body
      %s48 = ssub.s32 %s43, 1
      %s49 = ssub.s32 %s43, 2
      %s50 = sadd.s32 %s43, 1
      %s51 = ssub.s32 %s43, %s50
      %p52 = scmp.eq.s32.totalorder %s51, 0
      %s54 = sadd.s32 %s53, 1
      %s55 = scalar_select %p52, %s53, %s54
      %p58 = pneg %p52
      %p59 = scmp.eq.s32.totalorder %s43, 1
      %p60 = por %p58, %p59
      %p61 = scmp.ne.s32.totalorder %s53, %s56
      %p62 = scmp.eq.s32.totalorder %s43, 0
      %p63 = por %p61, %p62
      %p64 = scmp.ne.s32.totalorder %s53, %s56
      %p65 = scmp.eq.s32.totalorder %s48, 1
      %p66 = por %p64, %p65
      %p67 = scmp.ne.s32.totalorder %s56, %s57
      %p68 = scmp.eq.s32.totalorder %s48, 0
      %p69 = por %p67, %p68
      %p70 = scmp.ne.s32.totalorder %s56, %s57
      %p71 = scmp.eq.s32.totalorder %s49, 1
      %p72 = por %p70, %p71
      %p74 = scmp.ne.s32.totalorder %s57, %s73
      %p75 = scmp.eq.s32.totalorder %s49, 0
      %p76 = por %p74, %p75
      %s77 = ssub.s32 %s43, %s50
      %p78 = scmp.eq.s32.totalorder %s77, 0
      %s80 = sadd.s32 %s79, 1
      %s81 = scalar_select %p78, %s79, %s80
      %p84 = pneg %p78
      %p85 = scmp.eq.s32.totalorder %s43, 1
      %p86 = por %p84, %p85
      %p87 = scmp.ne.s32.totalorder %s79, %s82
      %p88 = scmp.eq.s32.totalorder %s43, 0
      %p89 = por %p87, %p88
      %p90 = scmp.ne.s32.totalorder %s79, %s82
      %p91 = scmp.eq.s32.totalorder %s48, 1
      %p92 = por %p90, %p91
      %p93 = scmp.ne.s32.totalorder %s82, %s83
      %p94 = scmp.eq.s32.totalorder %s48, 0
      %p95 = por %p93, %p94
      %p96 = scmp.ne.s32.totalorder %s82, %s83
      %p97 = scmp.eq.s32.totalorder %s49, 1
      %p98 = por %p96, %p97
      %p100 = scmp.ne.s32.totalorder %s83, %s99
      %p101 = scmp.eq.s32.totalorder %s49, 0
      %p102 = por %p100, %p101
      %s104 = sadd.s32 %s103, 1
      %p107 = scmp.eq.s32.totalorder %s43, 1
      %p108 = scmp.ne.s32.totalorder %s103, %s105
      %p109 = scmp.eq.s32.totalorder %s43, 0
      %p110 = por %p108, %p109
      %p111 = scmp.ne.s32.totalorder %s103, %s105
      %p112 = scmp.eq.s32.totalorder %s48, 1
      %p113 = por %p111, %p112
      %p114 = scmp.ne.s32.totalorder %s105, %s106
      %p115 = scmp.eq.s32.totalorder %s48, 0
      %p116 = por %p114, %p115
      %p117 = scmp.ne.s32.totalorder %s105, %s106
      %p118 = scmp.eq.s32.totalorder %s49, 1
      %p119 = por %p117, %p118
      %p121 = scmp.ne.s32.totalorder %s106, %s120
      %p122 = scmp.eq.s32.totalorder %s49, 0
      %p123 = por %p121, %p122
      %s125 = sadd.s32 %s124, 1
      %p128 = scmp.eq.s32.totalorder %s43, 1
      %p129 = scmp.ne.s32.totalorder %s124, %s126
      %p130 = scmp.eq.s32.totalorder %s43, 0
      %p131 = por %p129, %p130
      %p132 = scmp.ne.s32.totalorder %s124, %s126
      %p133 = scmp.eq.s32.totalorder %s48, 1
      %p134 = por %p132, %p133
      %p135 = scmp.ne.s32.totalorder %s126, %s127
      %p136 = scmp.eq.s32.totalorder %s48, 0
      %p137 = por %p135, %p136
      %p138 = scmp.ne.s32.totalorder %s126, %s127
      %p139 = scmp.eq.s32.totalorder %s49, 1
      %p140 = por %p138, %p139
      %p142 = scmp.ne.s32.totalorder %s127, %s141
      %p143 = scmp.eq.s32.totalorder %s49, 0
      %p144 = por %p142, %p143
      %s146 = sadd.s32 %s145, 1
      %p149 = scmp.eq.s32.totalorder %s43, 1
      %p150 = scmp.ne.s32.totalorder %s145, %s147
      %p151 = scmp.eq.s32.totalorder %s43, 0
      %p152 = por %p150, %p151
      %p153 = scmp.ne.s32.totalorder %s145, %s147
      %p154 = scmp.eq.s32.totalorder %s48, 1
      %p155 = por %p153, %p154
      %p156 = scmp.ne.s32.totalorder %s147, %s148
      %p157 = scmp.eq.s32.totalorder %s48, 0
      %p158 = por %p156, %p157
      %p159 = scmp.ne.s32.totalorder %s147, %s148
      %p160 = scmp.eq.s32.totalorder %s49, 1
      %p161 = por %p159, %p160
      %p163 = scmp.ne.s32.totalorder %s148, %s162
      %p164 = scmp.eq.s32.totalorder %s49, 0
      %p165 = por %p163, %p164
      %s167 = sadd.s32 %s166, 1
      %p170 = scmp.eq.s32.totalorder %s43, 1
      %p171 = scmp.ne.s32.totalorder %s166, %s168
      %p172 = scmp.eq.s32.totalorder %s43, 0
      %p173 = por %p171, %p172
      %p174 = scmp.ne.s32.totalorder %s166, %s168
      %p175 = scmp.eq.s32.totalorder %s48, 1
      %p176 = por %p174, %p175
      %p177 = scmp.ne.s32.totalorder %s168, %s169
      %p178 = scmp.eq.s32.totalorder %s48, 0
      %p179 = por %p177, %p178
      %p180 = scmp.ne.s32.totalorder %s168, %s169
      %p181 = scmp.eq.s32.totalorder %s49, 1
      %p182 = por %p180, %p181
      %p184 = scmp.ne.s32.totalorder %s169, %s183
      %p185 = scmp.eq.s32.totalorder %s49, 0
      %p186 = por %p184, %p185
      %s188 = sadd.s32 %s187, 1
      %p191 = scmp.eq.s32.totalorder %s43, 1
      %p192 = scmp.ne.s32.totalorder %s187, %s189
      %p193 = scmp.eq.s32.totalorder %s43, 0
      %p194 = por %p192, %p193
      %p195 = scmp.ne.s32.totalorder %s187, %s189
      %p196 = scmp.eq.s32.totalorder %s48, 1
      %p197 = por %p195, %p196
      %p198 = scmp.ne.s32.totalorder %s189, %s190
      %p199 = scmp.eq.s32.totalorder %s48, 0
      %p200 = por %p198, %p199
      %p201 = scmp.ne.s32.totalorder %s189, %s190
      %p202 = scmp.eq.s32.totalorder %s49, 1
      %p203 = por %p201, %p202
      %p205 = scmp.ne.s32.totalorder %s190, %s204
      %p206 = scmp.eq.s32.totalorder %s49, 0
      %p207 = por %p205, %p206
      %s209 = sadd.s32 %s208, 1
      %p212 = scmp.eq.s32.totalorder %s43, 1
      %p213 = scmp.ne.s32.totalorder %s208, %s210
      %p214 = scmp.eq.s32.totalorder %s43, 0
      %p215 = por %p213, %p214
      %p216 = scmp.ne.s32.totalorder %s208, %s210
      %p217 = scmp.eq.s32.totalorder %s48, 1
      %p218 = por %p216, %p217
      %p219 = scmp.ne.s32.totalorder %s210, %s211
      %p220 = scmp.eq.s32.totalorder %s48, 0
      %p221 = por %p219, %p220
      %p222 = scmp.ne.s32.totalorder %s210, %s211
      %p223 = scmp.eq.s32.totalorder %s49, 1
      %p224 = por %p222, %p223
      %p226 = scmp.ne.s32.totalorder %s211, %s225
      %p227 = scmp.eq.s32.totalorder %s49, 0
      %p228 = por %p226, %p227
      %s230 = sadd.s32 %s229, 1
      %p233 = scmp.eq.s32.totalorder %s43, 1
      %p234 = scmp.ne.s32.totalorder %s229, %s231
      %p235 = scmp.eq.s32.totalorder %s43, 0
      %p236 = por %p234, %p235
      %p237 = scmp.ne.s32.totalorder %s229, %s231
      %p238 = scmp.eq.s32.totalorder %s48, 1
      %p239 = por %p237, %p238
      %p240 = scmp.ne.s32.totalorder %s231, %s232
      %p241 = scmp.eq.s32.totalorder %s48, 0
      %p242 = por %p240, %p241
      %p243 = scmp.ne.s32.totalorder %s231, %s232
      %p244 = scmp.eq.s32.totalorder %s49, 1
      %p245 = por %p243, %p244
      %p247 = scmp.ne.s32.totalorder %s232, %s246
      %p248 = scmp.eq.s32.totalorder %s49, 0
      %p249 = por %p247, %p248
      %s251 = sadd.s32 %s250, 1
      %p254 = scmp.eq.s32.totalorder %s43, 1
      %p255 = scmp.ne.s32.totalorder %s250, %s252
      %p256 = scmp.eq.s32.totalorder %s43, 0
      %p257 = por %p255, %p256
      %p258 = scmp.ne.s32.totalorder %s250, %s252
      %p259 = scmp.eq.s32.totalorder %s48, 1
      %p260 = por %p258, %p259
      %p261 = scmp.ne.s32.totalorder %s252, %s253
      %p262 = scmp.eq.s32.totalorder %s48, 0
      %p263 = por %p261, %p262
      %p264 = scmp.ne.s32.totalorder %s252, %s253
      %p265 = scmp.eq.s32.totalorder %s49, 1
      %p266 = por %p264, %p265
      %p268 = scmp.ne.s32.totalorder %s253, %s267
      %p269 = scmp.eq.s32.totalorder %s49, 0
      %p270 = por %p268, %p269
      %s272 = sadd.s32 %s271, 1
      %p275 = scmp.eq.s32.totalorder %s43, 1
      %p276 = scmp.ne.s32.totalorder %s271, %s273
      %p277 = scmp.eq.s32.totalorder %s43, 0
      %p278 = por %p276, %p277
      %p279 = scmp.ne.s32.totalorder %s271, %s273
      %p280 = scmp.eq.s32.totalorder %s48, 1
      %p281 = por %p279, %p280
      %p282 = scmp.ne.s32.totalorder %s273, %s274
      %p283 = scmp.eq.s32.totalorder %s48, 0
      %p284 = por %p282, %p283
      %p285 = scmp.ne.s32.totalorder %s273, %s274
      %p286 = scmp.eq.s32.totalorder %s49, 1
      %p287 = por %p285, %p286
      %p289 = scmp.ne.s32.totalorder %s274, %s288
      %p290 = scmp.eq.s32.totalorder %s49, 0
      %p291 = por %p289, %p290
      %s293 = sadd.s32 %s292, 1
      %p296 = scmp.eq.s32.totalorder %s43, 1
      %p297 = scmp.ne.s32.totalorder %s292, %s294
      %p298 = scmp.eq.s32.totalorder %s43, 0
      %p299 = por %p297, %p298
      %p300 = scmp.ne.s32.totalorder %s292, %s294
      %p301 = scmp.eq.s32.totalorder %s48, 1
      %p302 = por %p300, %p301
      %p303 = scmp.ne.s32.totalorder %s294, %s295
      %p304 = scmp.eq.s32.totalorder %s48, 0
      %p305 = por %p303, %p304
      %p306 = scmp.ne.s32.totalorder %s294, %s295
      %p307 = scmp.eq.s32.totalorder %s49, 1
      %p308 = por %p306, %p307
      %p310 = scmp.ne.s32.totalorder %s295, %s309
      %p311 = scmp.eq.s32.totalorder %s49, 0
      %p312 = por %p310, %p311
      %s314 = sadd.s32 %s313, 1
      %p317 = scmp.eq.s32.totalorder %s43, 1
      %p318 = scmp.ne.s32.totalorder %s313, %s315
      %p319 = scmp.eq.s32.totalorder %s43, 0
      %p320 = por %p318, %p319
      %p321 = scmp.ne.s32.totalorder %s313, %s315
      %p322 = scmp.eq.s32.totalorder %s48, 1
      %p323 = por %p321, %p322
      %p324 = scmp.ne.s32.totalorder %s315, %s316
      %p325 = scmp.eq.s32.totalorder %s48, 0
      %p326 = por %p324, %p325
      %p327 = scmp.ne.s32.totalorder %s315, %s316
      %p328 = scmp.eq.s32.totalorder %s49, 1
      %p329 = por %p327, %p328
      %p331 = scmp.ne.s32.totalorder %s316, %s330
      %p332 = scmp.eq.s32.totalorder %s49, 0
      %p333 = por %p331, %p332
      %s335 = sadd.s32 %s334, 1
      %p338 = scmp.eq.s32.totalorder %s43, 1
      %p339 = scmp.ne.s32.totalorder %s334, %s336
      %p340 = scmp.eq.s32.totalorder %s43, 0
      %p341 = por %p339, %p340
      %p342 = scmp.ne.s32.totalorder %s334, %s336
      %p343 = scmp.eq.s32.totalorder %s48, 1
      %p344 = por %p342, %p343
      %p345 = scmp.ne.s32.totalorder %s336, %s337
      %p346 = scmp.eq.s32.totalorder %s48, 0
      %p347 = por %p345, %p346
      %p348 = scmp.ne.s32.totalorder %s336, %s337
      %p349 = scmp.eq.s32.totalorder %s49, 1
      %p350 = por %p348, %p349
      %p352 = scmp.ne.s32.totalorder %s337, %s351
      %p353 = scmp.eq.s32.totalorder %s49, 0
      %p354 = por %p352, %p353
      %s356 = sadd.s32 %s355, 1
      %p359 = scmp.eq.s32.totalorder %s43, 1
      %p360 = scmp.ne.s32.totalorder %s355, %s357
      %p361 = scmp.eq.s32.totalorder %s43, 0
      %p362 = por %p360, %p361
      %p363 = scmp.ne.s32.totalorder %s355, %s357
      %p364 = scmp.eq.s32.totalorder %s48, 1
      %p365 = por %p363, %p364
      %p366 = scmp.ne.s32.totalorder %s357, %s358
      %p367 = scmp.eq.s32.totalorder %s48, 0
      %p368 = por %p366, %p367
      %p369 = scmp.ne.s32.totalorder %s357, %s358
      %p370 = scmp.eq.s32.totalorder %s49, 1
      %p371 = por %p369, %p370
      %p373 = scmp.ne.s32.totalorder %s358, %s372
      %p374 = scmp.eq.s32.totalorder %s49, 0
      %p375 = por %p373, %p374
      %s377 = sadd.s32 %s376, 1
      %p380 = scmp.eq.s32.totalorder %s43, 1
      %p381 = scmp.ne.s32.totalorder %s376, %s378
      %p382 = scmp.eq.s32.totalorder %s43, 0
      %p383 = por %p381, %p382
      %p384 = scmp.ne.s32.totalorder %s376, %s378
      %p385 = scmp.eq.s32.totalorder %s48, 1
      %p386 = por %p384, %p385
      %p387 = scmp.ne.s32.totalorder %s378, %s379
      %p388 = scmp.eq.s32.totalorder %s48, 0
      %p389 = por %p387, %p388
      %p390 = scmp.ne.s32.totalorder %s378, %s379
      %p391 = scmp.eq.s32.totalorder %s49, 1
      %p392 = por %p390, %p391
      %p394 = scmp.ne.s32.totalorder %s379, %s393
      %p395 = scmp.eq.s32.totalorder %s49, 0
      %p396 = por %p394, %p395
      %s398 = sadd.s32 %s397, 1
      %p401 = scmp.eq.s32.totalorder %s43, 1
      %p402 = scmp.ne.s32.totalorder %s397, %s399
      %p403 = scmp.eq.s32.totalorder %s43, 0
      %p404 = por %p402, %p403
      %p405 = scmp.ne.s32.totalorder %s397, %s399
      %p406 = scmp.eq.s32.totalorder %s48, 1
      %p407 = por %p405, %p406
      %p408 = scmp.ne.s32.totalorder %s399, %s400
      %p409 = scmp.eq.s32.totalorder %s48, 0
      %p410 = por %p408, %p409
      %p411 = scmp.ne.s32.totalorder %s399, %s400
      %p412 = scmp.eq.s32.totalorder %s49, 1
      %p413 = por %p411, %p412
      %p415 = scmp.ne.s32.totalorder %s400, %s414
      %p416 = scmp.eq.s32.totalorder %s49, 0
      %p417 = por %p415, %p416
      %s419 = sadd.s32 %s418, 1
      %p422 = scmp.eq.s32.totalorder %s43, 1
      %p423 = scmp.ne.s32.totalorder %s418, %s420
      %p424 = scmp.eq.s32.totalorder %s43, 0
      %p425 = por %p423, %p424
      %p426 = scmp.ne.s32.totalorder %s418, %s420
      %p427 = scmp.eq.s32.totalorder %s48, 1
      %p428 = por %p426, %p427
      %p429 = scmp.ne.s32.totalorder %s420, %s421
      %p430 = scmp.eq.s32.totalorder %s48, 0
      %p431 = por %p429, %p430
      %p432 = scmp.ne.s32.totalorder %s420, %s421
      %p433 = scmp.eq.s32.totalorder %s49, 1
      %p434 = por %p432, %p433
      %p436 = scmp.ne.s32.totalorder %s421, %s435
      %p437 = scmp.eq.s32.totalorder %s49, 0
      %p438 = por %p436, %p437
      %s440 = sadd.s32 %s439, 1
      %p443 = scmp.eq.s32.totalorder %s43, 1
      %p444 = scmp.ne.s32.totalorder %s439, %s441
      %p445 = scmp.eq.s32.totalorder %s43, 0
      %p446 = por %p444, %p445
      %p447 = scmp.ne.s32.totalorder %s439, %s441
      %p448 = scmp.eq.s32.totalorder %s48, 1
      %p449 = por %p447, %p448
      %p450 = scmp.ne.s32.totalorder %s441, %s442
      %p451 = scmp.eq.s32.totalorder %s48, 0
      %p452 = por %p450, %p451
      %p453 = scmp.ne.s32.totalorder %s441, %s442
      %p454 = scmp.eq.s32.totalorder %s49, 1
      %p455 = por %p453, %p454
      %p457 = scmp.ne.s32.totalorder %s442, %s456
      %p458 = scmp.eq.s32.totalorder %s49, 0
      %p459 = por %p457, %p458
      %s460 = ssub.s32 %s43, %s50
      %p461 = scmp.eq.s32.totalorder %s460, 0
      %s463 = sadd.s32 %s462, 1
      %s464 = scalar_select %p461, %s462, %s463
      %p467 = pneg %p461
      %p468 = scmp.eq.s32.totalorder %s43, 1
      %p469 = por %p467, %p468
      %p470 = scmp.ne.s32.totalorder %s462, %s465
      %p471 = scmp.eq.s32.totalorder %s43, 0
      %p472 = por %p470, %p471
      %p473 = scmp.ne.s32.totalorder %s462, %s465
      %p474 = scmp.eq.s32.totalorder %s48, 1
      %p475 = por %p473, %p474
      %p476 = scmp.ne.s32.totalorder %s465, %s466
      %p477 = scmp.eq.s32.totalorder %s48, 0
      %p478 = por %p476, %p477
      %p479 = scmp.ne.s32.totalorder %s465, %s466
      %p480 = scmp.eq.s32.totalorder %s49, 1
      %p481 = por %p479, %p480
      %p483 = scmp.ne.s32.totalorder %s466, %s482
      %p484 = scmp.eq.s32.totalorder %s49, 0
      %p485 = por %p483, %p484
      %s486 = ssub.s32 %s43, %s50
      %p487 = scmp.eq.s32.totalorder %s486, 0
      %s489 = sadd.s32 %s488, 1
      %s490 = scalar_select %p487, %s488, %s489
      %p493 = pneg %p487
      %p494 = scmp.eq.s32.totalorder %s43, 1
      %p495 = por %p493, %p494
      %p496 = scmp.ne.s32.totalorder %s488, %s491
      %p497 = scmp.eq.s32.totalorder %s43, 0
      %p498 = por %p496, %p497
      %p499 = scmp.ne.s32.totalorder %s488, %s491
      %p500 = scmp.eq.s32.totalorder %s48, 1
      %p501 = por %p499, %p500
      %p502 = scmp.ne.s32.totalorder %s491, %s492
      %p503 = scmp.eq.s32.totalorder %s48, 0
      %p504 = por %p502, %p503
      %p505 = scmp.ne.s32.totalorder %s491, %s492
      %p506 = scmp.eq.s32.totalorder %s49, 1
      %p507 = por %p505, %p506
      %p509 = scmp.ne.s32.totalorder %s492, %s508
      %p510 = scmp.eq.s32.totalorder %s49, 0
      %p511 = por %p509, %p510
      %p512 = scmp.le.s32.totalorder 1, %s43
      %p513 = scmp.lt.s32.totalorder %s43, 3
      %p514 = pnand %p512, %p513
      %p515 = pneg %p514
      // Predicated region
      $region9: #{tpu_custom_call.1} parent=5 // pred_check
        _
      $region10: #{tpu_custom_call.1} parent=5 // pred_check_branch
        %517 = sbr.rel (%p514) target = $region12
      $region11: #{tpu_custom_call.1} parent=5 // pred_region
        %s518 = ssub.s32 %s43, 1
        // Predicated region
        $region13: #{tpu_custom_call.1} parent=11 // pred_check
          %p519 = pneg %p116
        $region14: #{tpu_custom_call.1} parent=11 // pred_check_branch
          %521 = sbr.rel (%p519) target = $region16
        $region15: #{tpu_custom_call.1} parent=11 // pred_region
          _
        $region16: #{tpu_custom_call.1} parent=11 // pred_fallthru
          _
        // Predicated region
        $region17: #{tpu_custom_call.1} parent=11 // pred_check
          %p522 = pneg %p137
        $region18: #{tpu_custom_call.1} parent=11 // pred_check_branch
          %524 = sbr.rel (%p522) target = $region20
        $region19: #{tpu_custom_call.1} parent=11 // pred_region
          _
        $region20: #{tpu_custom_call.1} parent=11 // pred_fallthru
          _
        // Predicated region
        $region21: #{tpu_custom_call.1} parent=11 // pred_check
          %p525 = pneg %p158
        $region22: #{tpu_custom_call.1} parent=11 // pred_check_branch
          %527 = sbr.rel (%p525) target = $region24
        $region23: #{tpu_custom_call.1} parent=11 // pred_region
          _
        $region24: #{tpu_custom_call.1} parent=11 // pred_fallthru
          _
        // Predicated region
        $region25: #{tpu_custom_call.1} parent=11 // pred_check
          %p528 = pneg %p179
        $region26: #{tpu_custom_call.1} parent=11 // pred_check_branch
          %530 = sbr.rel (%p528) target = $region28
        $region27: #{tpu_custom_call.1} parent=11 // pred_region
          _
        $region28: #{tpu_custom_call.1} parent=11 // pred_fallthru
          _
        // Predicated region
        $region29: #{tpu_custom_call.1} parent=11 // pred_check
          %p531 = pneg %p200
        $region30: #{tpu_custom_call.1} parent=11 // pred_check_branch
          %533 = sbr.rel (%p531) target = $region32
        $region31: #{tpu_custom_call.1} parent=11 // pred_region
          %535 = vsyncadd [#allocation6], 0
          %s536 = sshll.u32 %s6, 4
          %s537 = int_to_ptr.hbm [resolvable:$true] %s536
          %s538 = sshll.u32 [#allocation7], 4
          %s539 = int_to_ptr.vmem [resolvable:$true] %s538
          %544 = dma.hbm_to_vmem [thread:$0]  %s537, 1024, %s539, [#allocation6], 64, 64, 4
        $region32: #{tpu_custom_call.1} parent=11 // pred_fallthru
          _
        // Predicated region
        $region33: #{tpu_custom_call.1} parent=11 // pred_check
          %p545 = pneg %p221
        $region34: #{tpu_custom_call.1} parent=11 // pred_check_branch
          %547 = sbr.rel (%p545) target = $region36
        $region35: #{tpu_custom_call.1} parent=11 // pred_region
          _
        $region36: #{tpu_custom_call.1} parent=11 // pred_fallthru
          _
        // Predicated region
        $region37: #{tpu_custom_call.1} parent=11 // pred_check
          %p548 = pneg %p242
        $region38: #{tpu_custom_call.1} parent=11 // pred_check_branch
          %550 = sbr.rel (%p548) target = $region40
        $region39: #{tpu_custom_call.1} parent=11 // pred_region
          %552 = vsyncadd [#allocation9], 0
          %s553 = sshll.u32 %s8, 4
          %s554 = int_to_ptr.hbm [resolvable:$true] %s553
          %s555 = sshll.u32 [#allocation8], 4
          %s556 = int_to_ptr.vmem [resolvable:$true] %s555
          %561 = dma.hbm_to_vmem [thread:$0]  %s554, 2048, %s556, [#allocation9], 128, 128, 8
        $region40: #{tpu_custom_call.1} parent=11 // pred_fallthru
          _
        // Predicated region
        $region41: #{tpu_custom_call.1} parent=11 // pred_check
          %p562 = pneg %p263
        $region42: #{tpu_custom_call.1} parent=11 // pred_check_branch
          %564 = sbr.rel (%p562) target = $region44
        $region43: #{tpu_custom_call.1} parent=11 // pred_region
          %566 = vsyncadd [#allocation9], 0
          %s567 = sshll.u32 %s9, 4
          %s568 = int_to_ptr.hbm [resolvable:$true] %s567
          %s569 = sshll.u32 [#allocation10], 4
          %s570 = int_to_ptr.vmem [resolvable:$true] %s569
          %575 = dma.hbm_to_vmem [thread:$0]  %s568, 1024, %s570, [#allocation9], 64, 64, 4
        $region44: #{tpu_custom_call.1} parent=11 // pred_fallthru
          _
        // Predicated region
        $region45: #{tpu_custom_call.1} parent=11 // pred_check
          %p576 = pneg %p284
        $region46: #{tpu_custom_call.1} parent=11 // pred_check_branch
          %578 = sbr.rel (%p576) target = $region48
        $region47: #{tpu_custom_call.1} parent=11 // pred_region
          %580 = vsyncadd [#allocation12], 0
          %s581 = sshll.u32 %s10, 4
          %s582 = int_to_ptr.hbm [resolvable:$true] %s581
          %s583 = sshll.u32 [#allocation11], 4
          %s584 = int_to_ptr.vmem [resolvable:$true] %s583
          %589 = dma.hbm_to_vmem [thread:$0]  %s582, 1024, %s584, [#allocation12], 64, 64, 4
        $region48: #{tpu_custom_call.1} parent=11 // pred_fallthru
          _
        // Predicated region
        $region49: #{tpu_custom_call.1} parent=11 // pred_check
          %p590 = pneg %p305
        $region50: #{tpu_custom_call.1} parent=11 // pred_check_branch
          %592 = sbr.rel (%p590) target = $region52
        $region51: #{tpu_custom_call.1} parent=11 // pred_region
          %594 = vsyncadd [#allocation12], 0
          %s595 = sshll.u32 %s11, 4
          %s596 = int_to_ptr.hbm [resolvable:$true] %s595
          %s597 = sshll.u32 [#allocation13], 4
          %s598 = int_to_ptr.vmem [resolvable:$true] %s597
          %603 = dma.hbm_to_vmem [thread:$0]  %s596, 1024, %s598, [#allocation12], 64, 64, 4
        $region52: #{tpu_custom_call.1} parent=11 // pred_fallthru
          _
        // Predicated region
        $region53: #{tpu_custom_call.1} parent=11 // pred_check
          %p604 = pneg %p326
        $region54: #{tpu_custom_call.1} parent=11 // pred_check_branch
          %606 = sbr.rel (%p604) target = $region56
        $region55: #{tpu_custom_call.1} parent=11 // pred_region
          %608 = vsyncadd [#allocation15], 0
          %s609 = sshll.u32 %s12, 4
          %s610 = int_to_ptr.hbm [resolvable:$true] %s609
          %s611 = sshll.u32 [#allocation14], 4
          %s612 = int_to_ptr.vmem [resolvable:$true] %s611
          %617 = dma.hbm_to_vmem [thread:$0]  %s610, 1024, %s612, [#allocation15], 64, 64, 4
        $region56: #{tpu_custom_call.1} parent=11 // pred_fallthru
          _
        // Predicated region
        $region57: #{tpu_custom_call.1} parent=11 // pred_check
          %p618 = pneg %p347
        $region58: #{tpu_custom_call.1} parent=11 // pred_check_branch
          %620 = sbr.rel (%p618) target = $region60
        $region59: #{tpu_custom_call.1} parent=11 // pred_region
          _
        $region60: #{tpu_custom_call.1} parent=11 // pred_fallthru
          _
        // Predicated region
        $region61: #{tpu_custom_call.1} parent=11 // pred_check
          %p621 = pneg %p368
        $region62: #{tpu_custom_call.1} parent=11 // pred_check_branch
          %623 = sbr.rel (%p621) target = $region64
        $region63: #{tpu_custom_call.1} parent=11 // pred_region
          _
        $region64: #{tpu_custom_call.1} parent=11 // pred_fallthru
          _
        // Predicated region
        $region65: #{tpu_custom_call.1} parent=11 // pred_check
          %p624 = pneg %p389
        $region66: #{tpu_custom_call.1} parent=11 // pred_check_branch
          %626 = sbr.rel (%p624) target = $region68
        $region67: #{tpu_custom_call.1} parent=11 // pred_region
          _
        $region68: #{tpu_custom_call.1} parent=11 // pred_fallthru
          _
        // Predicated region
        $region69: #{tpu_custom_call.1} parent=11 // pred_check
          %p627 = pneg %p410
        $region70: #{tpu_custom_call.1} parent=11 // pred_check_branch
          %629 = sbr.rel (%p627) target = $region72
        $region71: #{tpu_custom_call.1} parent=11 // pred_region
          _
        $region72: #{tpu_custom_call.1} parent=11 // pred_fallthru
          _
        // Predicated region
        $region73: #{tpu_custom_call.1} parent=11 // pred_check
          %p630 = pneg %p431
        $region74: #{tpu_custom_call.1} parent=11 // pred_check_branch
          %632 = sbr.rel (%p630) target = $region76
        $region75: #{tpu_custom_call.1} parent=11 // pred_region
          %634 = vsyncadd [#allocation15], 0
          %s635 = sshll.u32 %s17, 4
          %s636 = int_to_ptr.hbm [resolvable:$true] %s635
          %s637 = sshll.u32 [#allocation16], 4
          %s638 = int_to_ptr.vmem [resolvable:$true] %s637
          %643 = dma.hbm_to_vmem [thread:$0]  %s636, 1024, %s638, [#allocation15], 64, 64, 4
        $region76: #{tpu_custom_call.1} parent=11 // pred_fallthru
          _
        // Predicated region
        $region77: #{tpu_custom_call.1} parent=11 // pred_check
          %p644 = pneg %p452
        $region78: #{tpu_custom_call.1} parent=11 // pred_check_branch
          %646 = sbr.rel (%p644) target = $region80
        $region79: #{tpu_custom_call.1} parent=11 // pred_region
          %648 = vsyncadd [#allocation18], 0
          %s649 = sshll.u32 %s18, 4
          %s650 = int_to_ptr.hbm [resolvable:$true] %s649
          %s651 = sshll.u32 [#allocation17], 4
          %s652 = int_to_ptr.vmem [resolvable:$true] %s651
          %657 = dma.hbm_to_vmem [thread:$0]  %s650, 1024, %s652, [#allocation18], 64, 64, 4
        $region80: #{tpu_custom_call.1} parent=11 // pred_fallthru
          _
      $region12: #{tpu_custom_call.1} parent=5 // pred_fallthru
        _
      %p658 = scmp.lt.s32.totalorder %s43, 2
      // Predicated region
      $region81: #{tpu_custom_call.1} parent=5 // pred_check
        %p659 = pneg %p658
      $region82: #{tpu_custom_call.1} parent=5 // pred_check_branch
        %661 = sbr.rel (%p659) target = $region84
      $region83: #{tpu_custom_call.1} parent=5 // pred_region
        // Predicated region
        $region85: #{tpu_custom_call.1} parent=83 // pred_check
          %p662 = pneg %p63
        $region86: #{tpu_custom_call.1} parent=83 // pred_check_branch
          %664 = sbr.rel (%p662) target = $region88
        $region87: #{tpu_custom_call.1} parent=83 // pred_region
          %s665 = sand.u32 %s53, 1
          %s666 = scalar_lea.sflag [#allocation3], %s665
          %s667 = sand.u32 %s53, 1
          %s668 = smul.addr %s667, 16
          %s669 = scalar_lea.vmem [#allocation2], %s668
          %s670 = smul.u32 2, %s43
          %672 = vsyncadd %s666, 0
          %s673 = smul.addr %s670, 8
          %s674 = scalar_lea.hbm %s0, %s673
          %s675 = sshll.u32 %s674, 4
          %s676 = int_to_ptr.hbm [resolvable:$true] %s675
          %s677 = sshll.u32 %s669, 4
          %s678 = int_to_ptr.vmem [resolvable:$true] %s677
          %683 = dma.hbm_to_vmem [thread:$0]  %s676, 256, %s678, %s666, 128, 128, 8
        $region88: #{tpu_custom_call.1} parent=83 // pred_fallthru
          _
        // Predicated region
        $region89: #{tpu_custom_call.1} parent=83 // pred_check
          %p684 = pneg %p89
        $region90: #{tpu_custom_call.1} parent=83 // pred_check_branch
          %686 = sbr.rel (%p684) target = $region92
        $region91: #{tpu_custom_call.1} parent=83 // pred_region
          #allocation23 [shape = 'u32[6]{0}', space=smem, size = 0x18, scoped, tag = 'DMA stride descriptor']
          %s687 = sand.u32 %s43, 1
          %s688 = scalar_lea.sflag [#allocation6], %s687
          %s689 = sand.u32 %s79, 1
          %s690 = smul.addr %s689, 48
          %s691 = scalar_lea.vmem [#allocation5], %s690
          %s692 = smul.u32 2, %s43
          %694 = vsyncadd %s688, 0
          %s695 = smul.addr %s692, 8
          %s696 = scalar_lea.hbm %s1, %s695
          %s698 = sshll.u32 1, 14
          %s699 = sxor.u32 4294967295, %s698
          %s701 = sld [smem:[#allocation0]]
          %s702 = sadd.s32 2, %s701
          %s704 = sshll.u32 7, 26
          %s705 = sxor.u32 4294967295, %s704
          %s706 = sand.u32 0, %s705
          %s707 = sshll.u32 %s702, 26
          %s708 = sor.u32 %s706, %s707
          %s709 = sshll.u32 %s696, 4
          %s710 = int_to_ptr.hbm [resolvable:$true] %s709
          %s711 = sshll.u32 %s691, 4
          %s712 = int_to_ptr.vmem [resolvable:$true] %s711
          %718 = sst [smem:[#allocation23]] 512
          %s719 = scalar_lea.smem [#allocation23], 1
          %720 = sst [smem:[%s719]] 256
          %s721 = scalar_lea.smem [#allocation23], 2
          %722 = sst [smem:[%s721]] 2
          %s723 = scalar_lea.smem [#allocation23], 3
          %724 = sst [smem:[%s723]] 128
          %s725 = scalar_lea.smem [#allocation23], 4
          %726 = sst [smem:[%s725]] 128
          %s727 = scalar_lea.smem [#allocation23], 5
          %728 = sst [smem:[%s727]] 8
          %730 = dma.general %s710, 768, %s712, %s688, [#allocation22], [#allocation23], %s708, 0
        $region92: #{tpu_custom_call.1} parent=83 // pred_fallthru
          _
      $region84: #{tpu_custom_call.1} parent=5 // pred_fallthru
        _
      %p731 = scmp.le.s32.totalorder 1, %s43
      %p732 = scmp.lt.s32.totalorder %s43, 3
      %p733 = pnand %p731, %p732
      %p734 = pneg %p733
      // Predicated region
      $region93: #{tpu_custom_call.1} parent=5 // pred_check
        _
      $region94: #{tpu_custom_call.1} parent=5 // pred_check_branch
        %736 = sbr.rel (%p733) target = $region96
      $region95: #{tpu_custom_call.1} parent=5 // pred_region
        %s737 = ssub.s32 %s43, 1
        %s738 = sand.u32 %s56, 1
        %s739 = scalar_lea.sflag [#allocation3], %s738
        %s740 = sand.u32 %s56, 1
        %s741 = smul.addr %s740, 16
        %s742 = scalar_lea.vmem [#allocation2], %s741
        // Predicated region
        $region97: #{tpu_custom_call.1} parent=95 // pred_check
          %p743 = pneg %p69
        $region98: #{tpu_custom_call.1} parent=95 // pred_check_branch
          %745 = sbr.rel (%p743) target = $region100
        $region99: #{tpu_custom_call.1} parent=95 // pred_region
          %747 = dma.done %s739, 256
        $region100: #{tpu_custom_call.1} parent=95 // pred_fallthru
          _
        %s748 = sand.u32 %s48, 1
        %s749 = scalar_lea.sflag [#allocation6], %s748
        %s750 = sand.u32 %s82, 1
        %s751 = smul.addr %s750, 48
        %s752 = scalar_lea.vmem [#allocation5], %s751
        // Predicated region
        $region101: #{tpu_custom_call.1} parent=95 // pred_check
          %p753 = pneg %p95
        $region102: #{tpu_custom_call.1} parent=95 // pred_check_branch
          %755 = sbr.rel (%p753) target = $region104
        $region103: #{tpu_custom_call.1} parent=95 // pred_region
          %757 = dma.done %s749, 768
        $region104: #{tpu_custom_call.1} parent=95 // pred_fallthru
          _
        // Predicated region
        $region105: #{tpu_custom_call.1} parent=95 // pred_check
          %p758 = pneg %p200
        $region106: #{tpu_custom_call.1} parent=95 // pred_check_branch
          %760 = sbr.rel (%p758) target = $region108
        $region107: #{tpu_custom_call.1} parent=95 // pred_region
          %762 = dma.done [#allocation6], 1024
        $region108: #{tpu_custom_call.1} parent=95 // pred_fallthru
          _
        // Predicated region
        $region109: #{tpu_custom_call.1} parent=95 // pred_check
          %p763 = pneg %p242
        $region110: #{tpu_custom_call.1} parent=95 // pred_check_branch
          %765 = sbr.rel (%p763) target = $region112
        $region111: #{tpu_custom_call.1} parent=95 // pred_region
          %767 = dma.done [#allocation9], 2048
        $region112: #{tpu_custom_call.1} parent=95 // pred_fallthru
          _
        // Predicated region
        $region113: #{tpu_custom_call.1} parent=95 // pred_check
          %p768 = pneg %p263
        $region114: #{tpu_custom_call.1} parent=95 // pred_check_branch
          %770 = sbr.rel (%p768) target = $region116
        $region115: #{tpu_custom_call.1} parent=95 // pred_region
          %772 = dma.done [#allocation9], 1024
        $region116: #{tpu_custom_call.1} parent=95 // pred_fallthru
          _
        // Predicated region
        $region117: #{tpu_custom_call.1} parent=95 // pred_check
          %p773 = pneg %p284
        $region118: #{tpu_custom_call.1} parent=95 // pred_check_branch
          %775 = sbr.rel (%p773) target = $region120
        $region119: #{tpu_custom_call.1} parent=95 // pred_region
          %777 = dma.done [#allocation12], 1024
        $region120: #{tpu_custom_call.1} parent=95 // pred_fallthru
          _
        // Predicated region
        $region121: #{tpu_custom_call.1} parent=95 // pred_check
          %p778 = pneg %p305
        $region122: #{tpu_custom_call.1} parent=95 // pred_check_branch
          %780 = sbr.rel (%p778) target = $region124
        $region123: #{tpu_custom_call.1} parent=95 // pred_region
          %782 = dma.done [#allocation12], 1024
        $region124: #{tpu_custom_call.1} parent=95 // pred_fallthru
          _
        // Predicated region
        $region125: #{tpu_custom_call.1} parent=95 // pred_check
          %p783 = pneg %p326
        $region126: #{tpu_custom_call.1} parent=95 // pred_check_branch
          %785 = sbr.rel (%p783) target = $region128
        $region127: #{tpu_custom_call.1} parent=95 // pred_region
          %787 = dma.done [#allocation15], 1024
        $region128: #{tpu_custom_call.1} parent=95 // pred_fallthru
          _
        // Predicated region
        $region129: #{tpu_custom_call.1} parent=95 // pred_check
          %p788 = pneg %p431
        $region130: #{tpu_custom_call.1} parent=95 // pred_check_branch
          %790 = sbr.rel (%p788) target = $region132
        $region131: #{tpu_custom_call.1} parent=95 // pred_region
          %792 = dma.done [#allocation15], 1024
        $region132: #{tpu_custom_call.1} parent=95 // pred_fallthru
          _
        // Predicated region
        $region133: #{tpu_custom_call.1} parent=95 // pred_check
          %p793 = pneg %p452
        $region134: #{tpu_custom_call.1} parent=95 // pred_check_branch
          %795 = sbr.rel (%p793) target = $region136
        $region135: #{tpu_custom_call.1} parent=95 // pred_region
          %797 = dma.done [#allocation18], 1024
        $region136: #{tpu_custom_call.1} parent=95 // pred_fallthru
          _
        %s798 = sand.u32 %s56, 1
        %s799 = scalar_lea.sflag [#allocation3], %s798
        %s800 = sand.u32 %s56, 1
        %s801 = smul.addr %s800, 16
        %s802 = scalar_lea.vmem [#allocation2], %s801
        %p803 = pneg %p69
        %p804 = pneg %p66
        %s805 = sand.u32 %s48, 1
        %s806 = scalar_lea.sflag [#allocation6], %s805
        %s807 = sand.u32 %s82, 1
        %s808 = smul.addr %s807, 48
        %s809 = scalar_lea.vmem [#allocation5], %s808
        %p810 = pneg %p95
        %p811 = pneg %p92
        %p812 = pneg %p116
        %p813 = pneg %p113
        %p814 = pneg %p137
        %p815 = pneg %p134
        %p816 = pneg %p158
        %p817 = pneg %p155
        %p818 = pneg %p179
        %p819 = pneg %p176
        %p820 = pneg %p200
        %p821 = pneg %p197
        %p822 = pneg %p221
        %p823 = pneg %p218
        %p824 = pneg %p242
        %p825 = pneg %p239
        %p826 = pneg %p263
        %p827 = pneg %p260
        %p828 = pneg %p284
        %p829 = pneg %p281
        %p830 = pneg %p305
        %p831 = pneg %p302
        %p832 = pneg %p326
        %p833 = pneg %p323
        %p834 = pneg %p347
        %p835 = pneg %p344
        %p836 = pneg %p368
        %p837 = pneg %p365
        %p838 = pneg %p389
        %p839 = pneg %p386
        %p840 = pneg %p410
        %p841 = pneg %p407
        %p842 = pneg %p431
        %p843 = pneg %p428
        %p844 = pneg %p452
        %p845 = pneg %p449
        %p846 = pneg %p478
        %p847 = pneg %p475
        %s848 = sand.u32 %s465, 1
        %s849 = scalar_lea.sflag [#allocation4], %s848
        %s850 = sand.u32 %s465, 1
        %s851 = smul.addr %s850, 16
        %s852 = scalar_lea.vmem [#allocation19], %s851
        %p853 = pneg %p504
        %p854 = pneg %p501
        %s855 = sand.u32 %s491, 1
        %s856 = scalar_lea.sflag [#allocation21], %s855
        %s857 = sand.u32 %s491, 1
        %s858 = smul.addr %s857, 48
        %s859 = scalar_lea.vmem [#allocation20], %s858
        %s860 = smul.u32 2, %s48
        %s861 = smul.u32 2, %s48
        %s862 = smul.u32 2, %s48
        %s863 = smul.u32 2, %s48
        %v864 = vld [vmem:[%s742] sm:$0xff]
        %v865 = vld [vmem:[%s742 + $0x8] sm:$0xff]
        %v866 = vld [vmem:[%s752] sm:$0xff]
        %v867 = vld [vmem:[%s752 + $0x8] sm:$0xff]
        %v868 = vld [vmem:[%s752 + $0x10] sm:$0xff]
        %v869 = vld [vmem:[%s752 + $0x18] sm:$0xff]
        %v870 = vld [vmem:[%s752 + $0x20] sm:$0xff]
        %v871 = vld [vmem:[%s752 + $0x28] sm:$0xff]
        %v872 = vld [vmem:[%s2] sm:$0xff]
        %v873 = vld [vmem:[%s2 + $0x8] sm:$0xff]
        %v874 = vld [vmem:[%s2 + $0x10] sm:$0xff]
        %v875 = vld [vmem:[%s2 + $0x18] sm:$0xff]
        %v876 = vld [vmem:[%s2 + $0x20] sm:$0xff]
        %v877 = vld [vmem:[%s2 + $0x28] sm:$0xff]
        %v878 = vld [vmem:[%s2 + $0x30] sm:$0xff]
        %v879 = vld [vmem:[%s2 + $0x38] sm:$0xff]
        %v880 = vld [vmem:[%s2 + $0x40] sm:$0xff]
        %v881 = vld [vmem:[%s2 + $0x48] sm:$0xff]
        %v882 = vld [vmem:[%s2 + $0x50] sm:$0xff]
        %v883 = vld [vmem:[%s2 + $0x58] sm:$0xff]
        %v884 = vld [vmem:[%s2 + $0x60] sm:$0xff]
        %v885 = vld [vmem:[%s2 + $0x68] sm:$0xff]
        %v886 = vld [vmem:[%s2 + $0x70] sm:$0xff]
        %v887 = vld [vmem:[%s2 + $0x78] sm:$0xff]
        %v888 = vpack.c.bf16 %v865, %v864
        %v889 = vld [vmem:[%s3] sm:$0x3]
        %v891 = vperm.slane %v889, 0
        %v892 = vperm.slane %v889, 1
        %v911 = vunpack.c.l.b16 %v872
        %v912 = vunpack.c.h.b16 %v872
        %v913 = vunpack.c.l.b16 %v873
        %v914 = vunpack.c.h.b16 %v873
        %v915 = vunpack.c.l.b16 %v874
        %v916 = vunpack.c.h.b16 %v874
        %v917 = vunpack.c.l.b16 %v875
        %v918 = vunpack.c.h.b16 %v875
        %v919 = vunpack.c.l.b16 %v876
        %v920 = vunpack.c.h.b16 %v876
        %v921 = vunpack.c.l.b16 %v877
        %v922 = vunpack.c.h.b16 %v877
        %v923 = vunpack.c.l.b16 %v878
        %v924 = vunpack.c.h.b16 %v878
        %v925 = vunpack.c.l.b16 %v879
        %v926 = vunpack.c.h.b16 %v879
        %v927 = vunpack.c.l.b16 %v880
        %v928 = vunpack.c.h.b16 %v880
        %v929 = vunpack.c.l.b16 %v881
        %v930 = vunpack.c.h.b16 %v881
        %v931 = vunpack.c.l.b16 %v882
        %v932 = vunpack.c.h.b16 %v882
        %v933 = vunpack.c.l.b16 %v883
        %v934 = vunpack.c.h.b16 %v883
        %v935 = vunpack.c.l.b16 %v884
        %v936 = vunpack.c.h.b16 %v884
        %v937 = vunpack.c.l.b16 %v885
        %v938 = vunpack.c.h.b16 %v885
        %v939 = vunpack.c.l.b16 %v886
        %v940 = vunpack.c.h.b16 %v886
        %v941 = vunpack.c.l.b16 %v887
        %v942 = vunpack.c.h.b16 %v887
        %v943 = vpack.c.b16 %v913, %v911
        %v944 = vpack.c.b16 %v914, %v912
        %v945 = vpack.c.b16 %v917, %v915
        %v946 = vpack.c.b16 %v918, %v916
        %v947 = vpack.c.b16 %v921, %v919
        %v948 = vpack.c.b16 %v922, %v920
        %v949 = vpack.c.b16 %v925, %v923
        %v950 = vpack.c.b16 %v926, %v924
        %v951 = vpack.c.b16 %v929, %v927
        %v952 = vpack.c.b16 %v930, %v928
        %v953 = vpack.c.b16 %v933, %v931
        %v954 = vpack.c.b16 %v934, %v932
        %v955 = vpack.c.b16 %v937, %v935
        %v956 = vpack.c.b16 %v938, %v936
        %v957 = vpack.c.b16 %v941, %v939
        %v958 = vpack.c.b16 %v942, %v940
        %975 = vmatpush.bf16.msra.mxu0 %v957
        %976 = vmatpush.bf16.msra.mxu0 %v955
        %977 = vmatpush.bf16.msra.mxu0 %v953
        %978 = vmatpush.bf16.msra.mxu0 %v951
        %979 = vmatpush.bf16.msra.mxu0 %v949
        %980 = vmatpush.bf16.msra.mxu0 %v947
        %981 = vmatpush.bf16.msra.mxu0 %v945
        %982 = vmatpush.bf16.msra.mxu0 %v943
        %983 = vmatmul.bf16.gmra.mxu0 %v888
        %v984 = vpop.f32.mrf.mxu0
        %v985 = vadd.f32 %v891, %v984
        %v986 = vpop.f32.mrf.mxu0
        %v987 = vadd.f32 %v891, %v986
        %988 = vdwg.mxu0
        %989 = vmatpush.bf16.msra.mxu0 %v958
        %990 = vmatpush.bf16.msra.mxu0 %v956
        %991 = vmatpush.bf16.msra.mxu0 %v954
        %992 = vmatpush.bf16.msra.mxu0 %v952
        %993 = vmatpush.bf16.msra.mxu0 %v950
        %994 = vmatpush.bf16.msra.mxu0 %v948
        %995 = vmatpush.bf16.msra.mxu0 %v946
        %996 = vmatpush.bf16.msra.mxu0 %v944
        %997 = vmatmul.bf16.gmra.mxu0 %v888
        %v998 = vpop.f32.mrf.mxu0
        %v999 = vadd.f32 %v892, %v998
        %v1000 = vpop.f32.mrf.mxu0
        %v1001 = vadd.f32 %v892, %v1000
        %1002 = vdwg.mxu0
        %vm1003 = vcmp.ge.f32.partialorder %v985, 0.0
        %vm1004 = vcmp.ge.f32.partialorder %v987, 0.0
        %v1005 = vmul.f32 %v985, 0.2
        %v1006 = vmul.f32 %v987, 0.2
        %v1007 = vsel %vm1003, %v985, %v1005
        %v1008 = vsel %vm1004, %v987, %v1006
        %v1009 = vld [vmem:[#allocation8] sm:$0xff]
        %v1010 = vld [vmem:[#allocation8 + $0x8] sm:$0xff]
        %v1011 = vld [vmem:[#allocation8 + $0x10] sm:$0xff]
        %v1012 = vld [vmem:[#allocation8 + $0x18] sm:$0xff]
        %v1013 = vld [vmem:[#allocation8 + $0x20] sm:$0xff]
        %v1014 = vld [vmem:[#allocation8 + $0x28] sm:$0xff]
        %v1015 = vld [vmem:[#allocation8 + $0x30] sm:$0xff]
        %v1016 = vld [vmem:[#allocation8 + $0x38] sm:$0xff]
        %v1017 = vld [vmem:[#allocation8 + $0x40] sm:$0xff]
        %v1018 = vld [vmem:[#allocation8 + $0x48] sm:$0xff]
        %v1019 = vld [vmem:[#allocation8 + $0x50] sm:$0xff]
        %v1020 = vld [vmem:[#allocation8 + $0x58] sm:$0xff]
        %v1021 = vld [vmem:[#allocation8 + $0x60] sm:$0xff]
        %v1022 = vld [vmem:[#allocation8 + $0x68] sm:$0xff]
        %v1023 = vld [vmem:[#allocation8 + $0x70] sm:$0xff]
        %v1024 = vld [vmem:[#allocation8 + $0x78] sm:$0xff]
        %v1025 = vpack.c.bf16 %v867, %v866
        %v1026 = vpack.c.bf16 %v869, %v868
        %v1027 = vpack.c.bf16 %v871, %v870
        %v1044 = vunpack.c.l.b16 %v1009
        %v1045 = vunpack.c.h.b16 %v1009
        %v1046 = vunpack.c.l.b16 %v1010
        %v1047 = vunpack.c.h.b16 %v1010
        %v1048 = vunpack.c.l.b16 %v1011
        %v1049 = vunpack.c.h.b16 %v1011
        %v1050 = vunpack.c.l.b16 %v1012
        %v1051 = vunpack.c.h.b16 %v1012
        %v1052 = vunpack.c.l.b16 %v1013
        %v1053 = vunpack.c.h.b16 %v1013
        %v1054 = vunpack.c.l.b16 %v1014
        %v1055 = vunpack.c.h.b16 %v1014
        %v1056 = vunpack.c.l.b16 %v1015
        %v1057 = vunpack.c.h.b16 %v1015
        %v1058 = vunpack.c.l.b16 %v1016
        %v1059 = vunpack.c.h.b16 %v1016
        %v1060 = vunpack.c.l.b16 %v1017
        %v1061 = vunpack.c.h.b16 %v1017
        %v1062 = vunpack.c.l.b16 %v1018
        %v1063 = vunpack.c.h.b16 %v1018
        %v1064 = vunpack.c.l.b16 %v1019
        %v1065 = vunpack.c.h.b16 %v1019
        %v1066 = vunpack.c.l.b16 %v1020
        %v1067 = vunpack.c.h.b16 %v1020
        %v1068 = vunpack.c.l.b16 %v1021
        %v1069 = vunpack.c.h.b16 %v1021
        %v1070 = vunpack.c.l.b16 %v1022
        %v1071 = vunpack.c.h.b16 %v1022
        %v1072 = vunpack.c.l.b16 %v1023
        %v1073 = vunpack.c.h.b16 %v1023
        %v1074 = vunpack.c.l.b16 %v1024
        %v1075 = vunpack.c.h.b16 %v1024
        %v1076 = vpack.c.b16 %v1046, %v1044
        %v1077 = vpack.c.b16 %v1047, %v1045
        %v1078 = vpack.c.b16 %v1050, %v1048
        %v1079 = vpack.c.b16 %v1051, %v1049
        %v1080 = vpack.c.b16 %v1054, %v1052
        %v1081 = vpack.c.b16 %v1055, %v1053
        %v1082 = vpack.c.b16 %v1058, %v1056
        %v1083 = vpack.c.b16 %v1059, %v1057
        %v1084 = vpack.c.b16 %v1062, %v1060
        %v1085 = vpack.c.b16 %v1063, %v1061
        %v1086 = vpack.c.b16 %v1066, %v1064
        %v1087 = vpack.c.b16 %v1067, %v1065
        %v1088 = vpack.c.b16 %v1070, %v1068
        %v1089 = vpack.c.b16 %v1071, %v1069
        %v1090 = vpack.c.b16 %v1074, %v1072
        %v1091 = vpack.c.b16 %v1075, %v1073
        %1108 = vmatpush.bf16.msra.mxu0 %v1090
        %1109 = vmatpush.bf16.msra.mxu0 %v1088
        %1110 = vmatpush.bf16.msra.mxu0 %v1086
        %1111 = vmatpush.bf16.msra.mxu0 %v1084
        %1112 = vmatpush.bf16.msra.mxu0 %v1082
        %1113 = vmatpush.bf16.msra.mxu0 %v1080
        %1114 = vmatpush.bf16.msra.mxu0 %v1078
        %1115 = vmatpush.bf16.msra.mxu0 %v1076
        %1116 = vmatmul.bf16.gmra.mxu0 %v1025
        %v1117 = vpop.f32.mrf.mxu0
        %v1118 = vadd.f32 0.0, %v1117
        %v1119 = vpop.f32.mrf.mxu0
        %v1120 = vadd.f32 0.0, %v1119
        %1121 = vmatmul.bf16.gmra.mxu0 %v1026
        %v1122 = vpop.f32.mrf.mxu0
        %v1123 = vadd.f32 0.0, %v1122
        %v1124 = vpop.f32.mrf.mxu0
        %v1125 = vadd.f32 0.0, %v1124
        %1126 = vmatmul.bf16.gmra.mxu0 %v1027
        %v1127 = vpop.f32.mrf.mxu0
        %v1128 = vadd.f32 0.0, %v1127
        %v1129 = vpop.f32.mrf.mxu0
        %v1130 = vadd.f32 0.0, %v1129
        %1131 = vdwg.mxu0
        %1132 = vmatpush.bf16.msra.mxu0 %v1091
        %1133 = vmatpush.bf16.msra.mxu0 %v1089
        %1134 = vmatpush.bf16.msra.mxu0 %v1087
        %1135 = vmatpush.bf16.msra.mxu0 %v1085
        %1136 = vmatpush.bf16.msra.mxu0 %v1083
        %1137 = vmatpush.bf16.msra.mxu0 %v1081
        %1138 = vmatpush.bf16.msra.mxu0 %v1079
        %1139 = vmatpush.bf16.msra.mxu0 %v1077
        %1140 = vmatmul.bf16.gmra.mxu0 %v1025
        %v1141 = vpop.f32.mrf.mxu0
        %v1142 = vadd.f32 0.0, %v1141
        %v1143 = vpop.f32.mrf.mxu0
        %v1144 = vadd.f32 0.0, %v1143
        %1145 = vmatmul.bf16.gmra.mxu0 %v1026
        %v1146 = vpop.f32.mrf.mxu0
        %v1147 = vadd.f32 0.0, %v1146
        %v1148 = vpop.f32.mrf.mxu0
        %v1149 = vadd.f32 0.0, %v1148
        %1150 = vmatmul.bf16.gmra.mxu0 %v1027
        %v1151 = vpop.f32.mrf.mxu0
        %v1152 = vadd.f32 0.0, %v1151
        %v1153 = vpop.f32.mrf.mxu0
        %v1154 = vadd.f32 0.0, %v1153
        %1155 = vdwg.mxu0
        %v1156 = vld [vmem:[%s4] sm:$0xf]
        %v1157 = vld [vmem:[%s4 + $0x4] sm:$0xf]
        %v1158 = vld [vmem:[%s4 + $0x8] sm:$0xf]
        %v1159 = vld [vmem:[%s4 + $0xc] sm:$0xf]
        %v1160 = vld [vmem:[%s4 + $0x10] sm:$0xf]
        %v1161 = vld [vmem:[%s4 + $0x14] sm:$0xf]
        %v1162 = vld [vmem:[%s4 + $0x18] sm:$0xf]
        %v1163 = vld [vmem:[%s4 + $0x1c] sm:$0xf]
        %v1164 = vld [vmem:[%s4 + $0x20] sm:$0xf]
        %v1165 = vld [vmem:[%s4 + $0x24] sm:$0xf]
        %v1166 = vld [vmem:[%s4 + $0x28] sm:$0xf]
        %v1167 = vld [vmem:[%s4 + $0x2c] sm:$0xf]
        %v1168 = vld [vmem:[%s4 + $0x30] sm:$0xf]
        %v1169 = vld [vmem:[%s4 + $0x34] sm:$0xf]
        %v1170 = vld [vmem:[%s4 + $0x38] sm:$0xf]
        %v1171 = vld [vmem:[%s4 + $0x3c] sm:$0xf]
        %v1172 = vpack.c.bf16 %v1008, %v1007
        %v1173 = vld [vmem:[%s5] sm:$0x1]
        %v1175 = vperm.slane %v1173, 0
        %v1193 = vunpack.c.l.b16 %v1156
        %v1194 = vunpack.c.l.b16 %v1157
        %v1195 = vunpack.c.l.b16 %v1158
        %v1196 = vunpack.c.l.b16 %v1159
        %v1197 = vunpack.c.l.b16 %v1160
        %v1198 = vunpack.c.l.b16 %v1161
        %v1199 = vunpack.c.l.b16 %v1162
        %v1200 = vunpack.c.l.b16 %v1163
        %v1201 = vunpack.c.l.b16 %v1164
        %v1202 = vunpack.c.l.b16 %v1165
        %v1203 = vunpack.c.l.b16 %v1166
        %v1204 = vunpack.c.l.b16 %v1167
        %v1205 = vunpack.c.l.b16 %v1168
        %v1206 = vunpack.c.l.b16 %v1169
        %v1207 = vunpack.c.l.b16 %v1170
        %v1208 = vunpack.c.l.b16 %v1171
        %v1209 = vpack.c.b16 %v1194, %v1193
        %v1210 = vpack.c.b16 %v1196, %v1195
        %v1211 = vpack.c.b16 %v1198, %v1197
        %v1212 = vpack.c.b16 %v1200, %v1199
        %v1213 = vpack.c.b16 %v1202, %v1201
        %v1214 = vpack.c.b16 %v1204, %v1203
        %v1215 = vpack.c.b16 %v1206, %v1205
        %v1216 = vpack.c.b16 %v1208, %v1207
        %1225 = vmatpush.bf16.msra.mxu0 %v1216
        %1226 = vmatpush.bf16.msra.mxu0 %v1215
        %1227 = vmatpush.bf16.msra.mxu0 %v1214
        %1228 = vmatpush.bf16.msra.mxu0 %v1213
        %1229 = vmatpush.bf16.msra.mxu0 %v1212
        %1230 = vmatpush.bf16.msra.mxu0 %v1211
        %1231 = vmatpush.bf16.msra.mxu0 %v1210
        %1232 = vmatpush.bf16.msra.mxu0 %v1209
        %1233 = vmatmul.bf16.gmra.mxu0 %v1172
        %v1234 = vpop.f32.mrf.mxu0
        %v1235 = vadd.f32 %v1175, %v1234
        %v1236 = vpop.f32.mrf.mxu0
        %v1237 = vadd.f32 %v1175, %v1236
        %1238 = vdwg.mxu0
        %vm1239 = vcmp.ge.f32.partialorder %v1235, 0.0
        %vm1240 = vcmp.ge.f32.partialorder %v1237, 0.0
        %v1241 = vmul.f32 %v1235, 0.2
        %v1242 = vmul.f32 %v1237, 0.2
        %v1243 = vsel %vm1239, %v1235, %v1241
        %v1244 = vsel %vm1240, %v1237, %v1242
        %v1245 = vld [vmem:[#allocation7] sm:$0xf]
        %v1246 = vld [vmem:[#allocation7 + $0x4] sm:$0xf]
        %v1247 = vld [vmem:[#allocation7 + $0x8] sm:$0xf]
        %v1248 = vld [vmem:[#allocation7 + $0xc] sm:$0xf]
        %v1249 = vld [vmem:[#allocation7 + $0x10] sm:$0xf]
        %v1250 = vld [vmem:[#allocation7 + $0x14] sm:$0xf]
        %v1251 = vld [vmem:[#allocation7 + $0x18] sm:$0xf]
        %v1252 = vld [vmem:[#allocation7 + $0x1c] sm:$0xf]
        %v1253 = vld [vmem:[#allocation7 + $0x20] sm:$0xf]
        %v1254 = vld [vmem:[#allocation7 + $0x24] sm:$0xf]
        %v1255 = vld [vmem:[#allocation7 + $0x28] sm:$0xf]
        %v1256 = vld [vmem:[#allocation7 + $0x2c] sm:$0xf]
        %v1257 = vld [vmem:[#allocation7 + $0x30] sm:$0xf]
        %v1258 = vld [vmem:[#allocation7 + $0x34] sm:$0xf]
        %v1259 = vld [vmem:[#allocation7 + $0x38] sm:$0xf]
        %v1260 = vld [vmem:[#allocation7 + $0x3c] sm:$0xf]
        %v1261 = vpack.c.bf16 %v1244, %v1243
        %v1262 = vld [vmem:[%s7] sm:$0x1]
        %v1264 = vperm.slane %v1262, 0
        %v1282 = vunpack.c.l.b16 %v1245
        %v1283 = vunpack.c.l.b16 %v1246
        %v1284 = vunpack.c.l.b16 %v1247
        %v1285 = vunpack.c.l.b16 %v1248
        %v1286 = vunpack.c.l.b16 %v1249
        %v1287 = vunpack.c.l.b16 %v1250
        %v1288 = vunpack.c.l.b16 %v1251
        %v1289 = vunpack.c.l.b16 %v1252
        %v1290 = vunpack.c.l.b16 %v1253
        %v1291 = vunpack.c.l.b16 %v1254
        %v1292 = vunpack.c.l.b16 %v1255
        %v1293 = vunpack.c.l.b16 %v1256
        %v1294 = vunpack.c.l.b16 %v1257
        %v1295 = vunpack.c.l.b16 %v1258
        %v1296 = vunpack.c.l.b16 %v1259
        %v1297 = vunpack.c.l.b16 %v1260
        %v1298 = vpack.c.b16 %v1283, %v1282
        %v1299 = vpack.c.b16 %v1285, %v1284
        %v1300 = vpack.c.b16 %v1287, %v1286
        %v1301 = vpack.c.b16 %v1289, %v1288
        %v1302 = vpack.c.b16 %v1291, %v1290
        %v1303 = vpack.c.b16 %v1293, %v1292
        %v1304 = vpack.c.b16 %v1295, %v1294
        %v1305 = vpack.c.b16 %v1297, %v1296
        %1314 = vmatpush.bf16.msra.mxu0 %v1305
        %1315 = vmatpush.bf16.msra.mxu0 %v1304
        %1316 = vmatpush.bf16.msra.mxu0 %v1303
        %1317 = vmatpush.bf16.msra.mxu0 %v1302
        %1318 = vmatpush.bf16.msra.mxu0 %v1301
        %1319 = vmatpush.bf16.msra.mxu0 %v1300
        %1320 = vmatpush.bf16.msra.mxu0 %v1299
        %1321 = vmatpush.bf16.msra.mxu0 %v1298
        %1322 = vmatmul.bf16.gmra.mxu0 %v1261
        %v1323 = vpop.f32.mrf.mxu0
        %v1324 = vadd.f32 %v1264, %v1323
        %v1325 = vpop.f32.mrf.mxu0
        %v1326 = vadd.f32 %v1264, %v1325
        %1327 = vdwg.mxu0
        %v1328 = vmul.f32 %v1118, %v1118
        %v1329 = vmul.f32 %v1120, %v1120
        %v1330 = vmul.f32 %v1123, %v1123
        %v1331 = vmul.f32 %v1125, %v1125
        %v1332 = vmul.f32 %v1128, %v1128
        %v1333 = vmul.f32 %v1130, %v1130
        %v1334 = vadd.f32 %v1328, %v1330
        %v1335 = vadd.f32 %v1334, %v1332
        %v1336 = vadd.f32 %v1329, %v1331
        %v1337 = vadd.f32 %v1336, %v1333
        %v1338 = vadd.f32 %v1335, 1.0
        %v1339 = vadd.f32 %v1337, 1.0
        %v1340 = vrsqrt.pop %v1338
        %v1341 = vmul.f32 %v1340, %v1338
        %v1342 = vmul.f32 %v1341, %v1340
        %v1343 = vmul.f32 0.5, %v1342
        %v1344 = vsub.f32 1.5, %v1343
        %v1345 = vmul.f32 %v1340, %v1344
        %v1346 = vmul.f32 %v1338, %v1345
        %vm1347 = vcmp.eq.f32.partialorder %v1338, inf
        %v1348 = vsel %vm1347, %v1338, %v1346
        %vm1349 = vcmp.eq.f32.partialorder %v1338, 0.0
        %v1350 = vand.u32 %v1338, 2147483648
        %v1351 = vsel %vm1349, %v1350, %v1348
        %v1352 = vrsqrt.pop %v1339
        %v1353 = vmul.f32 %v1352, %v1339
        %v1354 = vmul.f32 %v1353, %v1352
        %v1355 = vmul.f32 0.5, %v1354
        %v1356 = vsub.f32 1.5, %v1355
        %v1357 = vmul.f32 %v1352, %v1356
        %v1358 = vmul.f32 %v1339, %v1357
        %vm1359 = vcmp.eq.f32.partialorder %v1339, inf
        %v1360 = vsel %vm1359, %v1339, %v1358
        %vm1361 = vcmp.eq.f32.partialorder %v1339, 0.0
        %v1362 = vand.u32 %v1339, 2147483648
        %v1363 = vsel %vm1361, %v1362, %v1360
        %v1364 = vrsqrt.pop %v1351
        %v1365 = vmul.f32 %v1364, %v1351
        %v1366 = vmul.f32 %v1365, %v1364
        %v1367 = vmul.f32 0.5, %v1366
        %v1368 = vsub.f32 1.5, %v1367
        %v1369 = vmul.f32 %v1364, %v1368
        %vm1370 = vweird.f32 %v1351
        %vm1371 = vweird.f32 %v1364
        %vm1372 = vmor %vm1370, %vm1371
        %v1373 = vsel %vm1372, %v1364, %v1369
        %v1374 = vrsqrt.pop %v1363
        %v1375 = vmul.f32 %v1374, %v1363
        %v1376 = vmul.f32 %v1375, %v1374
        %v1377 = vmul.f32 0.5, %v1376
        %v1378 = vsub.f32 1.5, %v1377
        %v1379 = vmul.f32 %v1374, %v1378
        %vm1380 = vweird.f32 %v1363
        %vm1381 = vweird.f32 %v1374
        %vm1382 = vmor %vm1380, %vm1381
        %v1383 = vsel %vm1382, %v1374, %v1379
        %v1384 = vmul.f32 %v1118, %v1373
        %v1385 = vmul.f32 %v1120, %v1383
        %v1386 = vmul.f32 %v1123, %v1373
        %v1387 = vmul.f32 %v1125, %v1383
        %v1388 = vmul.f32 %v1128, %v1373
        %v1389 = vmul.f32 %v1130, %v1383
        %v1390 = vld [vmem:[#allocation10] sm:$0xf]
        %v1391 = vld [vmem:[#allocation10 + $0x4] sm:$0xf]
        %v1392 = vld [vmem:[#allocation10 + $0x8] sm:$0xf]
        %v1393 = vld [vmem:[#allocation10 + $0xc] sm:$0xf]
        %v1394 = vld [vmem:[#allocation10 + $0x10] sm:$0xf]
        %v1395 = vld [vmem:[#allocation10 + $0x14] sm:$0xf]
        %v1396 = vld [vmem:[#allocation10 + $0x18] sm:$0xf]
        %v1397 = vld [vmem:[#allocation10 + $0x1c] sm:$0xf]
        %v1398 = vld [vmem:[#allocation10 + $0x20] sm:$0xf]
        %v1399 = vld [vmem:[#allocation10 + $0x24] sm:$0xf]
        %v1400 = vld [vmem:[#allocation10 + $0x28] sm:$0xf]
        %v1401 = vld [vmem:[#allocation10 + $0x2c] sm:$0xf]
        %v1402 = vld [vmem:[#allocation10 + $0x30] sm:$0xf]
        %v1403 = vld [vmem:[#allocation10 + $0x34] sm:$0xf]
        %v1404 = vld [vmem:[#allocation10 + $0x38] sm:$0xf]
        %v1405 = vld [vmem:[#allocation10 + $0x3c] sm:$0xf]
        %v1406 = vpack.c.bf16 %v1385, %v1384
        %v1407 = vpack.c.bf16 %v1387, %v1386
        %v1408 = vpack.c.bf16 %v1389, %v1388
        %v1425 = vunpack.c.l.b16 %v1390
        %v1426 = vunpack.c.l.b16 %v1391
        %v1427 = vunpack.c.l.b16 %v1392
        %v1428 = vunpack.c.l.b16 %v1393
        %v1429 = vunpack.c.l.b16 %v1394
        %v1430 = vunpack.c.l.b16 %v1395
        %v1431 = vunpack.c.l.b16 %v1396
        %v1432 = vunpack.c.l.b16 %v1397
        %v1433 = vunpack.c.l.b16 %v1398
        %v1434 = vunpack.c.l.b16 %v1399
        %v1435 = vunpack.c.l.b16 %v1400
        %v1436 = vunpack.c.l.b16 %v1401
        %v1437 = vunpack.c.l.b16 %v1402
        %v1438 = vunpack.c.l.b16 %v1403
        %v1439 = vunpack.c.l.b16 %v1404
        %v1440 = vunpack.c.l.b16 %v1405
        %v1441 = vpack.c.b16 %v1426, %v1425
        %v1442 = vpack.c.b16 %v1428, %v1427
        %v1443 = vpack.c.b16 %v1430, %v1429
        %v1444 = vpack.c.b16 %v1432, %v1431
        %v1445 = vpack.c.b16 %v1434, %v1433
        %v1446 = vpack.c.b16 %v1436, %v1435
        %v1447 = vpack.c.b16 %v1438, %v1437
        %v1448 = vpack.c.b16 %v1440, %v1439
        %1457 = vmatpush.bf16.msra.mxu0 %v1448
        %1458 = vmatpush.bf16.msra.mxu0 %v1447
        %1459 = vmatpush.bf16.msra.mxu0 %v1446
        %1460 = vmatpush.bf16.msra.mxu0 %v1445
        %1461 = vmatpush.bf16.msra.mxu0 %v1444
        %1462 = vmatpush.bf16.msra.mxu0 %v1443
        %1463 = vmatpush.bf16.msra.mxu0 %v1442
        %1464 = vmatpush.bf16.msra.mxu0 %v1441
        %1465 = vmatmul.bf16.gmra.mxu0 %v1406
        %v1466 = vpop.f32.mrf.mxu0
        %v1467 = vadd.f32 0.0, %v1466
        %v1468 = vpop.f32.mrf.mxu0
        %v1469 = vadd.f32 0.0, %v1468
        %1470 = vmatmul.bf16.gmra.mxu0 %v1407
        %v1471 = vpop.f32.mrf.mxu0
        %v1472 = vadd.f32 0.0, %v1471
        %v1473 = vpop.f32.mrf.mxu0
        %v1474 = vadd.f32 0.0, %v1473
        %1475 = vmatmul.bf16.gmra.mxu0 %v1408
        %v1476 = vpop.f32.mrf.mxu0
        %v1477 = vadd.f32 0.0, %v1476
        %v1478 = vpop.f32.mrf.mxu0
        %v1479 = vadd.f32 0.0, %v1478
        %1480 = vdwg.mxu0
        %v1481 = vmul.f32 %v1467, %v1467
        %v1482 = vmul.f32 %v1469, %v1469
        %v1483 = vmul.f32 %v1472, %v1472
        %v1484 = vmul.f32 %v1474, %v1474
        %v1485 = vmul.f32 %v1477, %v1477
        %v1486 = vmul.f32 %v1479, %v1479
        %v1487 = vadd.f32 %v1481, %v1483
        %v1488 = vadd.f32 %v1487, %v1485
        %v1489 = vadd.f32 %v1482, %v1484
        %v1490 = vadd.f32 %v1489, %v1486
        %v1491 = vadd.f32 %v1488, 1.0
        %v1492 = vadd.f32 %v1490, 1.0
        %v1493 = vrsqrt.pop %v1491
        %v1494 = vmul.f32 %v1493, %v1491
        %v1495 = vmul.f32 %v1494, %v1493
        %v1496 = vmul.f32 0.5, %v1495
        %v1497 = vsub.f32 1.5, %v1496
        %v1498 = vmul.f32 %v1493, %v1497
        %v1499 = vmul.f32 %v1491, %v1498
        %vm1500 = vcmp.eq.f32.partialorder %v1491, inf
        %v1501 = vsel %vm1500, %v1491, %v1499
        %vm1502 = vcmp.eq.f32.partialorder %v1491, 0.0
        %v1503 = vand.u32 %v1491, 2147483648
        %v1504 = vsel %vm1502, %v1503, %v1501
        %v1505 = vrsqrt.pop %v1492
        %v1506 = vmul.f32 %v1505, %v1492
        %v1507 = vmul.f32 %v1506, %v1505
        %v1508 = vmul.f32 0.5, %v1507
        %v1509 = vsub.f32 1.5, %v1508
        %v1510 = vmul.f32 %v1505, %v1509
        %v1511 = vmul.f32 %v1492, %v1510
        %vm1512 = vcmp.eq.f32.partialorder %v1492, inf
        %v1513 = vsel %vm1512, %v1492, %v1511
        %vm1514 = vcmp.eq.f32.partialorder %v1492, 0.0
        %v1515 = vand.u32 %v1492, 2147483648
        %v1516 = vsel %vm1514, %v1515, %v1513
        %v1517 = vrsqrt.pop %v1504
        %v1518 = vmul.f32 %v1517, %v1504
        %v1519 = vmul.f32 %v1518, %v1517
        %v1520 = vmul.f32 0.5, %v1519
        %v1521 = vsub.f32 1.5, %v1520
        %v1522 = vmul.f32 %v1517, %v1521
        %vm1523 = vweird.f32 %v1504
        %vm1524 = vweird.f32 %v1517
        %vm1525 = vmor %vm1523, %vm1524
        %v1526 = vsel %vm1525, %v1517, %v1522
        %v1527 = vrsqrt.pop %v1516
        %v1528 = vmul.f32 %v1527, %v1516
        %v1529 = vmul.f32 %v1528, %v1527
        %v1530 = vmul.f32 0.5, %v1529
        %v1531 = vsub.f32 1.5, %v1530
        %v1532 = vmul.f32 %v1527, %v1531
        %vm1533 = vweird.f32 %v1516
        %vm1534 = vweird.f32 %v1527
        %vm1535 = vmor %vm1533, %vm1534
        %v1536 = vsel %vm1535, %v1527, %v1532
        %v1537 = vmul.f32 %v1467, %v1526
        %v1538 = vmul.f32 %v1469, %v1536
        %v1539 = vmul.f32 %v1472, %v1526
        %v1540 = vmul.f32 %v1474, %v1536
        %v1541 = vmul.f32 %v1477, %v1526
        %v1542 = vmul.f32 %v1479, %v1536
        %v1543 = vld [vmem:[#allocation11] sm:$0xf]
        %v1544 = vld [vmem:[#allocation11 + $0x4] sm:$0xf]
        %v1545 = vld [vmem:[#allocation11 + $0x8] sm:$0xf]
        %v1546 = vld [vmem:[#allocation11 + $0xc] sm:$0xf]
        %v1547 = vld [vmem:[#allocation11 + $0x10] sm:$0xf]
        %v1548 = vld [vmem:[#allocation11 + $0x14] sm:$0xf]
        %v1549 = vld [vmem:[#allocation11 + $0x18] sm:$0xf]
        %v1550 = vld [vmem:[#allocation11 + $0x1c] sm:$0xf]
        %v1551 = vld [vmem:[#allocation11 + $0x20] sm:$0xf]
        %v1552 = vld [vmem:[#allocation11 + $0x24] sm:$0xf]
        %v1553 = vld [vmem:[#allocation11 + $0x28] sm:$0xf]
        %v1554 = vld [vmem:[#allocation11 + $0x2c] sm:$0xf]
        %v1555 = vld [vmem:[#allocation11 + $0x30] sm:$0xf]
        %v1556 = vld [vmem:[#allocation11 + $0x34] sm:$0xf]
        %v1557 = vld [vmem:[#allocation11 + $0x38] sm:$0xf]
        %v1558 = vld [vmem:[#allocation11 + $0x3c] sm:$0xf]
        %v1559 = vpack.c.bf16 %v1538, %v1537
        %v1560 = vpack.c.bf16 %v1540, %v1539
        %v1561 = vpack.c.bf16 %v1542, %v1541
        %v1562 = vmul.f32 %v999, %v1142
        %v1563 = vmul.f32 %v1001, %v1144
        %v1564 = vmul.f32 %v999, %v1147
        %v1565 = vmul.f32 %v1001, %v1149
        %v1566 = vmul.f32 %v999, %v1152
        %v1567 = vmul.f32 %v1001, %v1154
        %v1568 = vld [vmem:[#allocation13] sm:$0xf]
        %v1569 = vld [vmem:[#allocation13 + $0x4] sm:$0xf]
        %v1570 = vld [vmem:[#allocation13 + $0x8] sm:$0xf]
        %v1571 = vld [vmem:[#allocation13 + $0xc] sm:$0xf]
        %v1572 = vld [vmem:[#allocation13 + $0x10] sm:$0xf]
        %v1573 = vld [vmem:[#allocation13 + $0x14] sm:$0xf]
        %v1574 = vld [vmem:[#allocation13 + $0x18] sm:$0xf]
        %v1575 = vld [vmem:[#allocation13 + $0x1c] sm:$0xf]
        %v1576 = vld [vmem:[#allocation13 + $0x20] sm:$0xf]
        %v1577 = vld [vmem:[#allocation13 + $0x24] sm:$0xf]
        %v1578 = vld [vmem:[#allocation13 + $0x28] sm:$0xf]
        %v1579 = vld [vmem:[#allocation13 + $0x2c] sm:$0xf]
        %v1580 = vld [vmem:[#allocation13 + $0x30] sm:$0xf]
        %v1581 = vld [vmem:[#allocation13 + $0x34] sm:$0xf]
        %v1582 = vld [vmem:[#allocation13 + $0x38] sm:$0xf]
        %v1583 = vld [vmem:[#allocation13 + $0x3c] sm:$0xf]
        %v1584 = vpack.c.bf16 %v1563, %v1562
        %v1585 = vpack.c.bf16 %v1565, %v1564
        %v1586 = vpack.c.bf16 %v1567, %v1566
        %v1603 = vunpack.c.l.b16 %v1568
        %v1604 = vunpack.c.l.b16 %v1569
        %v1605 = vunpack.c.l.b16 %v1570
        %v1606 = vunpack.c.l.b16 %v1571
        %v1607 = vunpack.c.l.b16 %v1572
        %v1608 = vunpack.c.l.b16 %v1573
        %v1609 = vunpack.c.l.b16 %v1574
        %v1610 = vunpack.c.l.b16 %v1575
        %v1611 = vunpack.c.l.b16 %v1576
        %v1612 = vunpack.c.l.b16 %v1577
        %v1613 = vunpack.c.l.b16 %v1578
        %v1614 = vunpack.c.l.b16 %v1579
        %v1615 = vunpack.c.l.b16 %v1580
        %v1616 = vunpack.c.l.b16 %v1581
        %v1617 = vunpack.c.l.b16 %v1582
        %v1618 = vunpack.c.l.b16 %v1583
        %v1619 = vpack.c.b16 %v1604, %v1603
        %v1620 = vpack.c.b16 %v1606, %v1605
        %v1621 = vpack.c.b16 %v1608, %v1607
        %v1622 = vpack.c.b16 %v1610, %v1609
        %v1623 = vpack.c.b16 %v1612, %v1611
        %v1624 = vpack.c.b16 %v1614, %v1613
        %v1625 = vpack.c.b16 %v1616, %v1615
        %v1626 = vpack.c.b16 %v1618, %v1617
        %1635 = vmatpush.bf16.msra.mxu0 %v1626
        %1636 = vmatpush.bf16.msra.mxu0 %v1625
        %1637 = vmatpush.bf16.msra.mxu0 %v1624
        %1638 = vmatpush.bf16.msra.mxu0 %v1623
        %1639 = vmatpush.bf16.msra.mxu0 %v1622
        %1640 = vmatpush.bf16.msra.mxu0 %v1621
        %1641 = vmatpush.bf16.msra.mxu0 %v1620
        %1642 = vmatpush.bf16.msra.mxu0 %v1619
        %1643 = vmatmul.bf16.gmra.mxu0 %v1584
        %v1644 = vpop.f32.mrf.mxu0
        %v1645 = vadd.f32 0.0, %v1644
        %v1646 = vpop.f32.mrf.mxu0
        %v1647 = vadd.f32 0.0, %v1646
        %1648 = vmatmul.bf16.gmra.mxu0 %v1585
        %v1649 = vpop.f32.mrf.mxu0
        %v1650 = vadd.f32 0.0, %v1649
        %v1651 = vpop.f32.mrf.mxu0
        %v1652 = vadd.f32 0.0, %v1651
        %1653 = vmatmul.bf16.gmra.mxu0 %v1586
        %v1654 = vpop.f32.mrf.mxu0
        %v1655 = vadd.f32 0.0, %v1654
        %v1656 = vpop.f32.mrf.mxu0
        %v1657 = vadd.f32 0.0, %v1656
        %1658 = vdwg.mxu0
        %v1659 = vmul.f32 %v1142, %v1142
        %v1660 = vmul.f32 %v1144, %v1144
        %v1661 = vmul.f32 %v1147, %v1147
        %v1662 = vmul.f32 %v1149, %v1149
        %v1663 = vmul.f32 %v1152, %v1152
        %v1664 = vmul.f32 %v1154, %v1154
        %v1665 = vadd.f32 %v1659, %v1661
        %v1666 = vadd.f32 %v1665, %v1663
        %v1667 = vadd.f32 %v1660, %v1662
        %v1668 = vadd.f32 %v1667, %v1664
        %v1669 = vld [vmem:[#allocation14] sm:$0xf]
        %v1670 = vld [vmem:[#allocation14 + $0x4] sm:$0xf]
        %v1671 = vld [vmem:[#allocation14 + $0x8] sm:$0xf]
        %v1672 = vld [vmem:[#allocation14 + $0xc] sm:$0xf]
        %v1673 = vld [vmem:[#allocation14 + $0x10] sm:$0xf]
        %v1674 = vld [vmem:[#allocation14 + $0x14] sm:$0xf]
        %v1675 = vld [vmem:[#allocation14 + $0x18] sm:$0xf]
        %v1676 = vld [vmem:[#allocation14 + $0x1c] sm:$0xf]
        %v1677 = vld [vmem:[#allocation14 + $0x20] sm:$0xf]
        %v1678 = vld [vmem:[#allocation14 + $0x24] sm:$0xf]
        %v1679 = vld [vmem:[#allocation14 + $0x28] sm:$0xf]
        %v1680 = vld [vmem:[#allocation14 + $0x2c] sm:$0xf]
        %v1681 = vld [vmem:[#allocation14 + $0x30] sm:$0xf]
        %v1682 = vld [vmem:[#allocation14 + $0x34] sm:$0xf]
        %v1683 = vld [vmem:[#allocation14 + $0x38] sm:$0xf]
        %v1684 = vld [vmem:[#allocation14 + $0x3c] sm:$0xf]
        %v1685 = vpack.c.bf16 %v1668, %v1666
        %v1686 = vld [vmem:[%s13] sm:$0x1]
        %v1688 = vperm.slane %v1686, 0
        %v1706 = vunpack.c.l.b16 %v1669
        %v1707 = vunpack.c.l.b16 %v1670
        %v1708 = vunpack.c.l.b16 %v1671
        %v1709 = vunpack.c.l.b16 %v1672
        %v1710 = vunpack.c.l.b16 %v1673
        %v1711 = vunpack.c.l.b16 %v1674
        %v1712 = vunpack.c.l.b16 %v1675
        %v1713 = vunpack.c.l.b16 %v1676
        %v1714 = vunpack.c.l.b16 %v1677
        %v1715 = vunpack.c.l.b16 %v1678
        %v1716 = vunpack.c.l.b16 %v1679
        %v1717 = vunpack.c.l.b16 %v1680
        %v1718 = vunpack.c.l.b16 %v1681
        %v1719 = vunpack.c.l.b16 %v1682
        %v1720 = vunpack.c.l.b16 %v1683
        %v1721 = vunpack.c.l.b16 %v1684
        %v1722 = vpack.c.b16 %v1707, %v1706
        %v1723 = vpack.c.b16 %v1709, %v1708
        %v1724 = vpack.c.b16 %v1711, %v1710
        %v1725 = vpack.c.b16 %v1713, %v1712
        %v1726 = vpack.c.b16 %v1715, %v1714
        %v1727 = vpack.c.b16 %v1717, %v1716
        %v1728 = vpack.c.b16 %v1719, %v1718
        %v1729 = vpack.c.b16 %v1721, %v1720
        %1738 = vmatpush.bf16.msra.mxu0 %v1729
        %1739 = vmatpush.bf16.msra.mxu0 %v1728
        %1740 = vmatpush.bf16.msra.mxu0 %v1727
        %1741 = vmatpush.bf16.msra.mxu0 %v1726
        %1742 = vmatpush.bf16.msra.mxu0 %v1725
        %1743 = vmatpush.bf16.msra.mxu0 %v1724
        %1744 = vmatpush.bf16.msra.mxu0 %v1723
        %1745 = vmatpush.bf16.msra.mxu0 %v1722
        %1746 = vmatmul.bf16.gmra.mxu0 %v1685
        %v1747 = vpop.f32.mrf.mxu0
        %v1748 = vadd.f32 %v1688, %v1747
        %v1749 = vpop.f32.mrf.mxu0
        %v1750 = vadd.f32 %v1688, %v1749
        %1751 = vdwg.mxu0
        %v1752 = vadd.f32 %v1324, %v1748
        %v1753 = vadd.f32 %v1326, %v1750
        %v1754 = vld [vmem:[#allocation16] sm:$0xf]
        %v1755 = vld [vmem:[#allocation16 + $0x4] sm:$0xf]
        %v1756 = vld [vmem:[#allocation16 + $0x8] sm:$0xf]
        %v1757 = vld [vmem:[#allocation16 + $0xc] sm:$0xf]
        %v1758 = vld [vmem:[#allocation16 + $0x10] sm:$0xf]
        %v1759 = vld [vmem:[#allocation16 + $0x14] sm:$0xf]
        %v1760 = vld [vmem:[#allocation16 + $0x18] sm:$0xf]
        %v1761 = vld [vmem:[#allocation16 + $0x1c] sm:$0xf]
        %v1762 = vld [vmem:[#allocation16 + $0x20] sm:$0xf]
        %v1763 = vld [vmem:[#allocation16 + $0x24] sm:$0xf]
        %v1764 = vld [vmem:[#allocation16 + $0x28] sm:$0xf]
        %v1765 = vld [vmem:[#allocation16 + $0x2c] sm:$0xf]
        %v1766 = vld [vmem:[#allocation16 + $0x30] sm:$0xf]
        %v1767 = vld [vmem:[#allocation16 + $0x34] sm:$0xf]
        %v1768 = vld [vmem:[#allocation16 + $0x38] sm:$0xf]
        %v1769 = vld [vmem:[#allocation16 + $0x3c] sm:$0xf]
        %v1770 = vpack.c.bf16 %v1753, %v1752
        %v1787 = vunpack.c.l.b16 %v1754
        %v1788 = vunpack.c.l.b16 %v1755
        %v1789 = vunpack.c.l.b16 %v1756
        %v1790 = vunpack.c.l.b16 %v1757
        %v1791 = vunpack.c.l.b16 %v1758
        %v1792 = vunpack.c.l.b16 %v1759
        %v1793 = vunpack.c.l.b16 %v1760
        %v1794 = vunpack.c.l.b16 %v1761
        %v1795 = vunpack.c.l.b16 %v1762
        %v1796 = vunpack.c.l.b16 %v1763
        %v1797 = vunpack.c.l.b16 %v1764
        %v1798 = vunpack.c.l.b16 %v1765
        %v1799 = vunpack.c.l.b16 %v1766
        %v1800 = vunpack.c.l.b16 %v1767
        %v1801 = vunpack.c.l.b16 %v1768
        %v1802 = vunpack.c.l.b16 %v1769
        %v1803 = vpack.c.b16 %v1788, %v1787
        %v1804 = vpack.c.b16 %v1790, %v1789
        %v1805 = vpack.c.b16 %v1792, %v1791
        %v1806 = vpack.c.b16 %v1794, %v1793
        %v1807 = vpack.c.b16 %v1796, %v1795
        %v1808 = vpack.c.b16 %v1798, %v1797
        %v1809 = vpack.c.b16 %v1800, %v1799
        %v1810 = vpack.c.b16 %v1802, %v1801
        %1819 = vmatpush.bf16.msra.mxu0 %v1810
        %1820 = vmatpush.bf16.msra.mxu0 %v1809
        %1821 = vmatpush.bf16.msra.mxu0 %v1808
        %1822 = vmatpush.bf16.msra.mxu0 %v1807
        %1823 = vmatpush.bf16.msra.mxu0 %v1806
        %1824 = vmatpush.bf16.msra.mxu0 %v1805
        %1825 = vmatpush.bf16.msra.mxu0 %v1804
        %1826 = vmatpush.bf16.msra.mxu0 %v1803
        %1827 = vmatmul.bf16.gmra.mxu0 %v1770
        %v1828 = vpop.f32.mrf.mxu0
        %v1829 = vadd.f32 0.0, %v1828
        %v1830 = vpop.f32.mrf.mxu0
        %v1831 = vadd.f32 0.0, %v1830
        %1832 = vdwg.mxu0
        %v1833 = vmul.f32 %v1829, 0.25
        %v1834 = vmul.f32 %v1831, 0.25
        %v1835 = vsub.f32 %v1752, %v1833
        %v1836 = vsub.f32 %v1753, %v1834
        %v1837 = vmul.f32 %v1835, %v1835
        %v1838 = vmul.f32 %v1836, %v1836
        %v1839 = vpack.c.bf16 %v1838, %v1837
        %1840 = vmatpush.bf16.msra.mxu0 %v1810
        %1841 = vmatpush.bf16.msra.mxu0 %v1809
        %1842 = vmatpush.bf16.msra.mxu0 %v1808
        %1843 = vmatpush.bf16.msra.mxu0 %v1807
        %1844 = vmatpush.bf16.msra.mxu0 %v1806
        %1845 = vmatpush.bf16.msra.mxu0 %v1805
        %1846 = vmatpush.bf16.msra.mxu0 %v1804
        %1847 = vmatpush.bf16.msra.mxu0 %v1803
        %1848 = vmatmul.bf16.gmra.mxu0 %v1839
        %v1849 = vpop.f32.mrf.mxu0
        %v1850 = vadd.f32 0.0, %v1849
        %v1851 = vpop.f32.mrf.mxu0
        %v1852 = vadd.f32 0.0, %v1851
        %1853 = vdwg.mxu0
        %v1854 = vmul.f32 %v1850, 0.25
        %v1855 = vmul.f32 %v1852, 0.25
        %v1856 = vadd.f32 %v1854, 1e-05
        %v1857 = vadd.f32 %v1855, 1e-05
        %v1858 = vrsqrt.pop %v1856
        %v1859 = vmul.f32 %v1858, %v1856
        %v1860 = vmul.f32 %v1859, %v1858
        %v1861 = vmul.f32 0.5, %v1860
        %v1862 = vsub.f32 1.5, %v1861
        %v1863 = vmul.f32 %v1858, %v1862
        %vm1864 = vweird.f32 %v1856
        %vm1865 = vweird.f32 %v1858
        %vm1866 = vmor %vm1864, %vm1865
        %v1867 = vsel %vm1866, %v1858, %v1863
        %v1868 = vrsqrt.pop %v1857
        %v1869 = vmul.f32 %v1868, %v1857
        %v1870 = vmul.f32 %v1869, %v1868
        %v1871 = vmul.f32 0.5, %v1870
        %v1872 = vsub.f32 1.5, %v1871
        %v1873 = vmul.f32 %v1868, %v1872
        %vm1874 = vweird.f32 %v1857
        %vm1875 = vweird.f32 %v1868
        %vm1876 = vmor %vm1874, %vm1875
        %v1877 = vsel %vm1876, %v1868, %v1873
        %v1878 = vmul.f32 %v1835, %v1867
        %v1879 = vmul.f32 %v1836, %v1877
        %v1880 = vld [vmem:[%s14] sm:$0x1]
        %v1882 = vperm.slane %v1880, 0
        %v1884 = vmul.f32 %v1878, %v1882
        %v1885 = vmul.f32 %v1879, %v1882
        %v1886 = vld [vmem:[%s15] sm:$0x1]
        %v1888 = vperm.slane %v1886, 0
        %v1890 = vadd.f32 %v1884, %v1888
        %v1891 = vadd.f32 %v1885, %v1888
        %v1908 = vunpack.c.l.b16 %v1543
        %v1909 = vunpack.c.l.b16 %v1544
        %v1910 = vunpack.c.l.b16 %v1545
        %v1911 = vunpack.c.l.b16 %v1546
        %v1912 = vunpack.c.l.b16 %v1547
        %v1913 = vunpack.c.l.b16 %v1548
        %v1914 = vunpack.c.l.b16 %v1549
        %v1915 = vunpack.c.l.b16 %v1550
        %v1916 = vunpack.c.l.b16 %v1551
        %v1917 = vunpack.c.l.b16 %v1552
        %v1918 = vunpack.c.l.b16 %v1553
        %v1919 = vunpack.c.l.b16 %v1554
        %v1920 = vunpack.c.l.b16 %v1555
        %v1921 = vunpack.c.l.b16 %v1556
        %v1922 = vunpack.c.l.b16 %v1557
        %v1923 = vunpack.c.l.b16 %v1558
        %v1924 = vpack.c.b16 %v1909, %v1908
        %v1925 = vpack.c.b16 %v1911, %v1910
        %v1926 = vpack.c.b16 %v1913, %v1912
        %v1927 = vpack.c.b16 %v1915, %v1914
        %v1928 = vpack.c.b16 %v1917, %v1916
        %v1929 = vpack.c.b16 %v1919, %v1918
        %v1930 = vpack.c.b16 %v1921, %v1920
        %v1931 = vpack.c.b16 %v1923, %v1922
        %1940 = vmatpush.bf16.msra.mxu0 %v1931
        %1941 = vmatpush.bf16.msra.mxu0 %v1930
        %1942 = vmatpush.bf16.msra.mxu0 %v1929
        %1943 = vmatpush.bf16.msra.mxu0 %v1928
        %1944 = vmatpush.bf16.msra.mxu0 %v1927
        %1945 = vmatpush.bf16.msra.mxu0 %v1926
        %1946 = vmatpush.bf16.msra.mxu0 %v1925
        %1947 = vmatpush.bf16.msra.mxu0 %v1924
        %1948 = vmatmul.bf16.gmra.mxu0 %v1559
        %v1949 = vpop.f32.mrf.mxu0
        %v1950 = vadd.f32 %v1645, %v1949
        %v1951 = vpop.f32.mrf.mxu0
        %v1952 = vadd.f32 %v1647, %v1951
        %1953 = vmatmul.bf16.gmra.mxu0 %v1560
        %v1954 = vpop.f32.mrf.mxu0
        %v1955 = vadd.f32 %v1650, %v1954
        %v1956 = vpop.f32.mrf.mxu0
        %v1957 = vadd.f32 %v1652, %v1956
        %1958 = vmatmul.bf16.gmra.mxu0 %v1561
        %v1959 = vpop.f32.mrf.mxu0
        %v1960 = vadd.f32 %v1655, %v1959
        %v1961 = vpop.f32.mrf.mxu0
        %v1962 = vadd.f32 %v1657, %v1961
        %1963 = vdwg.mxu0
        %v1964 = vmul.f32 %v1950, %v1950
        %v1965 = vmul.f32 %v1952, %v1952
        %v1966 = vmul.f32 %v1955, %v1955
        %v1967 = vmul.f32 %v1957, %v1957
        %v1968 = vmul.f32 %v1960, %v1960
        %v1969 = vmul.f32 %v1962, %v1962
        %v1970 = vadd.f32 %v1964, %v1966
        %v1971 = vadd.f32 %v1970, %v1968
        %v1972 = vadd.f32 %v1965, %v1967
        %v1973 = vadd.f32 %v1972, %v1969
        %v1974 = vld [vmem:[#allocation17] sm:$0xf]
        %v1975 = vld [vmem:[#allocation17 + $0x4] sm:$0xf]
        %v1976 = vld [vmem:[#allocation17 + $0x8] sm:$0xf]
        %v1977 = vld [vmem:[#allocation17 + $0xc] sm:$0xf]
        %v1978 = vld [vmem:[#allocation17 + $0x10] sm:$0xf]
        %v1979 = vld [vmem:[#allocation17 + $0x14] sm:$0xf]
        %v1980 = vld [vmem:[#allocation17 + $0x18] sm:$0xf]
        %v1981 = vld [vmem:[#allocation17 + $0x1c] sm:$0xf]
        %v1982 = vld [vmem:[#allocation17 + $0x20] sm:$0xf]
        %v1983 = vld [vmem:[#allocation17 + $0x24] sm:$0xf]
        %v1984 = vld [vmem:[#allocation17 + $0x28] sm:$0xf]
        %v1985 = vld [vmem:[#allocation17 + $0x2c] sm:$0xf]
        %v1986 = vld [vmem:[#allocation17 + $0x30] sm:$0xf]
        %v1987 = vld [vmem:[#allocation17 + $0x34] sm:$0xf]
        %v1988 = vld [vmem:[#allocation17 + $0x38] sm:$0xf]
        %v1989 = vld [vmem:[#allocation17 + $0x3c] sm:$0xf]
        %v1990 = vpack.c.bf16 %v1973, %v1971
        %v2007 = vunpack.c.l.b16 %v1974
        %v2008 = vunpack.c.l.b16 %v1975
        %v2009 = vunpack.c.l.b16 %v1976
        %v2010 = vunpack.c.l.b16 %v1977
        %v2011 = vunpack.c.l.b16 %v1978
        %v2012 = vunpack.c.l.b16 %v1979
        %v2013 = vunpack.c.l.b16 %v1980
        %v2014 = vunpack.c.l.b16 %v1981
        %v2015 = vunpack.c.l.b16 %v1982
        %v2016 = vunpack.c.l.b16 %v1983
        %v2017 = vunpack.c.l.b16 %v1984
        %v2018 = vunpack.c.l.b16 %v1985
        %v2019 = vunpack.c.l.b16 %v1986
        %v2020 = vunpack.c.l.b16 %v1987
        %v2021 = vunpack.c.l.b16 %v1988
        %v2022 = vunpack.c.l.b16 %v1989
        %v2023 = vpack.c.b16 %v2008, %v2007
        %v2024 = vpack.c.b16 %v2010, %v2009
        %v2025 = vpack.c.b16 %v2012, %v2011
        %v2026 = vpack.c.b16 %v2014, %v2013
        %v2027 = vpack.c.b16 %v2016, %v2015
        %v2028 = vpack.c.b16 %v2018, %v2017
        %v2029 = vpack.c.b16 %v2020, %v2019
        %v2030 = vpack.c.b16 %v2022, %v2021
        %2039 = vmatpush.bf16.msra.mxu0 %v2030
        %2040 = vmatpush.bf16.msra.mxu0 %v2029
        %2041 = vmatpush.bf16.msra.mxu0 %v2028
        %2042 = vmatpush.bf16.msra.mxu0 %v2027
        %2043 = vmatpush.bf16.msra.mxu0 %v2026
        %2044 = vmatpush.bf16.msra.mxu0 %v2025
        %2045 = vmatpush.bf16.msra.mxu0 %v2024
        %2046 = vmatpush.bf16.msra.mxu0 %v2023
        %2047 = vmatmul.bf16.gmra.mxu0 %v1990
        %v2048 = vpop.f32.mrf.mxu0
        %v2049 = vadd.f32 0.0, %v2048
        %v2050 = vpop.f32.mrf.mxu0
        %v2051 = vadd.f32 0.0, %v2050
        %2052 = vdwg.mxu0
        %v2053 = vmul.f32 %v2049, 0.25
        %v2054 = vmul.f32 %v2051, 0.25
        %v2055 = vadd.f32 %v2053, 1e-05
        %v2056 = vadd.f32 %v2054, 1e-05
        %v2057 = vrsqrt.pop %v2055
        %v2058 = vmul.f32 %v2057, %v2055
        %v2059 = vmul.f32 %v2058, %v2057
        %v2060 = vmul.f32 0.5, %v2059
        %v2061 = vsub.f32 1.5, %v2060
        %v2062 = vmul.f32 %v2057, %v2061
        %vm2063 = vweird.f32 %v2055
        %vm2064 = vweird.f32 %v2057
        %vm2065 = vmor %vm2063, %vm2064
        %v2066 = vsel %vm2065, %v2057, %v2062
        %v2067 = vrsqrt.pop %v2056
        %v2068 = vmul.f32 %v2067, %v2056
        %v2069 = vmul.f32 %v2068, %v2067
        %v2070 = vmul.f32 0.5, %v2069
        %v2071 = vsub.f32 1.5, %v2070
        %v2072 = vmul.f32 %v2067, %v2071
        %vm2073 = vweird.f32 %v2056
        %vm2074 = vweird.f32 %v2067
        %vm2075 = vmor %vm2073, %vm2074
        %v2076 = vsel %vm2075, %v2067, %v2072
        %v2077 = vld [vmem:[%s16] sm:$0x1]
        %v2079 = vperm.slane %v2077, 0
        %v2081 = vmul.f32 %v2066, %v2079
        %v2082 = vmul.f32 %v2076, %v2079
        %v2083 = vadd.f32 %v864, %v1890
        %v2084 = vadd.f32 %v865, %v1891
        %2085 = vst [vmem:[%s852] sm:$0xff] %v2083
        %2086 = vst [vmem:[%s852 + $0x8] sm:$0xff] %v2084
        %v2087 = vmul.f32 %v1950, %v2081
        %v2088 = vmul.f32 %v1952, %v2082
        %v2089 = vmul.f32 %v1955, %v2081
        %v2090 = vmul.f32 %v1957, %v2082
        %v2091 = vmul.f32 %v1960, %v2081
        %v2092 = vmul.f32 %v1962, %v2082
        %v2093 = vadd.f32 %v866, %v2087
        %v2094 = vadd.f32 %v867, %v2088
        %v2095 = vadd.f32 %v868, %v2089
        %v2096 = vadd.f32 %v869, %v2090
        %v2097 = vadd.f32 %v870, %v2091
        %v2098 = vadd.f32 %v871, %v2092
        %2099 = vst [vmem:[%s859] sm:$0xff] %v2093
        %2100 = vst [vmem:[%s859 + $0x8] sm:$0xff] %v2094
        %2101 = vst [vmem:[%s859 + $0x10] sm:$0xff] %v2095
        %2102 = vst [vmem:[%s859 + $0x18] sm:$0xff] %v2096
        %2103 = vst [vmem:[%s859 + $0x20] sm:$0xff] %v2097
        %2104 = vst [vmem:[%s859 + $0x28] sm:$0xff] %v2098
        %s2105 = sand.u32 %s465, 1
        %s2106 = scalar_lea.sflag [#allocation4], %s2105
        %s2107 = sand.u32 %s465, 1
        %s2108 = smul.addr %s2107, 16
        %s2109 = scalar_lea.vmem [#allocation19], %s2108
        %s2110 = sand.u32 %s491, 1
        %s2111 = scalar_lea.sflag [#allocation21], %s2110
        %s2112 = sand.u32 %s491, 1
        %s2113 = smul.addr %s2112, 48
        %s2114 = scalar_lea.vmem [#allocation20], %s2113
        // Predicated region
        $region137: #{tpu_custom_call.1} parent=95 // pred_check
          %p2115 = pneg %p475
        $region138: #{tpu_custom_call.1} parent=95 // pred_check_branch
          %2117 = sbr.rel (%p2115) target = $region140
        $region139: #{tpu_custom_call.1} parent=95 // pred_region
          %s2118 = smul.u32 2, %s48
          %2120 = vsyncadd %s2106, 0
          %s2121 = smul.addr %s2118, 8
          %s2122 = scalar_lea.hbm %s19, %s2121
          %s2123 = sshll.u32 %s2109, 4
          %s2124 = int_to_ptr.vmem [resolvable:$true] %s2123
          %s2125 = sshll.u32 %s2122, 4
          %s2126 = int_to_ptr.hbm [resolvable:$true] %s2125
          %2131 = dma.vmem_to_hbm [thread:$0]  %s2124, 256, %s2126, %s2106, 128, 128, 8
        $region140: #{tpu_custom_call.1} parent=95 // pred_fallthru
          _
        // Predicated region
        $region141: #{tpu_custom_call.1} parent=95 // pred_check
          %p2132 = pneg %p501
        $region142: #{tpu_custom_call.1} parent=95 // pred_check_branch
          %2134 = sbr.rel (%p2132) target = $region144
        $region143: #{tpu_custom_call.1} parent=95 // pred_region
          #allocation25 [shape = 'u32[6]{0}', space=smem, size = 0x18, scoped, tag = 'DMA stride descriptor']
          %s2135 = smul.u32 2, %s48
          %2137 = vsyncadd %s2111, 0
          %s2138 = smul.addr %s2135, 8
          %s2139 = scalar_lea.hbm %s20, %s2138
          %s2141 = sshll.u32 1, 14
          %s2142 = sxor.u32 4294967295, %s2141
          %s2145 = sshll.u32 7, 18
          %s2146 = sxor.u32 4294967295, %s2145
          %s2147 = sand.u32 0, %s2146
          %s2149 = sor.u32 %s2147, 0
          %s2150 = sshll.u32 %s2114, 4
          %s2151 = int_to_ptr.vmem [resolvable:$true] %s2150
          %s2152 = sshll.u32 %s2139, 4
          %s2153 = int_to_ptr.hbm [resolvable:$true] %s2152
          %2159 = sst [smem:[#allocation25]] 256
          %s2160 = scalar_lea.smem [#allocation25], 1
          %2161 = sst [smem:[%s2160]] 512
          %s2162 = scalar_lea.smem [#allocation25], 2
          %2163 = sst [smem:[%s2162]] 2
          %s2164 = scalar_lea.smem [#allocation25], 3
          %2165 = sst [smem:[%s2164]] 128
          %s2166 = scalar_lea.smem [#allocation25], 4
          %2167 = sst [smem:[%s2166]] 128
          %s2168 = scalar_lea.smem [#allocation25], 5
          %2169 = sst [smem:[%s2168]] 8
          %2171 = dma.general %s2151, 768, %s2153, %s2111, [#allocation24], [#allocation25], %s2149, 0
        $region144: #{tpu_custom_call.1} parent=95 // pred_fallthru
          _
      $region96: #{tpu_custom_call.1} parent=5 // pred_fallthru
        _
      %p2172 = scmp.le.s32.totalorder 2, %s43
      // Predicated region
      $region145: #{tpu_custom_call.1} parent=5 // pred_check
        %p2173 = pneg %p2172
      $region146: #{tpu_custom_call.1} parent=5 // pred_check_branch
        %2175 = sbr.rel (%p2173) target = $region148
      $region147: #{tpu_custom_call.1} parent=5 // pred_region
        %s2176 = ssub.s32 %s43, 2
        // Predicated region
        $region149: #{tpu_custom_call.1} parent=147 // pred_check
          %p2177 = pneg %p481
        $region150: #{tpu_custom_call.1} parent=147 // pred_check_branch
          %2179 = sbr.rel (%p2177) target = $region152
        $region151: #{tpu_custom_call.1} parent=147 // pred_region
          %s2180 = sand.u32 %s466, 1
          %s2181 = scalar_lea.sflag [#allocation4], %s2180
          %s2182 = sand.u32 %s466, 1
          %s2183 = smul.addr %s2182, 16
          %s2184 = scalar_lea.vmem [#allocation19], %s2183
          %2186 = dma.done %s2181, 256
        $region152: #{tpu_custom_call.1} parent=147 // pred_fallthru
          _
        // Predicated region
        $region153: #{tpu_custom_call.1} parent=147 // pred_check
          %p2187 = pneg %p507
        $region154: #{tpu_custom_call.1} parent=147 // pred_check_branch
          %2189 = sbr.rel (%p2187) target = $region156
        $region155: #{tpu_custom_call.1} parent=147 // pred_region
          %s2190 = sand.u32 %s492, 1
          %s2191 = scalar_lea.sflag [#allocation21], %s2190
          %s2192 = sand.u32 %s492, 1
          %s2193 = smul.addr %s2192, 48
          %s2194 = scalar_lea.vmem [#allocation20], %s2193
          %2196 = dma.done %s2191, 768
        $region156: #{tpu_custom_call.1} parent=147 // pred_fallthru
          _
      $region148: #{tpu_custom_call.1} parent=5 // pred_fallthru
        _
    $region6: #{tpu_custom_call.1} parent=1 // loop_footer
      %s47 = sadd.s32 1, %s43
    $region7: #{tpu_custom_call.1} parent=1 // loop_footer_branch
      %42 = sbr.rel target = $region3
    $region8: #{tpu_custom_call.1} parent=1 // loop_exit
      _
    %2197 = vsyncpa [#allocation3], 1
    %s2198 = scalar_lea.sflag [#allocation3], 1
    %2199 = vsyncpa %s2198, 1
    %2200 = vsyncpa [#allocation6], 1
    %s2201 = scalar_lea.sflag [#allocation6], 1
    %2202 = vsyncpa %s2201, 1
    %2203 = vsyncpa [#allocation9], 1
    %2204 = vsyncpa [#allocation12], 1
    %2205 = vsyncpa [#allocation15], 1
    %2206 = vsyncpa [#allocation18], 1
    %2207 = vsyncpa [#allocation4], 1
    %s2208 = scalar_lea.sflag [#allocation4], 1
    %2209 = vsyncpa %s2208, 1
    %2210 = vsyncpa [#allocation21], 1
    %s2211 = scalar_lea.sflag [#allocation21], 1
    %2212 = vsyncpa %s2211, 1

// kernel: tpu_custom_call.1
$region0: #{tpu_custom_call.1}
  #allocation0 [shape = 'u32[]', space=smem, size = 0x4, offset = 0x4, fixed_abs, tag = 'smem constant byte address 0x4 - core index']
  #allocation1 [shape = 'u32[72,128]{1,0:T(1,128)}', space=vmem, size = 0x9000, scoped, tag = 'internal scratch']
  #allocation22 [shape = 's32[]', space=sflag, size = 0x4, offset = 0, fixed_abs, tag = 'sflag constant byte address 0x0 - dummy sync flag']
  #allocation24 [shape = 's32[]', space=sflag, size = 0x4, offset = 0, fixed_abs, tag = 'sflag constant byte address 0x0 - dummy sync flag']
  %s0 = inlined_call_operand.hbm [shape: f32[32,128], index: 0, kind: input, shape index: {}, may-alias: {0,19}]
  %s1 = inlined_call_operand.hbm [shape: f32[3,32,128], index: 1, kind: input, shape index: {}, may-alias: {1,20}]
  %s2 = inlined_call_operand.vmem [shape: bf16[128,256], index: 2, kind: input, shape index: {}]
  %s3 = inlined_call_operand.vmem [shape: f32[1,256], index: 3, kind: input, shape index: {}]
  %s4 = inlined_call_operand.vmem [shape: bf16[128,128], index: 4, kind: input, shape index: {}]
  %s5 = inlined_call_operand.vmem [shape: f32[1,128], index: 5, kind: input, shape index: {}]
  %s6 = inlined_call_operand.hbm [shape: bf16[128,128], index: 6, kind: input, shape index: {}]
  %s7 = inlined_call_operand.vmem [shape: f32[1,128], index: 7, kind: input, shape index: {}]
  %s8 = inlined_call_operand.hbm [shape: bf16[128,256], index: 8, kind: input, shape index: {}]
  %s9 = inlined_call_operand.hbm [shape: bf16[128,128], index: 9, kind: input, shape index: {}]
  %s10 = inlined_call_operand.hbm [shape: bf16[128,128], index: 10, kind: input, shape index: {}]
  %s11 = inlined_call_operand.hbm [shape: bf16[128,128], index: 11, kind: input, shape index: {}]
  %s12 = inlined_call_operand.hbm [shape: bf16[128,128], index: 12, kind: input, shape index: {}]
  %s13 = inlined_call_operand.vmem [shape: f32[1,128], index: 13, kind: input, shape index: {}]
  %s14 = inlined_call_operand.vmem [shape: f32[1,128], index: 14, kind: input, shape index: {}]
  %s15 = inlined_call_operand.vmem [shape: f32[1,128], index: 15, kind: input, shape index: {}]
  %s16 = inlined_call_operand.vmem [shape: f32[1,128], index: 16, kind: input, shape index: {}]
  %s17 = inlined_call_operand.hbm [shape: bf16[128,128], index: 17, kind: input, shape index: {}]
  %s18 = inlined_call_operand.hbm [shape: bf16[128,128], index: 18, kind: input, shape index: {}]
  %s19 = inlined_call_operand.hbm [shape: f32[32,128], index: 19, kind: output, shape index: {0}, may-alias: {0,19}]
  %s20 = inlined_call_operand.hbm [shape: f32[3,32,128], index: 20, kind: output, shape index: {1}, may-alias: {1,20}]
  %21 = xla_tuple %s19, %s20
  %s22 = sld [smem:[#allocation0]]
  $region157: #{tpu_custom_call.1} parent=0
    _
  %s24 = ssub.s32 1, %s22
  %s25 = scalar_select 0, %s24, %s22
  $region1: #{tpu_custom_call.1} parent=0
    #allocation2 [shape = 'u8[16384]{0}', space=vmem, size = 0x4000, scoped, tag = 'input window, operand 0']
    #allocation3 [shape = 's32[2]{0}', space=sflag, size = 0x8, scoped, tag = 'scoped memory for tpu_custom_call.1']
    #allocation4 [shape = 's32[2]{0}', space=sflag, size = 0x8, scoped, tag = 'scoped memory for tpu_custom_call.1']
    #allocation5 [shape = 'u8[49152]{0}', space=vmem, size = 0xc000, scoped, tag = 'input window, operand 1']
    #allocation6 [shape = 's32[2]{0}', space=sflag, size = 0x8, scoped, tag = 'scoped memory for tpu_custom_call.1']
    #allocation7 [shape = 'u8[32768]{0}', space=vmem, size = 0x8000, scoped, tag = 'input window, operand 6, single buffered']
    #allocation8 [shape = 'u8[65536]{0}', space=vmem, size = 0x10000, scoped, tag = 'input window, operand 8, single buffered']
    #allocation9 [shape = 's32[1]{0}', space=sflag, size = 0x4, scoped, tag = 'scoped memory for tpu_custom_call.1']
    #allocation10 [shape = 'u8[32768]{0}', space=vmem, size = 0x8000, scoped, tag = 'input window, operand 9, single buffered']
    #allocation11 [shape = 'u8[32768]{0}', space=vmem, size = 0x8000, scoped, tag = 'input window, operand 10, single buffered']
    #allocation12 [shape = 's32[1]{0}', space=sflag, size = 0x4, scoped, tag = 'scoped memory for tpu_custom_call.1']
    #allocation13 [shape = 'u8[32768]{0}', space=vmem, size = 0x8000, scoped, tag = 'input window, operand 11, single buffered']
    #allocation14 [shape = 'u8[32768]{0}', space=vmem, size = 0x8000, scoped, tag = 'input window, operand 12, single buffered']
    #allocation15 [shape = 's32[1]{0}', space=sflag, size = 0x4, scoped, tag = 'scoped memory for tpu_custom_call.1']
    #allocation16 [shape = 'u8[32768]{0}', space=vmem, size = 0x8000, scoped, tag = 'input window, operand 17, single buffered']
    #allocation17 [shape = 'u8[32768]{0}', space=vmem, size = 0x8000, scoped, tag = 'input window, operand 18, single buffered']
    #allocation18 [shape = 's32[1]{0}', space=sflag, size = 0x4, scoped, tag = 'scoped memory for tpu_custom_call.1']
    #allocation19 [shape = 'u8[16384]{0}', space=vmem, size = 0x4000, scoped, tag = 'output window, operand 0']
    #allocation20 [shape = 'u8[49152]{0}', space=vmem, size = 0xc000, scoped, tag = 'output window, operand 1']
    #allocation21 [shape = 's32[2]{0}', space=sflag, size = 0x8, scoped, tag = 'scoped memory for tpu_custom_call.1']
    %26 = vsyncpa [#allocation3], 0
    %s27 = scalar_lea.sflag [#allocation3], 1
    %28 = vsyncpa %s27, 0
    %29 = vsyncpa [#allocation6], 0
    %s30 = scalar_lea.sflag [#allocation6], 1
    %31 = vsyncpa %s30, 0
    %32 = vsyncpa [#allocation9], 0
    %33 = vsyncpa [#allocation12], 0
    %34 = vsyncpa [#allocation15], 0
    %35 = vsyncpa [#allocation18], 0
    %36 = vsyncpa [#allocation4], 0
    %s37 = scalar_lea.sflag [#allocation4], 1
    %38 = vsyncpa %s37, 0
    %39 = vsyncpa [#allocation21], 0
    %s40 = scalar_lea.sflag [#allocation21], 1
    %41 = vsyncpa %s40, 0
    loop: start=0, step=1, limit=4
    $region2: #{tpu_custom_call.1} parent=1 // loop_pre_header
      _
    $region3: #{tpu_custom_call.1} parent=1 // loop_header
      %s43 = sphi 0, %s47
      %p44 = scmp.ge.s32.totalorder %s43, 4
      %s53 = sphi 0, %s55
      %s56 = sphi 0, %s53
      %s57 = sphi 0, %s56
      %s73 = sphi 0, %s57
      %s79 = sphi 0, %s81
      %s82 = sphi 0, %s79
      %s83 = sphi 0, %s82
      %s99 = sphi 0, %s83
      %s103 = sphi 0, %s103
      %s105 = sphi 0, %s103
      %s106 = sphi 0, %s105
      %s120 = sphi 0, %s106
      %s124 = sphi 0, %s124
      %s126 = sphi 0, %s124
      %s127 = sphi 0, %s126
      %s141 = sphi 0, %s127
      %s145 = sphi 0, %s145
      %s147 = sphi 0, %s145
      %s148 = sphi 0, %s147
      %s162 = sphi 0, %s148
      %s166 = sphi 0, %s166
      %s168 = sphi 0, %s166
      %s169 = sphi 0, %s168
      %s183 = sphi 0, %s169
      %s187 = sphi 0, %s187
      %s189 = sphi 0, %s187
      %s190 = sphi 0, %s189
      %s204 = sphi 0, %s190
      %s208 = sphi 0, %s208
      %s210 = sphi 0, %s208
      %s211 = sphi 0, %s210
      %s225 = sphi 0, %s211
      %s229 = sphi 0, %s229
      %s231 = sphi 0, %s229
      %s232 = sphi 0, %s231
      %s246 = sphi 0, %s232
      %s250 = sphi 0, %s250
      %s252 = sphi 0, %s250
      %s253 = sphi 0, %s252
      %s267 = sphi 0, %s253
      %s271 = sphi 0, %s271
      %s273 = sphi 0, %s271
      %s274 = sphi 0, %s273
      %s288 = sphi 0, %s274
      %s292 = sphi 0, %s292
      %s294 = sphi 0, %s292
      %s295 = sphi 0, %s294
      %s309 = sphi 0, %s295
      %s313 = sphi 0, %s313
      %s315 = sphi 0, %s313
      %s316 = sphi 0, %s315
      %s330 = sphi 0, %s316
      %s334 = sphi 0, %s334
      %s336 = sphi 0, %s334
      %s337 = sphi 0, %s336
      %s351 = sphi 0, %s337
      %s355 = sphi 0, %s355
      %s357 = sphi 0, %s355
      %s358 = sphi 0, %s357
      %s372 = sphi 0, %s358
      %s376 = sphi 0, %s376
      %s378 = sphi 0, %s376
      %s379 = sphi 0, %s378
      %s393 = sphi 0, %s379
      %s397 = sphi 0, %s397
      %s399 = sphi 0, %s397
      %s400 = sphi 0, %s399
      %s414 = sphi 0, %s400
      %s418 = sphi 0, %s418
      %s420 = sphi 0, %s418
      %s421 = sphi 0, %s420
      %s435 = sphi 0, %s421
      %s439 = sphi 0, %s439
      %s441 = sphi 0, %s439
      %s442 = sphi 0, %s441
      %s456 = sphi 0, %s442
      %s462 = sphi 0, %s464
      %s465 = sphi 0, %s462
      %s466 = sphi 0, %s465
      %s482 = sphi 0, %s466
      %s488 = sphi 0, %s490
      %s491 = sphi 0, %s488
      %s492 = sphi 0, %s491
      %s508 = sphi 0, %s492
    $region4: #{tpu_custom_call.1} parent=1 // loop_header_branch
      %46 = sbr.rel (%p44) target = $region8
    $region5: #{tpu_custom_call.1} parent=1 // loop_body
      %s48 = ssub.s32 %s43, 1
      %s49 = ssub.s32 %s43, 2
      %s50 = sadd.s32 %s43, 1
      %s51 = ssub.s32 %s43, %s50
      %p52 = scmp.eq.s32.totalorder %s51, 0
      %s54 = sadd.s32 %s53, 1
      %s55 = scalar_select %p52, %s53, %s54
      %p58 = pneg %p52
      %p59 = scmp.eq.s32.totalorder %s43, 1
      %p60 = por %p58, %p59
      %p61 = scmp.ne.s32.totalorder %s53, %s56
      %p62 = scmp.eq.s32.totalorder %s43, 0
      %p63 = por %p61, %p62
      %p64 = scmp.ne.s32.totalorder %s53, %s56
      %p65 = scmp.eq.s32.totalorder %s48, 1
      %p66 = por %p64, %p65
      %p67 = scmp.ne.s32.totalorder %s56, %s57
      %p68 = scmp.eq.s32.totalorder %s48, 0
      %p69 = por %p67, %p68
      %p70 = scmp.ne.s32.totalorder %s56, %s57
      %p71 = scmp.eq.s32.totalorder %s49, 1
      %p72 = por %p70, %p71
      %p74 = scmp.ne.s32.totalorder %s57, %s73
      %p75 = scmp.eq.s32.totalorder %s49, 0
      %p76 = por %p74, %p75
      %s77 = ssub.s32 %s43, %s50
      %p78 = scmp.eq.s32.totalorder %s77, 0
      %s80 = sadd.s32 %s79, 1
      %s81 = scalar_select %p78, %s79, %s80
      %p84 = pneg %p78
      %p85 = scmp.eq.s32.totalorder %s43, 1
      %p86 = por %p84, %p85
      %p87 = scmp.ne.s32.totalorder %s79, %s82
      %p88 = scmp.eq.s32.totalorder %s43, 0
      %p89 = por %p87, %p88
      %p90 = scmp.ne.s32.totalorder %s79, %s82
      %p91 = scmp.eq.s32.totalorder %s48, 1
      %p92 = por %p90, %p91
      %p93 = scmp.ne.s32.totalorder %s82, %s83
      %p94 = scmp.eq.s32.totalorder %s48, 0
      %p95 = por %p93, %p94
      %p96 = scmp.ne.s32.totalorder %s82, %s83
      %p97 = scmp.eq.s32.totalorder %s49, 1
      %p98 = por %p96, %p97
      %p100 = scmp.ne.s32.totalorder %s83, %s99
      %p101 = scmp.eq.s32.totalorder %s49, 0
      %p102 = por %p100, %p101
      %s104 = sadd.s32 %s103, 1
      %p107 = scmp.eq.s32.totalorder %s43, 1
      %p108 = scmp.ne.s32.totalorder %s103, %s105
      %p109 = scmp.eq.s32.totalorder %s43, 0
      %p110 = por %p108, %p109
      %p111 = scmp.ne.s32.totalorder %s103, %s105
      %p112 = scmp.eq.s32.totalorder %s48, 1
      %p113 = por %p111, %p112
      %p114 = scmp.ne.s32.totalorder %s105, %s106
      %p115 = scmp.eq.s32.totalorder %s48, 0
      %p116 = por %p114, %p115
      %p117 = scmp.ne.s32.totalorder %s105, %s106
      %p118 = scmp.eq.s32.totalorder %s49, 1
      %p119 = por %p117, %p118
      %p121 = scmp.ne.s32.totalorder %s106, %s120
      %p122 = scmp.eq.s32.totalorder %s49, 0
      %p123 = por %p121, %p122
      %s125 = sadd.s32 %s124, 1
      %p128 = scmp.eq.s32.totalorder %s43, 1
      %p129 = scmp.ne.s32.totalorder %s124, %s126
      %p130 = scmp.eq.s32.totalorder %s43, 0
      %p131 = por %p129, %p130
      %p132 = scmp.ne.s32.totalorder %s124, %s126
      %p133 = scmp.eq.s32.totalorder %s48, 1
      %p134 = por %p132, %p133
      %p135 = scmp.ne.s32.totalorder %s126, %s127
      %p136 = scmp.eq.s32.totalorder %s48, 0
      %p137 = por %p135, %p136
      %p138 = scmp.ne.s32.totalorder %s126, %s127
      %p139 = scmp.eq.s32.totalorder %s49, 1
      %p140 = por %p138, %p139
      %p142 = scmp.ne.s32.totalorder %s127, %s141
      %p143 = scmp.eq.s32.totalorder %s49, 0
      %p144 = por %p142, %p143
      %s146 = sadd.s32 %s145, 1
      %p149 = scmp.eq.s32.totalorder %s43, 1
      %p150 = scmp.ne.s32.totalorder %s145, %s147
      %p151 = scmp.eq.s32.totalorder %s43, 0
      %p152 = por %p150, %p151
      %p153 = scmp.ne.s32.totalorder %s145, %s147
      %p154 = scmp.eq.s32.totalorder %s48, 1
      %p155 = por %p153, %p154
      %p156 = scmp.ne.s32.totalorder %s147, %s148
      %p157 = scmp.eq.s32.totalorder %s48, 0
      %p158 = por %p156, %p157
      %p159 = scmp.ne.s32.totalorder %s147, %s148
      %p160 = scmp.eq.s32.totalorder %s49, 1
      %p161 = por %p159, %p160
      %p163 = scmp.ne.s32.totalorder %s148, %s162
      %p164 = scmp.eq.s32.totalorder %s49, 0
      %p165 = por %p163, %p164
      %s167 = sadd.s32 %s166, 1
      %p170 = scmp.eq.s32.totalorder %s43, 1
      %p171 = scmp.ne.s32.totalorder %s166, %s168
      %p172 = scmp.eq.s32.totalorder %s43, 0
      %p173 = por %p171, %p172
      %p174 = scmp.ne.s32.totalorder %s166, %s168
      %p175 = scmp.eq.s32.totalorder %s48, 1
      %p176 = por %p174, %p175
      %p177 = scmp.ne.s32.totalorder %s168, %s169
      %p178 = scmp.eq.s32.totalorder %s48, 0
      %p179 = por %p177, %p178
      %p180 = scmp.ne.s32.totalorder %s168, %s169
      %p181 = scmp.eq.s32.totalorder %s49, 1
      %p182 = por %p180, %p181
      %p184 = scmp.ne.s32.totalorder %s169, %s183
      %p185 = scmp.eq.s32.totalorder %s49, 0
      %p186 = por %p184, %p185
      %s188 = sadd.s32 %s187, 1
      %p191 = scmp.eq.s32.totalorder %s43, 1
      %p192 = scmp.ne.s32.totalorder %s187, %s189
      %p193 = scmp.eq.s32.totalorder %s43, 0
      %p194 = por %p192, %p193
      %p195 = scmp.ne.s32.totalorder %s187, %s189
      %p196 = scmp.eq.s32.totalorder %s48, 1
      %p197 = por %p195, %p196
      %p198 = scmp.ne.s32.totalorder %s189, %s190
      %p199 = scmp.eq.s32.totalorder %s48, 0
      %p200 = por %p198, %p199
      %p201 = scmp.ne.s32.totalorder %s189, %s190
      %p202 = scmp.eq.s32.totalorder %s49, 1
      %p203 = por %p201, %p202
      %p205 = scmp.ne.s32.totalorder %s190, %s204
      %p206 = scmp.eq.s32.totalorder %s49, 0
      %p207 = por %p205, %p206
      %s209 = sadd.s32 %s208, 1
      %p212 = scmp.eq.s32.totalorder %s43, 1
      %p213 = scmp.ne.s32.totalorder %s208, %s210
      %p214 = scmp.eq.s32.totalorder %s43, 0
      %p215 = por %p213, %p214
      %p216 = scmp.ne.s32.totalorder %s208, %s210
      %p217 = scmp.eq.s32.totalorder %s48, 1
      %p218 = por %p216, %p217
      %p219 = scmp.ne.s32.totalorder %s210, %s211
      %p220 = scmp.eq.s32.totalorder %s48, 0
      %p221 = por %p219, %p220
      %p222 = scmp.ne.s32.totalorder %s210, %s211
      %p223 = scmp.eq.s32.totalorder %s49, 1
      %p224 = por %p222, %p223
      %p226 = scmp.ne.s32.totalorder %s211, %s225
      %p227 = scmp.eq.s32.totalorder %s49, 0
      %p228 = por %p226, %p227
      %s230 = sadd.s32 %s229, 1
      %p233 = scmp.eq.s32.totalorder %s43, 1
      %p234 = scmp.ne.s32.totalorder %s229, %s231
      %p235 = scmp.eq.s32.totalorder %s43, 0
      %p236 = por %p234, %p235
      %p237 = scmp.ne.s32.totalorder %s229, %s231
      %p238 = scmp.eq.s32.totalorder %s48, 1
      %p239 = por %p237, %p238
      %p240 = scmp.ne.s32.totalorder %s231, %s232
      %p241 = scmp.eq.s32.totalorder %s48, 0
      %p242 = por %p240, %p241
      %p243 = scmp.ne.s32.totalorder %s231, %s232
      %p244 = scmp.eq.s32.totalorder %s49, 1
      %p245 = por %p243, %p244
      %p247 = scmp.ne.s32.totalorder %s232, %s246
      %p248 = scmp.eq.s32.totalorder %s49, 0
      %p249 = por %p247, %p248
      %s251 = sadd.s32 %s250, 1
      %p254 = scmp.eq.s32.totalorder %s43, 1
      %p255 = scmp.ne.s32.totalorder %s250, %s252
      %p256 = scmp.eq.s32.totalorder %s43, 0
      %p257 = por %p255, %p256
      %p258 = scmp.ne.s32.totalorder %s250, %s252
      %p259 = scmp.eq.s32.totalorder %s48, 1
      %p260 = por %p258, %p259
      %p261 = scmp.ne.s32.totalorder %s252, %s253
      %p262 = scmp.eq.s32.totalorder %s48, 0
      %p263 = por %p261, %p262
      %p264 = scmp.ne.s32.totalorder %s252, %s253
      %p265 = scmp.eq.s32.totalorder %s49, 1
      %p266 = por %p264, %p265
      %p268 = scmp.ne.s32.totalorder %s253, %s267
      %p269 = scmp.eq.s32.totalorder %s49, 0
      %p270 = por %p268, %p269
      %s272 = sadd.s32 %s271, 1
      %p275 = scmp.eq.s32.totalorder %s43, 1
      %p276 = scmp.ne.s32.totalorder %s271, %s273
      %p277 = scmp.eq.s32.totalorder %s43, 0
      %p278 = por %p276, %p277
      %p279 = scmp.ne.s32.totalorder %s271, %s273
      %p280 = scmp.eq.s32.totalorder %s48, 1
      %p281 = por %p279, %p280
      %p282 = scmp.ne.s32.totalorder %s273, %s274
      %p283 = scmp.eq.s32.totalorder %s48, 0
      %p284 = por %p282, %p283
      %p285 = scmp.ne.s32.totalorder %s273, %s274
      %p286 = scmp.eq.s32.totalorder %s49, 1
      %p287 = por %p285, %p286
      %p289 = scmp.ne.s32.totalorder %s274, %s288
      %p290 = scmp.eq.s32.totalorder %s49, 0
      %p291 = por %p289, %p290
      %s293 = sadd.s32 %s292, 1
      %p296 = scmp.eq.s32.totalorder %s43, 1
      %p297 = scmp.ne.s32.totalorder %s292, %s294
      %p298 = scmp.eq.s32.totalorder %s43, 0
      %p299 = por %p297, %p298
      %p300 = scmp.ne.s32.totalorder %s292, %s294
      %p301 = scmp.eq.s32.totalorder %s48, 1
      %p302 = por %p300, %p301
      %p303 = scmp.ne.s32.totalorder %s294, %s295
      %p304 = scmp.eq.s32.totalorder %s48, 0
      %p305 = por %p303, %p304
      %p306 = scmp.ne.s32.totalorder %s294, %s295
      %p307 = scmp.eq.s32.totalorder %s49, 1
      %p308 = por %p306, %p307
      %p310 = scmp.ne.s32.totalorder %s295, %s309
      %p311 = scmp.eq.s32.totalorder %s49, 0
      %p312 = por %p310, %p311
      %s314 = sadd.s32 %s313, 1
      %p317 = scmp.eq.s32.totalorder %s43, 1
      %p318 = scmp.ne.s32.totalorder %s313, %s315
      %p319 = scmp.eq.s32.totalorder %s43, 0
      %p320 = por %p318, %p319
      %p321 = scmp.ne.s32.totalorder %s313, %s315
      %p322 = scmp.eq.s32.totalorder %s48, 1
      %p323 = por %p321, %p322
      %p324 = scmp.ne.s32.totalorder %s315, %s316
      %p325 = scmp.eq.s32.totalorder %s48, 0
      %p326 = por %p324, %p325
      %p327 = scmp.ne.s32.totalorder %s315, %s316
      %p328 = scmp.eq.s32.totalorder %s49, 1
      %p329 = por %p327, %p328
      %p331 = scmp.ne.s32.totalorder %s316, %s330
      %p332 = scmp.eq.s32.totalorder %s49, 0
      %p333 = por %p331, %p332
      %s335 = sadd.s32 %s334, 1
      %p338 = scmp.eq.s32.totalorder %s43, 1
      %p339 = scmp.ne.s32.totalorder %s334, %s336
      %p340 = scmp.eq.s32.totalorder %s43, 0
      %p341 = por %p339, %p340
      %p342 = scmp.ne.s32.totalorder %s334, %s336
      %p343 = scmp.eq.s32.totalorder %s48, 1
      %p344 = por %p342, %p343
      %p345 = scmp.ne.s32.totalorder %s336, %s337
      %p346 = scmp.eq.s32.totalorder %s48, 0
      %p347 = por %p345, %p346
      %p348 = scmp.ne.s32.totalorder %s336, %s337
      %p349 = scmp.eq.s32.totalorder %s49, 1
      %p350 = por %p348, %p349
      %p352 = scmp.ne.s32.totalorder %s337, %s351
      %p353 = scmp.eq.s32.totalorder %s49, 0
      %p354 = por %p352, %p353
      %s356 = sadd.s32 %s355, 1
      %p359 = scmp.eq.s32.totalorder %s43, 1
      %p360 = scmp.ne.s32.totalorder %s355, %s357
      %p361 = scmp.eq.s32.totalorder %s43, 0
      %p362 = por %p360, %p361
      %p363 = scmp.ne.s32.totalorder %s355, %s357
      %p364 = scmp.eq.s32.totalorder %s48, 1
      %p365 = por %p363, %p364
      %p366 = scmp.ne.s32.totalorder %s357, %s358
      %p367 = scmp.eq.s32.totalorder %s48, 0
      %p368 = por %p366, %p367
      %p369 = scmp.ne.s32.totalorder %s357, %s358
      %p370 = scmp.eq.s32.totalorder %s49, 1
      %p371 = por %p369, %p370
      %p373 = scmp.ne.s32.totalorder %s358, %s372
      %p374 = scmp.eq.s32.totalorder %s49, 0
      %p375 = por %p373, %p374
      %s377 = sadd.s32 %s376, 1
      %p380 = scmp.eq.s32.totalorder %s43, 1
      %p381 = scmp.ne.s32.totalorder %s376, %s378
      %p382 = scmp.eq.s32.totalorder %s43, 0
      %p383 = por %p381, %p382
      %p384 = scmp.ne.s32.totalorder %s376, %s378
      %p385 = scmp.eq.s32.totalorder %s48, 1
      %p386 = por %p384, %p385
      %p387 = scmp.ne.s32.totalorder %s378, %s379
      %p388 = scmp.eq.s32.totalorder %s48, 0
      %p389 = por %p387, %p388
      %p390 = scmp.ne.s32.totalorder %s378, %s379
      %p391 = scmp.eq.s32.totalorder %s49, 1
      %p392 = por %p390, %p391
      %p394 = scmp.ne.s32.totalorder %s379, %s393
      %p395 = scmp.eq.s32.totalorder %s49, 0
      %p396 = por %p394, %p395
      %s398 = sadd.s32 %s397, 1
      %p401 = scmp.eq.s32.totalorder %s43, 1
      %p402 = scmp.ne.s32.totalorder %s397, %s399
      %p403 = scmp.eq.s32.totalorder %s43, 0
      %p404 = por %p402, %p403
      %p405 = scmp.ne.s32.totalorder %s397, %s399
      %p406 = scmp.eq.s32.totalorder %s48, 1
      %p407 = por %p405, %p406
      %p408 = scmp.ne.s32.totalorder %s399, %s400
      %p409 = scmp.eq.s32.totalorder %s48, 0
      %p410 = por %p408, %p409
      %p411 = scmp.ne.s32.totalorder %s399, %s400
      %p412 = scmp.eq.s32.totalorder %s49, 1
      %p413 = por %p411, %p412
      %p415 = scmp.ne.s32.totalorder %s400, %s414
      %p416 = scmp.eq.s32.totalorder %s49, 0
      %p417 = por %p415, %p416
      %s419 = sadd.s32 %s418, 1
      %p422 = scmp.eq.s32.totalorder %s43, 1
      %p423 = scmp.ne.s32.totalorder %s418, %s420
      %p424 = scmp.eq.s32.totalorder %s43, 0
      %p425 = por %p423, %p424
      %p426 = scmp.ne.s32.totalorder %s418, %s420
      %p427 = scmp.eq.s32.totalorder %s48, 1
      %p428 = por %p426, %p427
      %p429 = scmp.ne.s32.totalorder %s420, %s421
      %p430 = scmp.eq.s32.totalorder %s48, 0
      %p431 = por %p429, %p430
      %p432 = scmp.ne.s32.totalorder %s420, %s421
      %p433 = scmp.eq.s32.totalorder %s49, 1
      %p434 = por %p432, %p433
      %p436 = scmp.ne.s32.totalorder %s421, %s435
      %p437 = scmp.eq.s32.totalorder %s49, 0
      %p438 = por %p436, %p437
      %s440 = sadd.s32 %s439, 1
      %p443 = scmp.eq.s32.totalorder %s43, 1
      %p444 = scmp.ne.s32.totalorder %s439, %s441
      %p445 = scmp.eq.s32.totalorder %s43, 0
      %p446 = por %p444, %p445
      %p447 = scmp.ne.s32.totalorder %s439, %s441
      %p448 = scmp.eq.s32.totalorder %s48, 1
      %p449 = por %p447, %p448
      %p450 = scmp.ne.s32.totalorder %s441, %s442
      %p451 = scmp.eq.s32.totalorder %s48, 0
      %p452 = por %p450, %p451
      %p453 = scmp.ne.s32.totalorder %s441, %s442
      %p454 = scmp.eq.s32.totalorder %s49, 1
      %p455 = por %p453, %p454
      %p457 = scmp.ne.s32.totalorder %s442, %s456
      %p458 = scmp.eq.s32.totalorder %s49, 0
      %p459 = por %p457, %p458
      %s460 = ssub.s32 %s43, %s50
      %p461 = scmp.eq.s32.totalorder %s460, 0
      %s463 = sadd.s32 %s462, 1
      %s464 = scalar_select %p461, %s462, %s463
      %p467 = pneg %p461
      %p468 = scmp.eq.s32.totalorder %s43, 1
      %p469 = por %p467, %p468
      %p470 = scmp.ne.s32.totalorder %s462, %s465
      %p471 = scmp.eq.s32.totalorder %s43, 0
      %p472 = por %p470, %p471
      %p473 = scmp.ne.s32.totalorder %s462, %s465
      %p474 = scmp.eq.s32.totalorder %s48, 1
      %p475 = por %p473, %p474
      %p476 = scmp.ne.s32.totalorder %s465, %s466
      %p477 = scmp.eq.s32.totalorder %s48, 0
      %p478 = por %p476, %p477
      %p479 = scmp.ne.s32.totalorder %s465, %s466
      %p480 = scmp.eq.s32.totalorder %s49, 1
      %p481 = por %p479, %p480
      %p483 = scmp.ne.s32.totalorder %s466, %s482
      %p484 = scmp.eq.s32.totalorder %s49, 0
      %p485 = por %p483, %p484
      %s486 = ssub.s32 %s43, %s50
      %p487 = scmp.eq.s32.totalorder %s486, 0
      %s489 = sadd.s32 %s488, 1
      %s490 = scalar_select %p487, %s488, %s489
      %p493 = pneg %p487
      %p494 = scmp.eq.s32.totalorder %s43, 1
      %p495 = por %p493, %p494
      %p496 = scmp.ne.s32.totalorder %s488, %s491
      %p497 = scmp.eq.s32.totalorder %s43, 0
      %p498 = por %p496, %p497
      %p499 = scmp.ne.s32.totalorder %s488, %s491
      %p500 = scmp.eq.s32.totalorder %s48, 1
      %p501 = por %p499, %p500
      %p502 = scmp.ne.s32.totalorder %s491, %s492
      %p503 = scmp.eq.s32.totalorder %s48, 0
      %p504 = por %p502, %p503
      %p505 = scmp.ne.s32.totalorder %s491, %s492
      %p506 = scmp.eq.s32.totalorder %s49, 1
      %p507 = por %p505, %p506
      %p509 = scmp.ne.s32.totalorder %s492, %s508
      %p510 = scmp.eq.s32.totalorder %s49, 0
      %p511 = por %p509, %p510
      %p512 = scmp.le.s32.totalorder 1, %s43
      %p513 = scmp.lt.s32.totalorder %s43, 3
      %p514 = pnand %p512, %p513
      %p515 = pneg %p514
      // Predicated region
      $region9: #{tpu_custom_call.1} parent=5 // pred_check
        _
      $region10: #{tpu_custom_call.1} parent=5 // pred_check_branch
        %517 = sbr.rel (%p514) target = $region12
      $region11: #{tpu_custom_call.1} parent=5 // pred_region
        %s518 = ssub.s32 %s43, 1
        // Predicated region
        $region13: #{tpu_custom_call.1} parent=11 // pred_check
          %p519 = pneg %p116
        $region14: #{tpu_custom_call.1} parent=11 // pred_check_branch
          %521 = sbr.rel (%p519) target = $region16
        $region15: #{tpu_custom_call.1} parent=11 // pred_region
          _
        $region16: #{tpu_custom_call.1} parent=11 // pred_fallthru
          _
        // Predicated region
        $region17: #{tpu_custom_call.1} parent=11 // pred_check
          %p522 = pneg %p137
        $region18: #{tpu_custom_call.1} parent=11 // pred_check_branch
          %524 = sbr.rel (%p522) target = $region20
        $region19: #{tpu_custom_call.1} parent=11 // pred_region
          _
        $region20: #{tpu_custom_call.1} parent=11 // pred_fallthru
          _
        // Predicated region
        $region21: #{tpu_custom_call.1} parent=11 // pred_check
          %p525 = pneg %p158
        $region22: #{tpu_custom_call.1} parent=11 // pred_check_branch
          %527 = sbr.rel (%p525) target = $region24
        $region23: #{tpu_custom_call.1} parent=11 // pred_region
          _
        $region24: #{tpu_custom_call.1} parent=11 // pred_fallthru
          _
        // Predicated region
        $region25: #{tpu_custom_call.1} parent=11 // pred_check
          %p528 = pneg %p179
        $region26: #{tpu_custom_call.1} parent=11 // pred_check_branch
          %530 = sbr.rel (%p528) target = $region28
        $region27: #{tpu_custom_call.1} parent=11 // pred_region
          _
        $region28: #{tpu_custom_call.1} parent=11 // pred_fallthru
          _
        // Predicated region
        $region29: #{tpu_custom_call.1} parent=11 // pred_check
          %p531 = pneg %p200
        $region30: #{tpu_custom_call.1} parent=11 // pred_check_branch
          %533 = sbr.rel (%p531) target = $region32
        $region31: #{tpu_custom_call.1} parent=11 // pred_region
          %535 = vsyncadd [#allocation6], 0
          %s536 = sshll.u32 %s6, 4
          %s537 = int_to_ptr.hbm [resolvable:$true] %s536
          %s538 = sshll.u32 [#allocation7], 4
          %s539 = int_to_ptr.vmem [resolvable:$true] %s538
          %544 = dma.hbm_to_vmem [thread:$0]  %s537, 1024, %s539, [#allocation6], 64, 64, 4
        $region32: #{tpu_custom_call.1} parent=11 // pred_fallthru
          _
        // Predicated region
        $region33: #{tpu_custom_call.1} parent=11 // pred_check
          %p545 = pneg %p221
        $region34: #{tpu_custom_call.1} parent=11 // pred_check_branch
          %547 = sbr.rel (%p545) target = $region36
        $region35: #{tpu_custom_call.1} parent=11 // pred_region
          _
        $region36: #{tpu_custom_call.1} parent=11 // pred_fallthru
          _
        // Predicated region
        $region37: #{tpu_custom_call.1} parent=11 // pred_check
          %p548 = pneg %p242
        $region38: #{tpu_custom_call.1} parent=11 // pred_check_branch
          %550 = sbr.rel (%p548) target = $region40
        $region39: #{tpu_custom_call.1} parent=11 // pred_region
          %552 = vsyncadd [#allocation9], 0
          %s553 = sshll.u32 %s8, 4
          %s554 = int_to_ptr.hbm [resolvable:$true] %s553
          %s555 = sshll.u32 [#allocation8], 4
          %s556 = int_to_ptr.vmem [resolvable:$true] %s555
          %561 = dma.hbm_to_vmem [thread:$0]  %s554, 2048, %s556, [#allocation9], 128, 128, 8
        $region40: #{tpu_custom_call.1} parent=11 // pred_fallthru
          _
        // Predicated region
        $region41: #{tpu_custom_call.1} parent=11 // pred_check
          %p562 = pneg %p263
        $region42: #{tpu_custom_call.1} parent=11 // pred_check_branch
          %564 = sbr.rel (%p562) target = $region44
        $region43: #{tpu_custom_call.1} parent=11 // pred_region
          %566 = vsyncadd [#allocation9], 0
          %s567 = sshll.u32 %s9, 4
          %s568 = int_to_ptr.hbm [resolvable:$true] %s567
          %s569 = sshll.u32 [#allocation10], 4
          %s570 = int_to_ptr.vmem [resolvable:$true] %s569
          %575 = dma.hbm_to_vmem [thread:$0]  %s568, 1024, %s570, [#allocation9], 64, 64, 4
        $region44: #{tpu_custom_call.1} parent=11 // pred_fallthru
          _
        // Predicated region
        $region45: #{tpu_custom_call.1} parent=11 // pred_check
          %p576 = pneg %p284
        $region46: #{tpu_custom_call.1} parent=11 // pred_check_branch
          %578 = sbr.rel (%p576) target = $region48
        $region47: #{tpu_custom_call.1} parent=11 // pred_region
          %580 = vsyncadd [#allocation12], 0
          %s581 = sshll.u32 %s10, 4
          %s582 = int_to_ptr.hbm [resolvable:$true] %s581
          %s583 = sshll.u32 [#allocation11], 4
          %s584 = int_to_ptr.vmem [resolvable:$true] %s583
          %589 = dma.hbm_to_vmem [thread:$0]  %s582, 1024, %s584, [#allocation12], 64, 64, 4
        $region48: #{tpu_custom_call.1} parent=11 // pred_fallthru
          _
        // Predicated region
        $region49: #{tpu_custom_call.1} parent=11 // pred_check
          %p590 = pneg %p305
        $region50: #{tpu_custom_call.1} parent=11 // pred_check_branch
          %592 = sbr.rel (%p590) target = $region52
        $region51: #{tpu_custom_call.1} parent=11 // pred_region
          %594 = vsyncadd [#allocation12], 0
          %s595 = sshll.u32 %s11, 4
          %s596 = int_to_ptr.hbm [resolvable:$true] %s595
          %s597 = sshll.u32 [#allocation13], 4
          %s598 = int_to_ptr.vmem [resolvable:$true] %s597
          %603 = dma.hbm_to_vmem [thread:$0]  %s596, 1024, %s598, [#allocation12], 64, 64, 4
        $region52: #{tpu_custom_call.1} parent=11 // pred_fallthru
          _
        // Predicated region
        $region53: #{tpu_custom_call.1} parent=11 // pred_check
          %p604 = pneg %p326
        $region54: #{tpu_custom_call.1} parent=11 // pred_check_branch
          %606 = sbr.rel (%p604) target = $region56
        $region55: #{tpu_custom_call.1} parent=11 // pred_region
          %608 = vsyncadd [#allocation15], 0
          %s609 = sshll.u32 %s12, 4
          %s610 = int_to_ptr.hbm [resolvable:$true] %s609
          %s611 = sshll.u32 [#allocation14], 4
          %s612 = int_to_ptr.vmem [resolvable:$true] %s611
          %617 = dma.hbm_to_vmem [thread:$0]  %s610, 1024, %s612, [#allocation15], 64, 64, 4
        $region56: #{tpu_custom_call.1} parent=11 // pred_fallthru
          _
        // Predicated region
        $region57: #{tpu_custom_call.1} parent=11 // pred_check
          %p618 = pneg %p347
        $region58: #{tpu_custom_call.1} parent=11 // pred_check_branch
          %620 = sbr.rel (%p618) target = $region60
        $region59: #{tpu_custom_call.1} parent=11 // pred_region
          _
        $region60: #{tpu_custom_call.1} parent=11 // pred_fallthru
          _
        // Predicated region
        $region61: #{tpu_custom_call.1} parent=11 // pred_check
          %p621 = pneg %p368
        $region62: #{tpu_custom_call.1} parent=11 // pred_check_branch
          %623 = sbr.rel (%p621) target = $region64
        $region63: #{tpu_custom_call.1} parent=11 // pred_region
          _
        $region64: #{tpu_custom_call.1} parent=11 // pred_fallthru
          _
        // Predicated region
        $region65: #{tpu_custom_call.1} parent=11 // pred_check
          %p624 = pneg %p389
        $region66: #{tpu_custom_call.1} parent=11 // pred_check_branch
          %626 = sbr.rel (%p624) target = $region68
        $region67: #{tpu_custom_call.1} parent=11 // pred_region
          _
        $region68: #{tpu_custom_call.1} parent=11 // pred_fallthru
          _
        // Predicated region
        $region69: #{tpu_custom_call.1} parent=11 // pred_check
          %p627 = pneg %p410
        $region70: #{tpu_custom_call.1} parent=11 // pred_check_branch
          %629 = sbr.rel (%p627) target = $region72
        $region71: #{tpu_custom_call.1} parent=11 // pred_region
          _
        $region72: #{tpu_custom_call.1} parent=11 // pred_fallthru
          _
        // Predicated region
        $region73: #{tpu_custom_call.1} parent=11 // pred_check
          %p630 = pneg %p431
        $region74: #{tpu_custom_call.1} parent=11 // pred_check_branch
          %632 = sbr.rel (%p630) target = $region76
        $region75: #{tpu_custom_call.1} parent=11 // pred_region
          %634 = vsyncadd [#allocation15], 0
          %s635 = sshll.u32 %s17, 4
          %s636 = int_to_ptr.hbm [resolvable:$true] %s635
          %s637 = sshll.u32 [#allocation16], 4
          %s638 = int_to_ptr.vmem [resolvable:$true] %s637
          %643 = dma.hbm_to_vmem [thread:$0]  %s636, 1024, %s638, [#allocation15], 64, 64, 4
        $region76: #{tpu_custom_call.1} parent=11 // pred_fallthru
          _
        // Predicated region
        $region77: #{tpu_custom_call.1} parent=11 // pred_check
          %p644 = pneg %p452
        $region78: #{tpu_custom_call.1} parent=11 // pred_check_branch
          %646 = sbr.rel (%p644) target = $region80
        $region79: #{tpu_custom_call.1} parent=11 // pred_region
          %648 = vsyncadd [#allocation18], 0
          %s649 = sshll.u32 %s18, 4
          %s650 = int_to_ptr.hbm [resolvable:$true] %s649
          %s651 = sshll.u32 [#allocation17], 4
          %s652 = int_to_ptr.vmem [resolvable:$true] %s651
          %657 = dma.hbm_to_vmem [thread:$0]  %s650, 1024, %s652, [#allocation18], 64, 64, 4
        $region80: #{tpu_custom_call.1} parent=11 // pred_fallthru
          _
      $region12: #{tpu_custom_call.1} parent=5 // pred_fallthru
        _
      %p658 = scmp.lt.s32.totalorder %s43, 2
      // Predicated region
      $region81: #{tpu_custom_call.1} parent=5 // pred_check
        %p659 = pneg %p658
      $region82: #{tpu_custom_call.1} parent=5 // pred_check_branch
        %661 = sbr.rel (%p659) target = $region84
      $region83: #{tpu_custom_call.1} parent=5 // pred_region
        // Predicated region
        $region85: #{tpu_custom_call.1} parent=83 // pred_check
          %p662 = pneg %p63
        $region86: #{tpu_custom_call.1} parent=83 // pred_check_branch
          %664 = sbr.rel (%p662) target = $region88
        $region87: #{tpu_custom_call.1} parent=83 // pred_region
          %s665 = sand.u32 %s53, 1
          %s666 = scalar_lea.sflag [#allocation3], %s665
          %s667 = sand.u32 %s53, 1
          %s668 = smul.addr %s667, 16
          %s669 = scalar_lea.vmem [#allocation2], %s668
          %s670 = smul.u32 2, %s43
          %672 = vsyncadd %s666, 0
          %s673 = smul.addr %s670, 8
          %s674 = scalar_lea.hbm %s0, %s673
          %s675 = sshll.u32 %s674, 4
          %s676 = int_to_ptr.hbm [resolvable:$true] %s675
          %s677 = sshll.u32 %s669, 4
          %s678 = int_to_ptr.vmem [resolvable:$true] %s677
          %683 = dma.hbm_to_vmem [thread:$0]  %s676, 256, %s678, %s666, 128, 128, 8
        $region88: #{tpu_custom_call.1} parent=83 // pred_fallthru
          _
        // Predicated region
        $region89: #{tpu_custom_call.1} parent=83 // pred_check
          %p684 = pneg %p89
        $region90: #{tpu_custom_call.1} parent=83 // pred_check_branch
          %686 = sbr.rel (%p684) target = $region92
        $region91: #{tpu_custom_call.1} parent=83 // pred_region
          #allocation23 [shape = 'u32[6]{0}', space=smem, size = 0x18, scoped, tag = 'DMA stride descriptor']
          %s687 = sand.u32 %s43, 1
          %s688 = scalar_lea.sflag [#allocation6], %s687
          %s689 = sand.u32 %s79, 1
          %s690 = smul.addr %s689, 48
          %s691 = scalar_lea.vmem [#allocation5], %s690
          %s692 = smul.u32 2, %s43
          %694 = vsyncadd %s688, 0
          %s695 = smul.addr %s692, 8
          %s696 = scalar_lea.hbm %s1, %s695
          %s698 = sshll.u32 1, 14
          %s699 = sxor.u32 4294967295, %s698
          %s701 = sld [smem:[#allocation0]]
          %s702 = sadd.s32 2, %s701
          %s704 = sshll.u32 7, 26
          %s705 = sxor.u32 4294967295, %s704
          %s706 = sand.u32 0, %s705
          %s707 = sshll.u32 %s702, 26
          %s708 = sor.u32 %s706, %s707
          %s709 = sshll.u32 %s696, 4
          %s710 = int_to_ptr.hbm [resolvable:$true] %s709
          %s711 = sshll.u32 %s691, 4
          %s712 = int_to_ptr.vmem [resolvable:$true] %s711
          %718 = sst [smem:[#allocation23]] 512
          %s719 = scalar_lea.smem [#allocation23], 1
          %720 = sst [smem:[%s719]] 256
          %s721 = scalar_lea.smem [#allocation23], 2
          %722 = sst [smem:[%s721]] 2
          %s723 = scalar_lea.smem [#allocation23], 3
          %724 = sst [smem:[%s723]] 128
          %s725 = scalar_lea.smem [#allocation23], 4
          %726 = sst [smem:[%s725]] 128
          %s727 = scalar_lea.smem [#allocation23], 5
          %728 = sst [smem:[%s727]] 8
          %730 = dma.general %s710, 768, %s712, %s688, [#allocation22], [#allocation23], %s708, 0
        $region92: #{tpu_custom_call.1} parent=83 // pred_fallthru
          _
      $region84: #{tpu_custom_call.1} parent=5 // pred_fallthru
        _
      %p731 = scmp.le.s32.totalorder 1, %s43
      %p732 = scmp.lt.s32.totalorder %s43, 3
      %p733 = pnand %p731, %p732
      %p734 = pneg %p733
      // Predicated region
      $region93: #{tpu_custom_call.1} parent=5 // pred_check
        _
      $region94: #{tpu_custom_call.1} parent=5 // pred_check_branch
        %736 = sbr.rel (%p733) target = $region96
      $region95: #{tpu_custom_call.1} parent=5 // pred_region
        %s737 = ssub.s32 %s43, 1
        %s738 = sand.u32 %s56, 1
        %s739 = scalar_lea.sflag [#allocation3], %s738
        %s740 = sand.u32 %s56, 1
        %s741 = smul.addr %s740, 16
        %s742 = scalar_lea.vmem [#allocation2], %s741
        // Predicated region
        $region97: #{tpu_custom_call.1} parent=95 // pred_check
          %p743 = pneg %p69
        $region98: #{tpu_custom_call.1} parent=95 // pred_check_branch
          %745 = sbr.rel (%p743) target = $region100
        $region99: #{tpu_custom_call.1} parent=95 // pred_region
          %747 = dma.done %s739, 256
        $region100: #{tpu_custom_call.1} parent=95 // pred_fallthru
          _
        %s748 = sand.u32 %s48, 1
        %s749 = scalar_lea.sflag [#allocation6], %s748
        %s750 = sand.u32 %s82, 1
        %s751 = smul.addr %s750, 48
        %s752 = scalar_lea.vmem [#allocation5], %s751
        // Predicated region
        $region101: #{tpu_custom_call.1} parent=95 // pred_check
          %p753 = pneg %p95
        $region102: #{tpu_custom_call.1} parent=95 // pred_check_branch
          %755 = sbr.rel (%p753) target = $region104
        $region103: #{tpu_custom_call.1} parent=95 // pred_region
          %757 = dma.done %s749, 768
        $region104: #{tpu_custom_call.1} parent=95 // pred_fallthru
          _
        // Predicated region
        $region105: #{tpu_custom_call.1} parent=95 // pred_check
          %p758 = pneg %p200
        $region106: #{tpu_custom_call.1} parent=95 // pred_check_branch
          %760 = sbr.rel (%p758) target = $region108
        $region107: #{tpu_custom_call.1} parent=95 // pred_region
          %762 = dma.done [#allocation6], 1024
        $region108: #{tpu_custom_call.1} parent=95 // pred_fallthru
          _
        // Predicated region
        $region109: #{tpu_custom_call.1} parent=95 // pred_check
          %p763 = pneg %p242
        $region110: #{tpu_custom_call.1} parent=95 // pred_check_branch
          %765 = sbr.rel (%p763) target = $region112
        $region111: #{tpu_custom_call.1} parent=95 // pred_region
          %767 = dma.done [#allocation9], 2048
        $region112: #{tpu_custom_call.1} parent=95 // pred_fallthru
          _
        // Predicated region
        $region113: #{tpu_custom_call.1} parent=95 // pred_check
          %p768 = pneg %p263
        $region114: #{tpu_custom_call.1} parent=95 // pred_check_branch
          %770 = sbr.rel (%p768) target = $region116
        $region115: #{tpu_custom_call.1} parent=95 // pred_region
          %772 = dma.done [#allocation9], 1024
        $region116: #{tpu_custom_call.1} parent=95 // pred_fallthru
          _
        // Predicated region
        $region117: #{tpu_custom_call.1} parent=95 // pred_check
          %p773 = pneg %p284
        $region118: #{tpu_custom_call.1} parent=95 // pred_check_branch
          %775 = sbr.rel (%p773) target = $region120
        $region119: #{tpu_custom_call.1} parent=95 // pred_region
          %777 = dma.done [#allocation12], 1024
        $region120: #{tpu_custom_call.1} parent=95 // pred_fallthru
          _
        // Predicated region
        $region121: #{tpu_custom_call.1} parent=95 // pred_check
          %p778 = pneg %p305
        $region122: #{tpu_custom_call.1} parent=95 // pred_check_branch
          %780 = sbr.rel (%p778) target = $region124
        $region123: #{tpu_custom_call.1} parent=95 // pred_region
          %782 = dma.done [#allocation12], 1024
        $region124: #{tpu_custom_call.1} parent=95 // pred_fallthru
          _
        // Predicated region
        $region125: #{tpu_custom_call.1} parent=95 // pred_check
          %p783 = pneg %p326
        $region126: #{tpu_custom_call.1} parent=95 // pred_check_branch
          %785 = sbr.rel (%p783) target = $region128
        $region127: #{tpu_custom_call.1} parent=95 // pred_region
          %787 = dma.done [#allocation15], 1024
        $region128: #{tpu_custom_call.1} parent=95 // pred_fallthru
          _
        // Predicated region
        $region129: #{tpu_custom_call.1} parent=95 // pred_check
          %p788 = pneg %p431
        $region130: #{tpu_custom_call.1} parent=95 // pred_check_branch
          %790 = sbr.rel (%p788) target = $region132
        $region131: #{tpu_custom_call.1} parent=95 // pred_region
          %792 = dma.done [#allocation15], 1024
        $region132: #{tpu_custom_call.1} parent=95 // pred_fallthru
          _
        // Predicated region
        $region133: #{tpu_custom_call.1} parent=95 // pred_check
          %p793 = pneg %p452
        $region134: #{tpu_custom_call.1} parent=95 // pred_check_branch
          %795 = sbr.rel (%p793) target = $region136
        $region135: #{tpu_custom_call.1} parent=95 // pred_region
          %797 = dma.done [#allocation18], 1024
        $region136: #{tpu_custom_call.1} parent=95 // pred_fallthru
          _
        %s798 = sand.u32 %s56, 1
        %s799 = scalar_lea.sflag [#allocation3], %s798
        %s800 = sand.u32 %s56, 1
        %s801 = smul.addr %s800, 16
        %s802 = scalar_lea.vmem [#allocation2], %s801
        %p803 = pneg %p69
        %p804 = pneg %p66
        %s805 = sand.u32 %s48, 1
        %s806 = scalar_lea.sflag [#allocation6], %s805
        %s807 = sand.u32 %s82, 1
        %s808 = smul.addr %s807, 48
        %s809 = scalar_lea.vmem [#allocation5], %s808
        %p810 = pneg %p95
        %p811 = pneg %p92
        %p812 = pneg %p116
        %p813 = pneg %p113
        %p814 = pneg %p137
        %p815 = pneg %p134
        %p816 = pneg %p158
        %p817 = pneg %p155
        %p818 = pneg %p179
        %p819 = pneg %p176
        %p820 = pneg %p200
        %p821 = pneg %p197
        %p822 = pneg %p221
        %p823 = pneg %p218
        %p824 = pneg %p242
        %p825 = pneg %p239
        %p826 = pneg %p263
        %p827 = pneg %p260
        %p828 = pneg %p284
        %p829 = pneg %p281
        %p830 = pneg %p305
        %p831 = pneg %p302
        %p832 = pneg %p326
        %p833 = pneg %p323
        %p834 = pneg %p347
        %p835 = pneg %p344
        %p836 = pneg %p368
        %p837 = pneg %p365
        %p838 = pneg %p389
        %p839 = pneg %p386
        %p840 = pneg %p410
        %p841 = pneg %p407
        %p842 = pneg %p431
        %p843 = pneg %p428
        %p844 = pneg %p452
        %p845 = pneg %p449
        %p846 = pneg %p478
        %p847 = pneg %p475
        %s848 = sand.u32 %s465, 1
        %s849 = scalar_lea.sflag [#allocation4], %s848
        %s850 = sand.u32 %s465, 1
        %s851 = smul.addr %s850, 16
        %s852 = scalar_lea.vmem [#allocation19], %s851
        %p853 = pneg %p504
        %p854 = pneg %p501
        %s855 = sand.u32 %s491, 1
        %s856 = scalar_lea.sflag [#allocation21], %s855
        %s857 = sand.u32 %s491, 1
        %s858 = smul.addr %s857, 48
        %s859 = scalar_lea.vmem [#allocation20], %s858
        %s860 = smul.u32 2, %s48
        %s861 = smul.u32 2, %s48
        %s862 = smul.u32 2, %s48
        %s863 = smul.u32 2, %s48
        %v864 = vld [vmem:[%s742] sm:$0xff]
        %v865 = vld [vmem:[%s742 + $0x8] sm:$0xff]
        %v866 = vld [vmem:[%s752] sm:$0xff]
        %v867 = vld [vmem:[%s752 + $0x8] sm:$0xff]
        %v868 = vld [vmem:[%s752 + $0x10] sm:$0xff]
        %v869 = vld [vmem:[%s752 + $0x18] sm:$0xff]
        %v870 = vld [vmem:[%s752 + $0x20] sm:$0xff]
        %v871 = vld [vmem:[%s752 + $0x28] sm:$0xff]
        %v872 = vld [vmem:[%s2] sm:$0xff]
        %v873 = vld [vmem:[%s2 + $0x8] sm:$0xff]
        %v874 = vld [vmem:[%s2 + $0x10] sm:$0xff]
        %v875 = vld [vmem:[%s2 + $0x18] sm:$0xff]
        %v876 = vld [vmem:[%s2 + $0x20] sm:$0xff]
        %v877 = vld [vmem:[%s2 + $0x28] sm:$0xff]
        %v878 = vld [vmem:[%s2 + $0x30] sm:$0xff]
        %v879 = vld [vmem:[%s2 + $0x38] sm:$0xff]
        %v880 = vld [vmem:[%s2 + $0x40] sm:$0xff]
        %v881 = vld [vmem:[%s2 + $0x48] sm:$0xff]
        %v882 = vld [vmem:[%s2 + $0x50] sm:$0xff]
        %v883 = vld [vmem:[%s2 + $0x58] sm:$0xff]
        %v884 = vld [vmem:[%s2 + $0x60] sm:$0xff]
        %v885 = vld [vmem:[%s2 + $0x68] sm:$0xff]
        %v886 = vld [vmem:[%s2 + $0x70] sm:$0xff]
        %v887 = vld [vmem:[%s2 + $0x78] sm:$0xff]
        %v888 = vpack.c.bf16 %v865, %v864
        %v889 = vld [vmem:[%s3] sm:$0x3]
        %v891 = vperm.slane %v889, 0
        %v892 = vperm.slane %v889, 1
        %v911 = vunpack.c.l.b16 %v872
        %v912 = vunpack.c.h.b16 %v872
        %v913 = vunpack.c.l.b16 %v873
        %v914 = vunpack.c.h.b16 %v873
        %v915 = vunpack.c.l.b16 %v874
        %v916 = vunpack.c.h.b16 %v874
        %v917 = vunpack.c.l.b16 %v875
        %v918 = vunpack.c.h.b16 %v875
        %v919 = vunpack.c.l.b16 %v876
        %v920 = vunpack.c.h.b16 %v876
        %v921 = vunpack.c.l.b16 %v877
        %v922 = vunpack.c.h.b16 %v877
        %v923 = vunpack.c.l.b16 %v878
        %v924 = vunpack.c.h.b16 %v878
        %v925 = vunpack.c.l.b16 %v879
        %v926 = vunpack.c.h.b16 %v879
        %v927 = vunpack.c.l.b16 %v880
        %v928 = vunpack.c.h.b16 %v880
        %v929 = vunpack.c.l.b16 %v881
        %v930 = vunpack.c.h.b16 %v881
        %v931 = vunpack.c.l.b16 %v882
        %v932 = vunpack.c.h.b16 %v882
        %v933 = vunpack.c.l.b16 %v883
        %v934 = vunpack.c.h.b16 %v883
        %v935 = vunpack.c.l.b16 %v884
        %v936 = vunpack.c.h.b16 %v884
        %v937 = vunpack.c.l.b16 %v885
        %v938 = vunpack.c.h.b16 %v885
        %v939 = vunpack.c.l.b16 %v886
        %v940 = vunpack.c.h.b16 %v886
        %v941 = vunpack.c.l.b16 %v887
        %v942 = vunpack.c.h.b16 %v887
        %v943 = vpack.c.b16 %v913, %v911
        %v944 = vpack.c.b16 %v914, %v912
        %v945 = vpack.c.b16 %v917, %v915
        %v946 = vpack.c.b16 %v918, %v916
        %v947 = vpack.c.b16 %v921, %v919
        %v948 = vpack.c.b16 %v922, %v920
        %v949 = vpack.c.b16 %v925, %v923
        %v950 = vpack.c.b16 %v926, %v924
        %v951 = vpack.c.b16 %v929, %v927
        %v952 = vpack.c.b16 %v930, %v928
        %v953 = vpack.c.b16 %v933, %v931
        %v954 = vpack.c.b16 %v934, %v932
        %v955 = vpack.c.b16 %v937, %v935
        %v956 = vpack.c.b16 %v938, %v936
        %v957 = vpack.c.b16 %v941, %v939
        %v958 = vpack.c.b16 %v942, %v940
        %975 = vmatpush.bf16.msra.mxu0 %v957
        %976 = vmatpush.bf16.msra.mxu0 %v955
        %977 = vmatpush.bf16.msra.mxu0 %v953
        %978 = vmatpush.bf16.msra.mxu0 %v951
        %979 = vmatpush.bf16.msra.mxu0 %v949
        %980 = vmatpush.bf16.msra.mxu0 %v947
        %981 = vmatpush.bf16.msra.mxu0 %v945
        %982 = vmatpush.bf16.msra.mxu0 %v943
        %983 = vmatmul.bf16.gmra.mxu0 %v888
        %v984 = vpop.f32.mrf.mxu0
        %v985 = vadd.f32 %v891, %v984
        %v986 = vpop.f32.mrf.mxu0
        %v987 = vadd.f32 %v891, %v986
        %988 = vdwg.mxu0
        %989 = vmatpush.bf16.msra.mxu0 %v958
        %990 = vmatpush.bf16.msra.mxu0 %v956
        %991 = vmatpush.bf16.msra.mxu0 %v954
        %992 = vmatpush.bf16.msra.mxu0 %v952
        %993 = vmatpush.bf16.msra.mxu0 %v950
        %994 = vmatpush.bf16.msra.mxu0 %v948
        %995 = vmatpush.bf16.msra.mxu0 %v946
        %996 = vmatpush.bf16.msra.mxu0 %v944
        %997 = vmatmul.bf16.gmra.mxu0 %v888
        %v998 = vpop.f32.mrf.mxu0
        %v999 = vadd.f32 %v892, %v998
        %v1000 = vpop.f32.mrf.mxu0
        %v1001 = vadd.f32 %v892, %v1000
        %1002 = vdwg.mxu0
        %vm1003 = vcmp.ge.f32.partialorder %v985, 0.0
        %vm1004 = vcmp.ge.f32.partialorder %v987, 0.0
        %v1005 = vmul.f32 %v985, 0.2
        %v1006 = vmul.f32 %v987, 0.2
        %v1007 = vsel %vm1003, %v985, %v1005
        %v1008 = vsel %vm1004, %v987, %v1006
        %v1009 = vld [vmem:[#allocation8] sm:$0xff]
        %v1010 = vld [vmem:[#allocation8 + $0x8] sm:$0xff]
        %v1011 = vld [vmem:[#allocation8 + $0x10] sm:$0xff]
        %v1012 = vld [vmem:[#allocation8 + $0x18] sm:$0xff]
        %v1013 = vld [vmem:[#allocation8 + $0x20] sm:$0xff]
        %v1014 = vld [vmem:[#allocation8 + $0x28] sm:$0xff]
        %v1015 = vld [vmem:[#allocation8 + $0x30] sm:$0xff]
        %v1016 = vld [vmem:[#allocation8 + $0x38] sm:$0xff]
        %v1017 = vld [vmem:[#allocation8 + $0x40] sm:$0xff]
        %v1018 = vld [vmem:[#allocation8 + $0x48] sm:$0xff]
        %v1019 = vld [vmem:[#allocation8 + $0x50] sm:$0xff]
        %v1020 = vld [vmem:[#allocation8 + $0x58] sm:$0xff]
        %v1021 = vld [vmem:[#allocation8 + $0x60] sm:$0xff]
        %v1022 = vld [vmem:[#allocation8 + $0x68] sm:$0xff]
        %v1023 = vld [vmem:[#allocation8 + $0x70] sm:$0xff]
        %v1024 = vld [vmem:[#allocation8 + $0x78] sm:$0xff]
        %v1025 = vpack.c.bf16 %v867, %v866
        %v1026 = vpack.c.bf16 %v869, %v868
        %v1027 = vpack.c.bf16 %v871, %v870
        %v1044 = vunpack.c.l.b16 %v1009
        %v1045 = vunpack.c.h.b16 %v1009
        %v1046 = vunpack.c.l.b16 %v1010
        %v1047 = vunpack.c.h.b16 %v1010
        %v1048 = vunpack.c.l.b16 %v1011
        %v1049 = vunpack.c.h.b16 %v1011
        %v1050 = vunpack.c.l.b16 %v1012
        %v1051 = vunpack.c.h.b16 %v1012
        %v1052 = vunpack.c.l.b16 %v1013
        %v1053 = vunpack.c.h.b16 %v1013
        %v1054 = vunpack.c.l.b16 %v1014
        %v1055 = vunpack.c.h.b16 %v1014
        %v1056 = vunpack.c.l.b16 %v1015
        %v1057 = vunpack.c.h.b16 %v1015
        %v1058 = vunpack.c.l.b16 %v1016
        %v1059 = vunpack.c.h.b16 %v1016
        %v1060 = vunpack.c.l.b16 %v1017
        %v1061 = vunpack.c.h.b16 %v1017
        %v1062 = vunpack.c.l.b16 %v1018
        %v1063 = vunpack.c.h.b16 %v1018
        %v1064 = vunpack.c.l.b16 %v1019
        %v1065 = vunpack.c.h.b16 %v1019
        %v1066 = vunpack.c.l.b16 %v1020
        %v1067 = vunpack.c.h.b16 %v1020
        %v1068 = vunpack.c.l.b16 %v1021
        %v1069 = vunpack.c.h.b16 %v1021
        %v1070 = vunpack.c.l.b16 %v1022
        %v1071 = vunpack.c.h.b16 %v1022
        %v1072 = vunpack.c.l.b16 %v1023
        %v1073 = vunpack.c.h.b16 %v1023
        %v1074 = vunpack.c.l.b16 %v1024
        %v1075 = vunpack.c.h.b16 %v1024
        %v1076 = vpack.c.b16 %v1046, %v1044
        %v1077 = vpack.c.b16 %v1047, %v1045
        %v1078 = vpack.c.b16 %v1050, %v1048
        %v1079 = vpack.c.b16 %v1051, %v1049
        %v1080 = vpack.c.b16 %v1054, %v1052
        %v1081 = vpack.c.b16 %v1055, %v1053
        %v1082 = vpack.c.b16 %v1058, %v1056
        %v1083 = vpack.c.b16 %v1059, %v1057
        %v1084 = vpack.c.b16 %v1062, %v1060
        %v1085 = vpack.c.b16 %v1063, %v1061
        %v1086 = vpack.c.b16 %v1066, %v1064
        %v1087 = vpack.c.b16 %v1067, %v1065
        %v1088 = vpack.c.b16 %v1070, %v1068
        %v1089 = vpack.c.b16 %v1071, %v1069
        %v1090 = vpack.c.b16 %v1074, %v1072
        %v1091 = vpack.c.b16 %v1075, %v1073
        %1108 = vmatpush.bf16.msra.mxu0 %v1090
        %1109 = vmatpush.bf16.msra.mxu0 %v1088
        %1110 = vmatpush.bf16.msra.mxu0 %v1086
        %1111 = vmatpush.bf16.msra.mxu0 %v1084
        %1112 = vmatpush.bf16.msra.mxu0 %v1082
        %1113 = vmatpush.bf16.msra.mxu0 %v1080
        %1114 = vmatpush.bf16.msra.mxu0 %v1078
        %1115 = vmatpush.bf16.msra.mxu0 %v1076
        %1116 = vmatmul.bf16.gmra.mxu0 %v1025
        %v1117 = vpop.f32.mrf.mxu0
        %v1118 = vadd.f32 0.0, %v1117
        %v1119 = vpop.f32.mrf.mxu0
        %v1120 = vadd.f32 0.0, %v1119
        %1121 = vmatmul.bf16.gmra.mxu0 %v1026
        %v1122 = vpop.f32.mrf.mxu0
        %v1123 = vadd.f32 0.0, %v1122
        %v1124 = vpop.f32.mrf.mxu0
        %v1125 = vadd.f32 0.0, %v1124
        %1126 = vmatmul.bf16.gmra.mxu0 %v1027
        %v1127 = vpop.f32.mrf.mxu0
        %v1128 = vadd.f32 0.0, %v1127
        %v1129 = vpop.f32.mrf.mxu0
        %v1130 = vadd.f32 0.0, %v1129
        %1131 = vdwg.mxu0
        %1132 = vmatpush.bf16.msra.mxu0 %v1091
        %1133 = vmatpush.bf16.msra.mxu0 %v1089
        %1134 = vmatpush.bf16.msra.mxu0 %v1087
        %1135 = vmatpush.bf16.msra.mxu0 %v1085
        %1136 = vmatpush.bf16.msra.mxu0 %v1083
        %1137 = vmatpush.bf16.msra.mxu0 %v1081
        %1138 = vmatpush.bf16.msra.mxu0 %v1079
        %1139 = vmatpush.bf16.msra.mxu0 %v1077
        %1140 = vmatmul.bf16.gmra.mxu0 %v1025
        %v1141 = vpop.f32.mrf.mxu0
        %v1142 = vadd.f32 0.0, %v1141
        %v1143 = vpop.f32.mrf.mxu0
        %v1144 = vadd.f32 0.0, %v1143
        %1145 = vmatmul.bf16.gmra.mxu0 %v1026
        %v1146 = vpop.f32.mrf.mxu0
        %v1147 = vadd.f32 0.0, %v1146
        %v1148 = vpop.f32.mrf.mxu0
        %v1149 = vadd.f32 0.0, %v1148
        %1150 = vmatmul.bf16.gmra.mxu0 %v1027
        %v1151 = vpop.f32.mrf.mxu0
        %v1152 = vadd.f32 0.0, %v1151
        %v1153 = vpop.f32.mrf.mxu0
        %v1154 = vadd.f32 0.0, %v1153
        %1155 = vdwg.mxu0
        %v1156 = vld [vmem:[%s4] sm:$0xf]
        %v1157 = vld [vmem:[%s4 + $0x4] sm:$0xf]
        %v1158 = vld [vmem:[%s4 + $0x8] sm:$0xf]
        %v1159 = vld [vmem:[%s4 + $0xc] sm:$0xf]
        %v1160 = vld [vmem:[%s4 + $0x10] sm:$0xf]
        %v1161 = vld [vmem:[%s4 + $0x14] sm:$0xf]
        %v1162 = vld [vmem:[%s4 + $0x18] sm:$0xf]
        %v1163 = vld [vmem:[%s4 + $0x1c] sm:$0xf]
        %v1164 = vld [vmem:[%s4 + $0x20] sm:$0xf]
        %v1165 = vld [vmem:[%s4 + $0x24] sm:$0xf]
        %v1166 = vld [vmem:[%s4 + $0x28] sm:$0xf]
        %v1167 = vld [vmem:[%s4 + $0x2c] sm:$0xf]
        %v1168 = vld [vmem:[%s4 + $0x30] sm:$0xf]
        %v1169 = vld [vmem:[%s4 + $0x34] sm:$0xf]
        %v1170 = vld [vmem:[%s4 + $0x38] sm:$0xf]
        %v1171 = vld [vmem:[%s4 + $0x3c] sm:$0xf]
        %v1172 = vpack.c.bf16 %v1008, %v1007
        %v1173 = vld [vmem:[%s5] sm:$0x1]
        %v1175 = vperm.slane %v1173, 0
        %v1193 = vunpack.c.l.b16 %v1156
        %v1194 = vunpack.c.l.b16 %v1157
        %v1195 = vunpack.c.l.b16 %v1158
        %v1196 = vunpack.c.l.b16 %v1159
        %v1197 = vunpack.c.l.b16 %v1160
        %v1198 = vunpack.c.l.b16 %v1161
        %v1199 = vunpack.c.l.b16 %v1162
        %v1200 = vunpack.c.l.b16 %v1163
        %v1201 = vunpack.c.l.b16 %v1164
        %v1202 = vunpack.c.l.b16 %v1165
        %v1203 = vunpack.c.l.b16 %v1166
        %v1204 = vunpack.c.l.b16 %v1167
        %v1205 = vunpack.c.l.b16 %v1168
        %v1206 = vunpack.c.l.b16 %v1169
        %v1207 = vunpack.c.l.b16 %v1170
        %v1208 = vunpack.c.l.b16 %v1171
        %v1209 = vpack.c.b16 %v1194, %v1193
        %v1210 = vpack.c.b16 %v1196, %v1195
        %v1211 = vpack.c.b16 %v1198, %v1197
        %v1212 = vpack.c.b16 %v1200, %v1199
        %v1213 = vpack.c.b16 %v1202, %v1201
        %v1214 = vpack.c.b16 %v1204, %v1203
        %v1215 = vpack.c.b16 %v1206, %v1205
        %v1216 = vpack.c.b16 %v1208, %v1207
        %1225 = vmatpush.bf16.msra.mxu0 %v1216
        %1226 = vmatpush.bf16.msra.mxu0 %v1215
        %1227 = vmatpush.bf16.msra.mxu0 %v1214
        %1228 = vmatpush.bf16.msra.mxu0 %v1213
        %1229 = vmatpush.bf16.msra.mxu0 %v1212
        %1230 = vmatpush.bf16.msra.mxu0 %v1211
        %1231 = vmatpush.bf16.msra.mxu0 %v1210
        %1232 = vmatpush.bf16.msra.mxu0 %v1209
        %1233 = vmatmul.bf16.gmra.mxu0 %v1172
        %v1234 = vpop.f32.mrf.mxu0
        %v1235 = vadd.f32 %v1175, %v1234
        %v1236 = vpop.f32.mrf.mxu0
        %v1237 = vadd.f32 %v1175, %v1236
        %1238 = vdwg.mxu0
        %vm1239 = vcmp.ge.f32.partialorder %v1235, 0.0
        %vm1240 = vcmp.ge.f32.partialorder %v1237, 0.0
        %v1241 = vmul.f32 %v1235, 0.2
        %v1242 = vmul.f32 %v1237, 0.2
        %v1243 = vsel %vm1239, %v1235, %v1241
        %v1244 = vsel %vm1240, %v1237, %v1242
        %v1245 = vld [vmem:[#allocation7] sm:$0xf]
        %v1246 = vld [vmem:[#allocation7 + $0x4] sm:$0xf]
        %v1247 = vld [vmem:[#allocation7 + $0x8] sm:$0xf]
        %v1248 = vld [vmem:[#allocation7 + $0xc] sm:$0xf]
        %v1249 = vld [vmem:[#allocation7 + $0x10] sm:$0xf]
        %v1250 = vld [vmem:[#allocation7 + $0x14] sm:$0xf]
        %v1251 = vld [vmem:[#allocation7 + $0x18] sm:$0xf]
        %v1252 = vld [vmem:[#allocation7 + $0x1c] sm:$0xf]
        %v1253 = vld [vmem:[#allocation7 + $0x20] sm:$0xf]
        %v1254 = vld [vmem:[#allocation7 + $0x24] sm:$0xf]
        %v1255 = vld [vmem:[#allocation7 + $0x28] sm:$0xf]
        %v1256 = vld [vmem:[#allocation7 + $0x2c] sm:$0xf]
        %v1257 = vld [vmem:[#allocation7 + $0x30] sm:$0xf]
        %v1258 = vld [vmem:[#allocation7 + $0x34] sm:$0xf]
        %v1259 = vld [vmem:[#allocation7 + $0x38] sm:$0xf]
        %v1260 = vld [vmem:[#allocation7 + $0x3c] sm:$0xf]
        %v1261 = vpack.c.bf16 %v1244, %v1243
        %v1262 = vld [vmem:[%s7] sm:$0x1]
        %v1264 = vperm.slane %v1262, 0
        %v1282 = vunpack.c.l.b16 %v1245
        %v1283 = vunpack.c.l.b16 %v1246
        %v1284 = vunpack.c.l.b16 %v1247
        %v1285 = vunpack.c.l.b16 %v1248
        %v1286 = vunpack.c.l.b16 %v1249
        %v1287 = vunpack.c.l.b16 %v1250
        %v1288 = vunpack.c.l.b16 %v1251
        %v1289 = vunpack.c.l.b16 %v1252
        %v1290 = vunpack.c.l.b16 %v1253
        %v1291 = vunpack.c.l.b16 %v1254
        %v1292 = vunpack.c.l.b16 %v1255
        %v1293 = vunpack.c.l.b16 %v1256
        %v1294 = vunpack.c.l.b16 %v1257
        %v1295 = vunpack.c.l.b16 %v1258
        %v1296 = vunpack.c.l.b16 %v1259
        %v1297 = vunpack.c.l.b16 %v1260
        %v1298 = vpack.c.b16 %v1283, %v1282
        %v1299 = vpack.c.b16 %v1285, %v1284
        %v1300 = vpack.c.b16 %v1287, %v1286
        %v1301 = vpack.c.b16 %v1289, %v1288
        %v1302 = vpack.c.b16 %v1291, %v1290
        %v1303 = vpack.c.b16 %v1293, %v1292
        %v1304 = vpack.c.b16 %v1295, %v1294
        %v1305 = vpack.c.b16 %v1297, %v1296
        %1314 = vmatpush.bf16.msra.mxu0 %v1305
        %1315 = vmatpush.bf16.msra.mxu0 %v1304
        %1316 = vmatpush.bf16.msra.mxu0 %v1303
        %1317 = vmatpush.bf16.msra.mxu0 %v1302
        %1318 = vmatpush.bf16.msra.mxu0 %v1301
        %1319 = vmatpush.bf16.msra.mxu0 %v1300
        %1320 = vmatpush.bf16.msra.mxu0 %v1299
        %1321 = vmatpush.bf16.msra.mxu0 %v1298
        %1322 = vmatmul.bf16.gmra.mxu0 %v1261
        %v1323 = vpop.f32.mrf.mxu0
        %v1324 = vadd.f32 %v1264, %v1323
        %v1325 = vpop.f32.mrf.mxu0
        %v1326 = vadd.f32 %v1264, %v1325
        %1327 = vdwg.mxu0
        %v1328 = vmul.f32 %v1118, %v1118
        %v1329 = vmul.f32 %v1120, %v1120
        %v1330 = vmul.f32 %v1123, %v1123
        %v1331 = vmul.f32 %v1125, %v1125
        %v1332 = vmul.f32 %v1128, %v1128
        %v1333 = vmul.f32 %v1130, %v1130
        %v1334 = vadd.f32 %v1328, %v1330
        %v1335 = vadd.f32 %v1334, %v1332
        %v1336 = vadd.f32 %v1329, %v1331
        %v1337 = vadd.f32 %v1336, %v1333
        %v1338 = vadd.f32 %v1335, 1.0
        %v1339 = vadd.f32 %v1337, 1.0
        %v1340 = vrsqrt.pop %v1338
        %v1341 = vmul.f32 %v1340, %v1338
        %v1342 = vmul.f32 %v1341, %v1340
        %v1343 = vmul.f32 0.5, %v1342
        %v1344 = vsub.f32 1.5, %v1343
        %v1345 = vmul.f32 %v1340, %v1344
        %v1346 = vmul.f32 %v1338, %v1345
        %vm1347 = vcmp.eq.f32.partialorder %v1338, inf
        %v1348 = vsel %vm1347, %v1338, %v1346
        %vm1349 = vcmp.eq.f32.partialorder %v1338, 0.0
        %v1350 = vand.u32 %v1338, 2147483648
        %v1351 = vsel %vm1349, %v1350, %v1348
        %v1352 = vrsqrt.pop %v1339
        %v1353 = vmul.f32 %v1352, %v1339
        %v1354 = vmul.f32 %v1353, %v1352
        %v1355 = vmul.f32 0.5, %v1354
        %v1356 = vsub.f32 1.5, %v1355
        %v1357 = vmul.f32 %v1352, %v1356
        %v1358 = vmul.f32 %v1339, %v1357
        %vm1359 = vcmp.eq.f32.partialorder %v1339, inf
        %v1360 = vsel %vm1359, %v1339, %v1358
        %vm1361 = vcmp.eq.f32.partialorder %v1339, 0.0
        %v1362 = vand.u32 %v1339, 2147483648
        %v1363 = vsel %vm1361, %v1362, %v1360
        %v1364 = vrsqrt.pop %v1351
        %v1365 = vmul.f32 %v1364, %v1351
        %v1366 = vmul.f32 %v1365, %v1364
        %v1367 = vmul.f32 0.5, %v1366
        %v1368 = vsub.f32 1.5, %v1367
        %v1369 = vmul.f32 %v1364, %v1368
        %vm1370 = vweird.f32 %v1351
        %vm1371 = vweird.f32 %v1364
        %vm1372 = vmor %vm1370, %vm1371
        %v1373 = vsel %vm1372, %v1364, %v1369
        %v1374 = vrsqrt.pop %v1363
        %v1375 = vmul.f32 %v1374, %v1363
        %v1376 = vmul.f32 %v1375, %v1374
        %v1377 = vmul.f32 0.5, %v1376
        %v1378 = vsub.f32 1.5, %v1377
        %v1379 = vmul.f32 %v1374, %v1378
        %vm1380 = vweird.f32 %v1363
        %vm1381 = vweird.f32 %v1374
        %vm1382 = vmor %vm1380, %vm1381
        %v1383 = vsel %vm1382, %v1374, %v1379
        %v1384 = vmul.f32 %v1118, %v1373
        %v1385 = vmul.f32 %v1120, %v1383
        %v1386 = vmul.f32 %v1123, %v1373
        %v1387 = vmul.f32 %v1125, %v1383
        %v1388 = vmul.f32 %v1128, %v1373
        %v1389 = vmul.f32 %v1130, %v1383
        %v1390 = vld [vmem:[#allocation10] sm:$0xf]
        %v1391 = vld [vmem:[#allocation10 + $0x4] sm:$0xf]
        %v1392 = vld [vmem:[#allocation10 + $0x8] sm:$0xf]
        %v1393 = vld [vmem:[#allocation10 + $0xc] sm:$0xf]
        %v1394 = vld [vmem:[#allocation10 + $0x10] sm:$0xf]
        %v1395 = vld [vmem:[#allocation10 + $0x14] sm:$0xf]
        %v1396 = vld [vmem:[#allocation10 + $0x18] sm:$0xf]
        %v1397 = vld [vmem:[#allocation10 + $0x1c] sm:$0xf]
        %v1398 = vld [vmem:[#allocation10 + $0x20] sm:$0xf]
        %v1399 = vld [vmem:[#allocation10 + $0x24] sm:$0xf]
        %v1400 = vld [vmem:[#allocation10 + $0x28] sm:$0xf]
        %v1401 = vld [vmem:[#allocation10 + $0x2c] sm:$0xf]
        %v1402 = vld [vmem:[#allocation10 + $0x30] sm:$0xf]
        %v1403 = vld [vmem:[#allocation10 + $0x34] sm:$0xf]
        %v1404 = vld [vmem:[#allocation10 + $0x38] sm:$0xf]
        %v1405 = vld [vmem:[#allocation10 + $0x3c] sm:$0xf]
        %v1406 = vpack.c.bf16 %v1385, %v1384
        %v1407 = vpack.c.bf16 %v1387, %v1386
        %v1408 = vpack.c.bf16 %v1389, %v1388
        %v1425 = vunpack.c.l.b16 %v1390
        %v1426 = vunpack.c.l.b16 %v1391
        %v1427 = vunpack.c.l.b16 %v1392
        %v1428 = vunpack.c.l.b16 %v1393
        %v1429 = vunpack.c.l.b16 %v1394
        %v1430 = vunpack.c.l.b16 %v1395
        %v1431 = vunpack.c.l.b16 %v1396
        %v1432 = vunpack.c.l.b16 %v1397
        %v1433 = vunpack.c.l.b16 %v1398
        %v1434 = vunpack.c.l.b16 %v1399
        %v1435 = vunpack.c.l.b16 %v1400
        %v1436 = vunpack.c.l.b16 %v1401
        %v1437 = vunpack.c.l.b16 %v1402
        %v1438 = vunpack.c.l.b16 %v1403
        %v1439 = vunpack.c.l.b16 %v1404
        %v1440 = vunpack.c.l.b16 %v1405
        %v1441 = vpack.c.b16 %v1426, %v1425
        %v1442 = vpack.c.b16 %v1428, %v1427
        %v1443 = vpack.c.b16 %v1430, %v1429
        %v1444 = vpack.c.b16 %v1432, %v1431
        %v1445 = vpack.c.b16 %v1434, %v1433
        %v1446 = vpack.c.b16 %v1436, %v1435
        %v1447 = vpack.c.b16 %v1438, %v1437
        %v1448 = vpack.c.b16 %v1440, %v1439
        %1457 = vmatpush.bf16.msra.mxu0 %v1448
        %1458 = vmatpush.bf16.msra.mxu0 %v1447
        %1459 = vmatpush.bf16.msra.mxu0 %v1446
        %1460 = vmatpush.bf16.msra.mxu0 %v1445
        %1461 = vmatpush.bf16.msra.mxu0 %v1444
        %1462 = vmatpush.bf16.msra.mxu0 %v1443
        %1463 = vmatpush.bf16.msra.mxu0 %v1442
        %1464 = vmatpush.bf16.msra.mxu0 %v1441
        %1465 = vmatmul.bf16.gmra.mxu0 %v1406
        %v1466 = vpop.f32.mrf.mxu0
        %v1467 = vadd.f32 0.0, %v1466
        %v1468 = vpop.f32.mrf.mxu0
        %v1469 = vadd.f32 0.0, %v1468
        %1470 = vmatmul.bf16.gmra.mxu0 %v1407
        %v1471 = vpop.f32.mrf.mxu0
        %v1472 = vadd.f32 0.0, %v1471
        %v1473 = vpop.f32.mrf.mxu0
        %v1474 = vadd.f32 0.0, %v1473
        %1475 = vmatmul.bf16.gmra.mxu0 %v1408
        %v1476 = vpop.f32.mrf.mxu0
        %v1477 = vadd.f32 0.0, %v1476
        %v1478 = vpop.f32.mrf.mxu0
        %v1479 = vadd.f32 0.0, %v1478
        %1480 = vdwg.mxu0
        %v1481 = vmul.f32 %v1467, %v1467
        %v1482 = vmul.f32 %v1469, %v1469
        %v1483 = vmul.f32 %v1472, %v1472
        %v1484 = vmul.f32 %v1474, %v1474
        %v1485 = vmul.f32 %v1477, %v1477
        %v1486 = vmul.f32 %v1479, %v1479
        %v1487 = vadd.f32 %v1481, %v1483
        %v1488 = vadd.f32 %v1487, %v1485
        %v1489 = vadd.f32 %v1482, %v1484
        %v1490 = vadd.f32 %v1489, %v1486
        %v1491 = vadd.f32 %v1488, 1.0
        %v1492 = vadd.f32 %v1490, 1.0
        %v1493 = vrsqrt.pop %v1491
        %v1494 = vmul.f32 %v1493, %v1491
        %v1495 = vmul.f32 %v1494, %v1493
        %v1496 = vmul.f32 0.5, %v1495
        %v1497 = vsub.f32 1.5, %v1496
        %v1498 = vmul.f32 %v1493, %v1497
        %v1499 = vmul.f32 %v1491, %v1498
        %vm1500 = vcmp.eq.f32.partialorder %v1491, inf
        %v1501 = vsel %vm1500, %v1491, %v1499
        %vm1502 = vcmp.eq.f32.partialorder %v1491, 0.0
        %v1503 = vand.u32 %v1491, 2147483648
        %v1504 = vsel %vm1502, %v1503, %v1501
        %v1505 = vrsqrt.pop %v1492
        %v1506 = vmul.f32 %v1505, %v1492
        %v1507 = vmul.f32 %v1506, %v1505
        %v1508 = vmul.f32 0.5, %v1507
        %v1509 = vsub.f32 1.5, %v1508
        %v1510 = vmul.f32 %v1505, %v1509
        %v1511 = vmul.f32 %v1492, %v1510
        %vm1512 = vcmp.eq.f32.partialorder %v1492, inf
        %v1513 = vsel %vm1512, %v1492, %v1511
        %vm1514 = vcmp.eq.f32.partialorder %v1492, 0.0
        %v1515 = vand.u32 %v1492, 2147483648
        %v1516 = vsel %vm1514, %v1515, %v1513
        %v1517 = vrsqrt.pop %v1504
        %v1518 = vmul.f32 %v1517, %v1504
        %v1519 = vmul.f32 %v1518, %v1517
        %v1520 = vmul.f32 0.5, %v1519
        %v1521 = vsub.f32 1.5, %v1520
        %v1522 = vmul.f32 %v1517, %v1521
        %vm1523 = vweird.f32 %v1504
        %vm1524 = vweird.f32 %v1517
        %vm1525 = vmor %vm1523, %vm1524
        %v1526 = vsel %vm1525, %v1517, %v1522
        %v1527 = vrsqrt.pop %v1516
        %v1528 = vmul.f32 %v1527, %v1516
        %v1529 = vmul.f32 %v1528, %v1527
        %v1530 = vmul.f32 0.5, %v1529
        %v1531 = vsub.f32 1.5, %v1530
        %v1532 = vmul.f32 %v1527, %v1531
        %vm1533 = vweird.f32 %v1516
        %vm1534 = vweird.f32 %v1527
        %vm1535 = vmor %vm1533, %vm1534
        %v1536 = vsel %vm1535, %v1527, %v1532
        %v1537 = vmul.f32 %v1467, %v1526
        %v1538 = vmul.f32 %v1469, %v1536
        %v1539 = vmul.f32 %v1472, %v1526
        %v1540 = vmul.f32 %v1474, %v1536
        %v1541 = vmul.f32 %v1477, %v1526
        %v1542 = vmul.f32 %v1479, %v1536
        %v1543 = vld [vmem:[#allocation11] sm:$0xf]
        %v1544 = vld [vmem:[#allocation11 + $0x4] sm:$0xf]
        %v1545 = vld [vmem:[#allocation11 + $0x8] sm:$0xf]
        %v1546 = vld [vmem:[#allocation11 + $0xc] sm:$0xf]
        %v1547 = vld [vmem:[#allocation11 + $0x10] sm:$0xf]
        %v1548 = vld [vmem:[#allocation11 + $0x14] sm:$0xf]
        %v1549 = vld [vmem:[#allocation11 + $0x18] sm:$0xf]
        %v1550 = vld [vmem:[#allocation11 + $0x1c] sm:$0xf]
        %v1551 = vld [vmem:[#allocation11 + $0x20] sm:$0xf]
        %v1552 = vld [vmem:[#allocation11 + $0x24] sm:$0xf]
        %v1553 = vld [vmem:[#allocation11 + $0x28] sm:$0xf]
        %v1554 = vld [vmem:[#allocation11 + $0x2c] sm:$0xf]
        %v1555 = vld [vmem:[#allocation11 + $0x30] sm:$0xf]
        %v1556 = vld [vmem:[#allocation11 + $0x34] sm:$0xf]
        %v1557 = vld [vmem:[#allocation11 + $0x38] sm:$0xf]
        %v1558 = vld [vmem:[#allocation11 + $0x3c] sm:$0xf]
        %v1559 = vpack.c.bf16 %v1538, %v1537
        %v1560 = vpack.c.bf16 %v1540, %v1539
        %v1561 = vpack.c.bf16 %v1542, %v1541
        %v1562 = vmul.f32 %v999, %v1142
        %v1563 = vmul.f32 %v1001, %v1144
        %v1564 = vmul.f32 %v999, %v1147
        %v1565 = vmul.f32 %v1001, %v1149
        %v1566 = vmul.f32 %v999, %v1152
        %v1567 = vmul.f32 %v1001, %v1154
        %v1568 = vld [vmem:[#allocation13] sm:$0xf]
        %v1569 = vld [vmem:[#allocation13 + $0x4] sm:$0xf]
        %v1570 = vld [vmem:[#allocation13 + $0x8] sm:$0xf]
        %v1571 = vld [vmem:[#allocation13 + $0xc] sm:$0xf]
        %v1572 = vld [vmem:[#allocation13 + $0x10] sm:$0xf]
        %v1573 = vld [vmem:[#allocation13 + $0x14] sm:$0xf]
        %v1574 = vld [vmem:[#allocation13 + $0x18] sm:$0xf]
        %v1575 = vld [vmem:[#allocation13 + $0x1c] sm:$0xf]
        %v1576 = vld [vmem:[#allocation13 + $0x20] sm:$0xf]
        %v1577 = vld [vmem:[#allocation13 + $0x24] sm:$0xf]
        %v1578 = vld [vmem:[#allocation13 + $0x28] sm:$0xf]
        %v1579 = vld [vmem:[#allocation13 + $0x2c] sm:$0xf]
        %v1580 = vld [vmem:[#allocation13 + $0x30] sm:$0xf]
        %v1581 = vld [vmem:[#allocation13 + $0x34] sm:$0xf]
        %v1582 = vld [vmem:[#allocation13 + $0x38] sm:$0xf]
        %v1583 = vld [vmem:[#allocation13 + $0x3c] sm:$0xf]
        %v1584 = vpack.c.bf16 %v1563, %v1562
        %v1585 = vpack.c.bf16 %v1565, %v1564
        %v1586 = vpack.c.bf16 %v1567, %v1566
        %v1603 = vunpack.c.l.b16 %v1568
        %v1604 = vunpack.c.l.b16 %v1569
        %v1605 = vunpack.c.l.b16 %v1570
        %v1606 = vunpack.c.l.b16 %v1571
        %v1607 = vunpack.c.l.b16 %v1572
        %v1608 = vunpack.c.l.b16 %v1573
        %v1609 = vunpack.c.l.b16 %v1574
        %v1610 = vunpack.c.l.b16 %v1575
        %v1611 = vunpack.c.l.b16 %v1576
        %v1612 = vunpack.c.l.b16 %v1577
        %v1613 = vunpack.c.l.b16 %v1578
        %v1614 = vunpack.c.l.b16 %v1579
        %v1615 = vunpack.c.l.b16 %v1580
        %v1616 = vunpack.c.l.b16 %v1581
        %v1617 = vunpack.c.l.b16 %v1582
        %v1618 = vunpack.c.l.b16 %v1583
        %v1619 = vpack.c.b16 %v1604, %v1603
        %v1620 = vpack.c.b16 %v1606, %v1605
        %v1621 = vpack.c.b16 %v1608, %v1607
        %v1622 = vpack.c.b16 %v1610, %v1609
        %v1623 = vpack.c.b16 %v1612, %v1611
        %v1624 = vpack.c.b16 %v1614, %v1613
        %v1625 = vpack.c.b16 %v1616, %v1615
        %v1626 = vpack.c.b16 %v1618, %v1617
        %1635 = vmatpush.bf16.msra.mxu0 %v1626
        %1636 = vmatpush.bf16.msra.mxu0 %v1625
        %1637 = vmatpush.bf16.msra.mxu0 %v1624
        %1638 = vmatpush.bf16.msra.mxu0 %v1623
        %1639 = vmatpush.bf16.msra.mxu0 %v1622
        %1640 = vmatpush.bf16.msra.mxu0 %v1621
        %1641 = vmatpush.bf16.msra.mxu0 %v1620
        %1642 = vmatpush.bf16.msra.mxu0 %v1619
        %1643 = vmatmul.bf16.gmra.mxu0 %v1584
        %v1644 = vpop.f32.mrf.mxu0
        %v1645 = vadd.f32 0.0, %v1644
        %v1646 = vpop.f32.mrf.mxu0
        %v1647 = vadd.f32 0.0, %v1646
        %1648 = vmatmul.bf16.gmra.mxu0 %v1585
        %v1649 = vpop.f32.mrf.mxu0
        %v1650 = vadd.f32 0.0, %v1649
        %v1651 = vpop.f32.mrf.mxu0
        %v1652 = vadd.f32 0.0, %v1651
        %1653 = vmatmul.bf16.gmra.mxu0 %v1586
        %v1654 = vpop.f32.mrf.mxu0
        %v1655 = vadd.f32 0.0, %v1654
        %v1656 = vpop.f32.mrf.mxu0
        %v1657 = vadd.f32 0.0, %v1656
        %1658 = vdwg.mxu0
        %v1659 = vmul.f32 %v1142, %v1142
        %v1660 = vmul.f32 %v1144, %v1144
        %v1661 = vmul.f32 %v1147, %v1147
        %v1662 = vmul.f32 %v1149, %v1149
        %v1663 = vmul.f32 %v1152, %v1152
        %v1664 = vmul.f32 %v1154, %v1154
        %v1665 = vadd.f32 %v1659, %v1661
        %v1666 = vadd.f32 %v1665, %v1663
        %v1667 = vadd.f32 %v1660, %v1662
        %v1668 = vadd.f32 %v1667, %v1664
        %v1669 = vld [vmem:[#allocation14] sm:$0xf]
        %v1670 = vld [vmem:[#allocation14 + $0x4] sm:$0xf]
        %v1671 = vld [vmem:[#allocation14 + $0x8] sm:$0xf]
        %v1672 = vld [vmem:[#allocation14 + $0xc] sm:$0xf]
        %v1673 = vld [vmem:[#allocation14 + $0x10] sm:$0xf]
        %v1674 = vld [vmem:[#allocation14 + $0x14] sm:$0xf]
        %v1675 = vld [vmem:[#allocation14 + $0x18] sm:$0xf]
        %v1676 = vld [vmem:[#allocation14 + $0x1c] sm:$0xf]
        %v1677 = vld [vmem:[#allocation14 + $0x20] sm:$0xf]
        %v1678 = vld [vmem:[#allocation14 + $0x24] sm:$0xf]
        %v1679 = vld [vmem:[#allocation14 + $0x28] sm:$0xf]
        %v1680 = vld [vmem:[#allocation14 + $0x2c] sm:$0xf]
        %v1681 = vld [vmem:[#allocation14 + $0x30] sm:$0xf]
        %v1682 = vld [vmem:[#allocation14 + $0x34] sm:$0xf]
        %v1683 = vld [vmem:[#allocation14 + $0x38] sm:$0xf]
        %v1684 = vld [vmem:[#allocation14 + $0x3c] sm:$0xf]
        %v1685 = vpack.c.bf16 %v1668, %v1666
        %v1686 = vld [vmem:[%s13] sm:$0x1]
        %v1688 = vperm.slane %v1686, 0
        %v1706 = vunpack.c.l.b16 %v1669
        %v1707 = vunpack.c.l.b16 %v1670
        %v1708 = vunpack.c.l.b16 %v1671
        %v1709 = vunpack.c.l.b16 %v1672
        %v1710 = vunpack.c.l.b16 %v1673
        %v1711 = vunpack.c.l.b16 %v1674
        %v1712 = vunpack.c.l.b16 %v1675
        %v1713 = vunpack.c.l.b16 %v1676
        %v1714 = vunpack.c.l.b16 %v1677
        %v1715 = vunpack.c.l.b16 %v1678
        %v1716 = vunpack.c.l.b16 %v1679
        %v1717 = vunpack.c.l.b16 %v1680
        %v1718 = vunpack.c.l.b16 %v1681
        %v1719 = vunpack.c.l.b16 %v1682
        %v1720 = vunpack.c.l.b16 %v1683
        %v1721 = vunpack.c.l.b16 %v1684
        %v1722 = vpack.c.b16 %v1707, %v1706
        %v1723 = vpack.c.b16 %v1709, %v1708
        %v1724 = vpack.c.b16 %v1711, %v1710
        %v1725 = vpack.c.b16 %v1713, %v1712
        %v1726 = vpack.c.b16 %v1715, %v1714
        %v1727 = vpack.c.b16 %v1717, %v1716
        %v1728 = vpack.c.b16 %v1719, %v1718
        %v1729 = vpack.c.b16 %v1721, %v1720
        %1738 = vmatpush.bf16.msra.mxu0 %v1729
        %1739 = vmatpush.bf16.msra.mxu0 %v1728
        %1740 = vmatpush.bf16.msra.mxu0 %v1727
        %1741 = vmatpush.bf16.msra.mxu0 %v1726
        %1742 = vmatpush.bf16.msra.mxu0 %v1725
        %1743 = vmatpush.bf16.msra.mxu0 %v1724
        %1744 = vmatpush.bf16.msra.mxu0 %v1723
        %1745 = vmatpush.bf16.msra.mxu0 %v1722
        %1746 = vmatmul.bf16.gmra.mxu0 %v1685
        %v1747 = vpop.f32.mrf.mxu0
        %v1748 = vadd.f32 %v1688, %v1747
        %v1749 = vpop.f32.mrf.mxu0
        %v1750 = vadd.f32 %v1688, %v1749
        %1751 = vdwg.mxu0
        %v1752 = vadd.f32 %v1324, %v1748
        %v1753 = vadd.f32 %v1326, %v1750
        %v1754 = vld [vmem:[#allocation16] sm:$0xf]
        %v1755 = vld [vmem:[#allocation16 + $0x4] sm:$0xf]
        %v1756 = vld [vmem:[#allocation16 + $0x8] sm:$0xf]
        %v1757 = vld [vmem:[#allocation16 + $0xc] sm:$0xf]
        %v1758 = vld [vmem:[#allocation16 + $0x10] sm:$0xf]
        %v1759 = vld [vmem:[#allocation16 + $0x14] sm:$0xf]
        %v1760 = vld [vmem:[#allocation16 + $0x18] sm:$0xf]
        %v1761 = vld [vmem:[#allocation16 + $0x1c] sm:$0xf]
        %v1762 = vld [vmem:[#allocation16 + $0x20] sm:$0xf]
        %v1763 = vld [vmem:[#allocation16 + $0x24] sm:$0xf]
        %v1764 = vld [vmem:[#allocation16 + $0x28] sm:$0xf]
        %v1765 = vld [vmem:[#allocation16 + $0x2c] sm:$0xf]
        %v1766 = vld [vmem:[#allocation16 + $0x30] sm:$0xf]
        %v1767 = vld [vmem:[#allocation16 + $0x34] sm:$0xf]
        %v1768 = vld [vmem:[#allocation16 + $0x38] sm:$0xf]
        %v1769 = vld [vmem:[#allocation16 + $0x3c] sm:$0xf]
        %v1770 = vpack.c.bf16 %v1753, %v1752
        %v1787 = vunpack.c.l.b16 %v1754
        %v1788 = vunpack.c.l.b16 %v1755
        %v1789 = vunpack.c.l.b16 %v1756
        %v1790 = vunpack.c.l.b16 %v1757
        %v1791 = vunpack.c.l.b16 %v1758
        %v1792 = vunpack.c.l.b16 %v1759
        %v1793 = vunpack.c.l.b16 %v1760
        %v1794 = vunpack.c.l.b16 %v1761
        %v1795 = vunpack.c.l.b16 %v1762
        %v1796 = vunpack.c.l.b16 %v1763
        %v1797 = vunpack.c.l.b16 %v1764
        %v1798 = vunpack.c.l.b16 %v1765
        %v1799 = vunpack.c.l.b16 %v1766
        %v1800 = vunpack.c.l.b16 %v1767
        %v1801 = vunpack.c.l.b16 %v1768
        %v1802 = vunpack.c.l.b16 %v1769
        %v1803 = vpack.c.b16 %v1788, %v1787
        %v1804 = vpack.c.b16 %v1790, %v1789
        %v1805 = vpack.c.b16 %v1792, %v1791
        %v1806 = vpack.c.b16 %v1794, %v1793
        %v1807 = vpack.c.b16 %v1796, %v1795
        %v1808 = vpack.c.b16 %v1798, %v1797
        %v1809 = vpack.c.b16 %v1800, %v1799
        %v1810 = vpack.c.b16 %v1802, %v1801
        %1819 = vmatpush.bf16.msra.mxu0 %v1810
        %1820 = vmatpush.bf16.msra.mxu0 %v1809
        %1821 = vmatpush.bf16.msra.mxu0 %v1808
        %1822 = vmatpush.bf16.msra.mxu0 %v1807
        %1823 = vmatpush.bf16.msra.mxu0 %v1806
        %1824 = vmatpush.bf16.msra.mxu0 %v1805
        %1825 = vmatpush.bf16.msra.mxu0 %v1804
        %1826 = vmatpush.bf16.msra.mxu0 %v1803
        %1827 = vmatmul.bf16.gmra.mxu0 %v1770
        %v1828 = vpop.f32.mrf.mxu0
        %v1829 = vadd.f32 0.0, %v1828
        %v1830 = vpop.f32.mrf.mxu0
        %v1831 = vadd.f32 0.0, %v1830
        %1832 = vdwg.mxu0
        %v1833 = vmul.f32 %v1829, 0.25
        %v1834 = vmul.f32 %v1831, 0.25
        %v1835 = vsub.f32 %v1752, %v1833
        %v1836 = vsub.f32 %v1753, %v1834
        %v1837 = vmul.f32 %v1835, %v1835
        %v1838 = vmul.f32 %v1836, %v1836
        %v1839 = vpack.c.bf16 %v1838, %v1837
        %1840 = vmatpush.bf16.msra.mxu0 %v1810
        %1841 = vmatpush.bf16.msra.mxu0 %v1809
        %1842 = vmatpush.bf16.msra.mxu0 %v1808
        %1843 = vmatpush.bf16.msra.mxu0 %v1807
        %1844 = vmatpush.bf16.msra.mxu0 %v1806
        %1845 = vmatpush.bf16.msra.mxu0 %v1805
        %1846 = vmatpush.bf16.msra.mxu0 %v1804
        %1847 = vmatpush.bf16.msra.mxu0 %v1803
        %1848 = vmatmul.bf16.gmra.mxu0 %v1839
        %v1849 = vpop.f32.mrf.mxu0
        %v1850 = vadd.f32 0.0, %v1849
        %v1851 = vpop.f32.mrf.mxu0
        %v1852 = vadd.f32 0.0, %v1851
        %1853 = vdwg.mxu0
        %v1854 = vmul.f32 %v1850, 0.25
        %v1855 = vmul.f32 %v1852, 0.25
        %v1856 = vadd.f32 %v1854, 1e-05
        %v1857 = vadd.f32 %v1855, 1e-05
        %v1858 = vrsqrt.pop %v1856
        %v1859 = vmul.f32 %v1858, %v1856
        %v1860 = vmul.f32 %v1859, %v1858
        %v1861 = vmul.f32 0.5, %v1860
        %v1862 = vsub.f32 1.5, %v1861
        %v1863 = vmul.f32 %v1858, %v1862
        %vm1864 = vweird.f32 %v1856
        %vm1865 = vweird.f32 %v1858
        %vm1866 = vmor %vm1864, %vm1865
        %v1867 = vsel %vm1866, %v1858, %v1863
        %v1868 = vrsqrt.pop %v1857
        %v1869 = vmul.f32 %v1868, %v1857
        %v1870 = vmul.f32 %v1869, %v1868
        %v1871 = vmul.f32 0.5, %v1870
        %v1872 = vsub.f32 1.5, %v1871
        %v1873 = vmul.f32 %v1868, %v1872
        %vm1874 = vweird.f32 %v1857
        %vm1875 = vweird.f32 %v1868
        %vm1876 = vmor %vm1874, %vm1875
        %v1877 = vsel %vm1876, %v1868, %v1873
        %v1878 = vmul.f32 %v1835, %v1867
        %v1879 = vmul.f32 %v1836, %v1877
        %v1880 = vld [vmem:[%s14] sm:$0x1]
        %v1882 = vperm.slane %v1880, 0
        %v1884 = vmul.f32 %v1878, %v1882
        %v1885 = vmul.f32 %v1879, %v1882
        %v1886 = vld [vmem:[%s15] sm:$0x1]
        %v1888 = vperm.slane %v1886, 0
        %v1890 = vadd.f32 %v1884, %v1888
        %v1891 = vadd.f32 %v1885, %v1888
        %v1908 = vunpack.c.l.b16 %v1543
        %v1909 = vunpack.c.l.b16 %v1544
        %v1910 = vunpack.c.l.b16 %v1545
        %v1911 = vunpack.c.l.b16 %v1546
        %v1912 = vunpack.c.l.b16 %v1547
        %v1913 = vunpack.c.l.b16 %v1548
        %v1914 = vunpack.c.l.b16 %v1549
        %v1915 = vunpack.c.l.b16 %v1550
        %v1916 = vunpack.c.l.b16 %v1551
        %v1917 = vunpack.c.l.b16 %v1552
        %v1918 = vunpack.c.l.b16 %v1553
        %v1919 = vunpack.c.l.b16 %v1554
        %v1920 = vunpack.c.l.b16 %v1555
        %v1921 = vunpack.c.l.b16 %v1556
        %v1922 = vunpack.c.l.b16 %v1557
        %v1923 = vunpack.c.l.b16 %v1558
        %v1924 = vpack.c.b16 %v1909, %v1908
        %v1925 = vpack.c.b16 %v1911, %v1910
        %v1926 = vpack.c.b16 %v1913, %v1912
        %v1927 = vpack.c.b16 %v1915, %v1914
        %v1928 = vpack.c.b16 %v1917, %v1916
        %v1929 = vpack.c.b16 %v1919, %v1918
        %v1930 = vpack.c.b16 %v1921, %v1920
        %v1931 = vpack.c.b16 %v1923, %v1922
        %1940 = vmatpush.bf16.msra.mxu0 %v1931
        %1941 = vmatpush.bf16.msra.mxu0 %v1930
        %1942 = vmatpush.bf16.msra.mxu0 %v1929
        %1943 = vmatpush.bf16.msra.mxu0 %v1928
        %1944 = vmatpush.bf16.msra.mxu0 %v1927
        %1945 = vmatpush.bf16.msra.mxu0 %v1926
        %1946 = vmatpush.bf16.msra.mxu0 %v1925
        %1947 = vmatpush.bf16.msra.mxu0 %v1924
        %1948 = vmatmul.bf16.gmra.mxu0 %v1559
        %v1949 = vpop.f32.mrf.mxu0
        %v1950 = vadd.f32 %v1645, %v1949
        %v1951 = vpop.f32.mrf.mxu0
        %v1952 = vadd.f32 %v1647, %v1951
        %1953 = vmatmul.bf16.gmra.mxu0 %v1560
        %v1954 = vpop.f32.mrf.mxu0
        %v1955 = vadd.f32 %v1650, %v1954
        %v1956 = vpop.f32.mrf.mxu0
        %v1957 = vadd.f32 %v1652, %v1956
        %1958 = vmatmul.bf16.gmra.mxu0 %v1561
        %v1959 = vpop.f32.mrf.mxu0
        %v1960 = vadd.f32 %v1655, %v1959
        %v1961 = vpop.f32.mrf.mxu0
        %v1962 = vadd.f32 %v1657, %v1961
        %1963 = vdwg.mxu0
        %v1964 = vmul.f32 %v1950, %v1950
        %v1965 = vmul.f32 %v1952, %v1952
        %v1966 = vmul.f32 %v1955, %v1955
        %v1967 = vmul.f32 %v1957, %v1957
        %v1968 = vmul.f32 %v1960, %v1960
        %v1969 = vmul.f32 %v1962, %v1962
        %v1970 = vadd.f32 %v1964, %v1966
        %v1971 = vadd.f32 %v1970, %v1968
        %v1972 = vadd.f32 %v1965, %v1967
        %v1973 = vadd.f32 %v1972, %v1969
        %v1974 = vld [vmem:[#allocation17] sm:$0xf]
        %v1975 = vld [vmem:[#allocation17 + $0x4] sm:$0xf]
        %v1976 = vld [vmem:[#allocation17 + $0x8] sm:$0xf]
        %v1977 = vld [vmem:[#allocation17 + $0xc] sm:$0xf]
        %v1978 = vld [vmem:[#allocation17 + $0x10] sm:$0xf]
        %v1979 = vld [vmem:[#allocation17 + $0x14] sm:$0xf]
        %v1980 = vld [vmem:[#allocation17 + $0x18] sm:$0xf]
        %v1981 = vld [vmem:[#allocation17 + $0x1c] sm:$0xf]
        %v1982 = vld [vmem:[#allocation17 + $0x20] sm:$0xf]
        %v1983 = vld [vmem:[#allocation17 + $0x24] sm:$0xf]
        %v1984 = vld [vmem:[#allocation17 + $0x28] sm:$0xf]
        %v1985 = vld [vmem:[#allocation17 + $0x2c] sm:$0xf]
        %v1986 = vld [vmem:[#allocation17 + $0x30] sm:$0xf]
        %v1987 = vld [vmem:[#allocation17 + $0x34] sm:$0xf]
        %v1988 = vld [vmem:[#allocation17 + $0x38] sm:$0xf]
        %v1989 = vld [vmem:[#allocation17 + $0x3c] sm:$0xf]
        %v1990 = vpack.c.bf16 %v1973, %v1971
        %v2007 = vunpack.c.l.b16 %v1974
        %v2008 = vunpack.c.l.b16 %v1975
        %v2009 = vunpack.c.l.b16 %v1976
        %v2010 = vunpack.c.l.b16 %v1977
        %v2011 = vunpack.c.l.b16 %v1978
        %v2012 = vunpack.c.l.b16 %v1979
        %v2013 = vunpack.c.l.b16 %v1980
        %v2014 = vunpack.c.l.b16 %v1981
        %v2015 = vunpack.c.l.b16 %v1982
        %v2016 = vunpack.c.l.b16 %v1983
        %v2017 = vunpack.c.l.b16 %v1984
        %v2018 = vunpack.c.l.b16 %v1985
        %v2019 = vunpack.c.l.b16 %v1986
        %v2020 = vunpack.c.l.b16 %v1987
        %v2021 = vunpack.c.l.b16 %v1988
        %v2022 = vunpack.c.l.b16 %v1989
        %v2023 = vpack.c.b16 %v2008, %v2007
        %v2024 = vpack.c.b16 %v2010, %v2009
        %v2025 = vpack.c.b16 %v2012, %v2011
        %v2026 = vpack.c.b16 %v2014, %v2013
        %v2027 = vpack.c.b16 %v2016, %v2015
        %v2028 = vpack.c.b16 %v2018, %v2017
        %v2029 = vpack.c.b16 %v2020, %v2019
        %v2030 = vpack.c.b16 %v2022, %v2021
        %2039 = vmatpush.bf16.msra.mxu0 %v2030
        %2040 = vmatpush.bf16.msra.mxu0 %v2029
        %2041 = vmatpush.bf16.msra.mxu0 %v2028
        %2042 = vmatpush.bf16.msra.mxu0 %v2027
        %2043 = vmatpush.bf16.msra.mxu0 %v2026
        %2044 = vmatpush.bf16.msra.mxu0 %v2025
        %2045 = vmatpush.bf16.msra.mxu0 %v2024
        %2046 = vmatpush.bf16.msra.mxu0 %v2023
        %2047 = vmatmul.bf16.gmra.mxu0 %v1990
        %v2048 = vpop.f32.mrf.mxu0
        %v2049 = vadd.f32 0.0, %v2048
        %v2050 = vpop.f32.mrf.mxu0
        %v2051 = vadd.f32 0.0, %v2050
        %2052 = vdwg.mxu0
        %v2053 = vmul.f32 %v2049, 0.25
        %v2054 = vmul.f32 %v2051, 0.25
        %v2055 = vadd.f32 %v2053, 1e-05
        %v2056 = vadd.f32 %v2054, 1e-05
        %v2057 = vrsqrt.pop %v2055
        %v2058 = vmul.f32 %v2057, %v2055
        %v2059 = vmul.f32 %v2058, %v2057
        %v2060 = vmul.f32 0.5, %v2059
        %v2061 = vsub.f32 1.5, %v2060
        %v2062 = vmul.f32 %v2057, %v2061
        %vm2063 = vweird.f32 %v2055
        %vm2064 = vweird.f32 %v2057
        %vm2065 = vmor %vm2063, %vm2064
        %v2066 = vsel %vm2065, %v2057, %v2062
        %v2067 = vrsqrt.pop %v2056
        %v2068 = vmul.f32 %v2067, %v2056
        %v2069 = vmul.f32 %v2068, %v2067
        %v2070 = vmul.f32 0.5, %v2069
        %v2071 = vsub.f32 1.5, %v2070
        %v2072 = vmul.f32 %v2067, %v2071
        %vm2073 = vweird.f32 %v2056
        %vm2074 = vweird.f32 %v2067
        %vm2075 = vmor %vm2073, %vm2074
        %v2076 = vsel %vm2075, %v2067, %v2072
        %v2077 = vld [vmem:[%s16] sm:$0x1]
        %v2079 = vperm.slane %v2077, 0
        %v2081 = vmul.f32 %v2066, %v2079
        %v2082 = vmul.f32 %v2076, %v2079
        %v2083 = vadd.f32 %v864, %v1890
        %v2084 = vadd.f32 %v865, %v1891
        %2085 = vst [vmem:[%s852] sm:$0xff] %v2083
        %2086 = vst [vmem:[%s852 + $0x8] sm:$0xff] %v2084
        %v2087 = vmul.f32 %v1950, %v2081
        %v2088 = vmul.f32 %v1952, %v2082
        %v2089 = vmul.f32 %v1955, %v2081
        %v2090 = vmul.f32 %v1957, %v2082
        %v2091 = vmul.f32 %v1960, %v2081
        %v2092 = vmul.f32 %v1962, %v2082
        %v2093 = vadd.f32 %v866, %v2087
        %v2094 = vadd.f32 %v867, %v2088
        %v2095 = vadd.f32 %v868, %v2089
        %v2096 = vadd.f32 %v869, %v2090
        %v2097 = vadd.f32 %v870, %v2091
        %v2098 = vadd.f32 %v871, %v2092
        %2099 = vst [vmem:[%s859] sm:$0xff] %v2093
        %2100 = vst [vmem:[%s859 + $0x8] sm:$0xff] %v2094
        %2101 = vst [vmem:[%s859 + $0x10] sm:$0xff] %v2095
        %2102 = vst [vmem:[%s859 + $0x18] sm:$0xff] %v2096
        %2103 = vst [vmem:[%s859 + $0x20] sm:$0xff] %v2097
        %2104 = vst [vmem:[%s859 + $0x28] sm:$0xff] %v2098
        %s2105 = sand.u32 %s465, 1
        %s2106 = scalar_lea.sflag [#allocation4], %s2105
        %s2107 = sand.u32 %s465, 1
        %s2108 = smul.addr %s2107, 16
        %s2109 = scalar_lea.vmem [#allocation19], %s2108
        %s2110 = sand.u32 %s491, 1
        %s2111 = scalar_lea.sflag [#allocation21], %s2110
        %s2112 = sand.u32 %s491, 1
        %s2113 = smul.addr %s2112, 48
        %s2114 = scalar_lea.vmem [#allocation20], %s2113
        // Predicated region
        $region137: #{tpu_custom_call.1} parent=95 // pred_check
          %p2115 = pneg %p475
        $region138: #{tpu_custom_call.1} parent=95 // pred_check_branch
          %2117 = sbr.rel (%p2115) target = $region140
        $region139: #{tpu_custom_call.1} parent=95 // pred_region
          %s2118 = smul.u32 2, %s48
          %2120 = vsyncadd %s2106, 0
          %s2121 = smul.addr %s2118, 8
          %s2122 = scalar_lea.hbm %s19, %s2121
          %s2123 = sshll.u32 %s2109, 4
          %s2124 = int_to_ptr.vmem [resolvable:$true] %s2123
          %s2125 = sshll.u32 %s2122, 4
          %s2126 = int_to_ptr.hbm [resolvable:$true] %s2125
          %2131 = dma.vmem_to_hbm [thread:$0]  %s2124, 256, %s2126, %s2106, 128, 128, 8
        $region140: #{tpu_custom_call.1} parent=95 // pred_fallthru
          _
        // Predicated region
        $region141: #{tpu_custom_call.1} parent=95 // pred_check
          %p2132 = pneg %p501
        $region142: #{tpu_custom_call.1} parent=95 // pred_check_branch
          %2134 = sbr.rel (%p2132) target = $region144
        $region143: #{tpu_custom_call.1} parent=95 // pred_region
          #allocation25 [shape = 'u32[6]{0}', space=smem, size = 0x18, scoped, tag = 'DMA stride descriptor']
          %s2135 = smul.u32 2, %s48
          %2137 = vsyncadd %s2111, 0
          %s2138 = smul.addr %s2135, 8
          %s2139 = scalar_lea.hbm %s20, %s2138
          %s2141 = sshll.u32 1, 14
          %s2142 = sxor.u32 4294967295, %s2141
          %s2145 = sshll.u32 7, 18
          %s2146 = sxor.u32 4294967295, %s2145
          %s2147 = sand.u32 0, %s2146
          %s2149 = sor.u32 %s2147, 0
          %s2150 = sshll.u32 %s2114, 4
          %s2151 = int_to_ptr.vmem [resolvable:$true] %s2150
          %s2152 = sshll.u32 %s2139, 4
          %s2153 = int_to_ptr.hbm [resolvable:$true] %s2152
          %2159 = sst [smem:[#allocation25]] 256
          %s2160 = scalar_lea.smem [#allocation25], 1
          %2161 = sst [smem:[%s2160]] 512
          %s2162 = scalar_lea.smem [#allocation25], 2
          %2163 = sst [smem:[%s2162]] 2
          %s2164 = scalar_lea.smem [#allocation25], 3
          %2165 = sst [smem:[%s2164]] 128
          %s2166 = scalar_lea.smem [#allocation25], 4
          %2167 = sst [smem:[%s2166]] 128
          %s2168 = scalar_lea.smem [#allocation25], 5
          %2169 = sst [smem:[%s2168]] 8
          %2171 = dma.general %s2151, 768, %s2153, %s2111, [#allocation24], [#allocation25], %s2149, 0
        $region144: #{tpu_custom_call.1} parent=95 // pred_fallthru
          _
      $region96: #{tpu_custom_call.1} parent=5 // pred_fallthru
        _
      %p2172 = scmp.le.s32.totalorder 2, %s43
      // Predicated region
      $region145: #{tpu_custom_call.1} parent=5 // pred_check
        %p2173 = pneg %p2172
      $region146: #{tpu_custom_call.1} parent=5 // pred_check_branch
        %2175 = sbr.rel (%p2173) target = $region148
      $region147: #{tpu_custom_call.1} parent=5 // pred_region
        %s2176 = ssub.s32 %s43, 2
        // Predicated region
        $region149: #{tpu_custom_call.1} parent=147 // pred_check
          %p2177 = pneg %p481
        $region150: #{tpu_custom_call.1} parent=147 // pred_check_branch
          %2179 = sbr.rel (%p2177) target = $region152
        $region151: #{tpu_custom_call.1} parent=147 // pred_region
          %s2180 = sand.u32 %s466, 1
          %s2181 = scalar_lea.sflag [#allocation4], %s2180
          %s2182 = sand.u32 %s466, 1
          %s2183 = smul.addr %s2182, 16
          %s2184 = scalar_lea.vmem [#allocation19], %s2183
          %2186 = dma.done %s2181, 256
        $region152: #{tpu_custom_call.1} parent=147 // pred_fallthru
          _
        // Predicated region
        $region153: #{tpu_custom_call.1} parent=147 // pred_check
          %p2187 = pneg %p507
        $region154: #{tpu_custom_call.1} parent=147 // pred_check_branch
          %2189 = sbr.rel (%p2187) target = $region156
        $region155: #{tpu_custom_call.1} parent=147 // pred_region
          %s2190 = sand.u32 %s492, 1
          %s2191 = scalar_lea.sflag [#allocation21], %s2190
          %s2192 = sand.u32 %s492, 1
          %s2193 = smul.addr %s2192, 48
          %s2194 = scalar_lea.vmem [#allocation20], %s2193
          %2196 = dma.done %s2191, 768
        $region156: #{tpu_custom_call.1} parent=147 // pred_fallthru
          _
      $region148: #{tpu_custom_call.1} parent=5 // pred_fallthru
        _
    $region6: #{tpu_custom_call.1} parent=1 // loop_footer
      %s47 = sadd.s32 1, %s43
    $region7: #{tpu_custom_call.1} parent=1 // loop_footer_branch
      %42 = sbr.rel target = $region3
    $region8: #{tpu_custom_call.1} parent=1 // loop_exit
      _
    %2197 = vsyncpa [#allocation3], 1
    %s2198 = scalar_lea.sflag [#allocation3], 1
    %2199 = vsyncpa %s2198, 1
    %2200 = vsyncpa [#allocation6], 1
    %s2201 = scalar_lea.sflag [#allocation6], 1
    %2202 = vsyncpa %s2201, 1
    %2203 = vsyncpa [#allocation9], 1
    %2204 = vsyncpa [#allocation12], 1
    %2205 = vsyncpa [#allocation15], 1
    %2206 = vsyncpa [#allocation18], 1
    %2207 = vsyncpa [#allocation4], 1
    %s2208 = scalar_lea.sflag [#allocation4], 1
    %2209 = vsyncpa %s2208, 1
    %2210 = vsyncpa [#allocation21], 1
    %s2211 = scalar_lea.sflag [#allocation21], 1
    %2212 = vsyncpa %s2211, 1

</llo_original>
